<compile_context>
chip_gen: v7x
topology: tpu7x:2x2x1
jax: 0.10.0
libtpu: 0.0.40
codegen_flags: <defaults>
</compile_context>

<pallas_src>
import functools

import jax
import jax.numpy as jnp
from jax.experimental import pallas as pl
from jax.experimental.pallas import tpu as pltpu


# ----------------------------- small helpers -----------------------------

VMEM_LIMIT = 48 * 1024 * 1024  # <= 48 MiB: fits v7x's 64 MiB/TC, plenty on v5e/v6e (128 MiB)


def _compiler_params(dim_sem):
    return pltpu.CompilerParams(dimension_semantics=dim_sem, vmem_limit_bytes=VMEM_LIMIT)


def _round_up(x, m):
    return (x + m - 1) // m * m


def _choose_tile(dim, pref, align):
    """Pick a tile size that is `align`-aligned, <= pref, and (if possible) divides dim."""
    padded = _round_up(dim, align)
    if padded <= pref:
        return padded
    for t in range(pref, align - 1, -align):
        if padded % t == 0:
            return t
    return pref


def _largest_divisor(n, cap):
    for d in range(min(n, cap), 0, -1):
        if n % d == 0:
            return d
    return 1


def _pad2(a, rows, cols):
    r, c = a.shape
    if r == rows and c == cols:
        return a
    return jnp.pad(a, ((0, rows - r), (0, cols - c)))


# ----------------------------- tiled linear (M,N,K grid + f32 accumulator) -----------------------------

def _linear_tiled_kernel(*refs, act, has_bias, has_res):
    x_ref, w_ref = refs[0], refs[1]
    pos = 2
    b_ref = refs[pos] if has_bias else None
    pos += 1 if has_bias else 0
    r_ref = refs[pos] if has_res else None
    pos += 1 if has_res else 0
    o_ref, acc_ref = refs[pos], refs[pos + 1]

    k = pl.program_id(2)

    @pl.when(k == 0)
    def _():
        acc_ref[...] = jnp.zeros_like(acc_ref)

    acc_ref[...] += jnp.dot(x_ref[...].astype(jnp.bfloat16),
                            w_ref[...].astype(jnp.bfloat16),
                            preferred_element_type=jnp.float32)

    @pl.when(k == pl.num_programs(2) - 1)
    def _():
        y = acc_ref[...]
        if has_bias:
            y = y + b_ref[...]
        if act == "quick_gelu":
            y = y * jax.nn.sigmoid(1.702 * y)   # CLIP QuickGELU
        if has_res:
            y = y + r_ref[...].astype(jnp.float32)
        o_ref[...] = y.astype(o_ref.dtype)


def pl_linear_tiled(x, w, bias=None, residual=None, act="none",
                    tm=512, tn=1024, tk=1024, out_dtype=jnp.bfloat16):
    M, K = x.shape
    K2, N = w.shape
    assert K == K2
    bm = _choose_tile(M, tm, 8)
    bn = _choose_tile(N, tn, 128)
    bk = _choose_tile(K, tk, 128)
    Mp, Np, Kp = _round_up(M, bm), _round_up(N, bn), _round_up(K, bk)

    xp = _pad2(x.astype(jnp.bfloat16), Mp, Kp)
    wp = _pad2(w.astype(jnp.bfloat16), Kp, Np)
    args = [xp, wp]
    in_specs = [pl.BlockSpec((bm, bk), lambda i, j, k: (i, k)),
                pl.BlockSpec((bk, bn), lambda i, j, k: (k, j))]

    has_bias = bias is not None
    has_res = residual is not None
    bytes_acc = (Mp * Kp + Kp * Np) * 2 + Mp * Np * 2
    if has_bias:
        in_specs.append(pl.BlockSpec((1, bn), lambda i, j, k: (0, j)))
        args.append(_pad2(bias.reshape(1, N).astype(jnp.float32), 1, Np))
        bytes_acc += Np * 4
    io_aliases = {}
    if has_res:
        in_specs.append(pl.BlockSpec((bm, bn), lambda i, j, k: (i, j)))
        args.append(_pad2(residual.astype(jnp.bfloat16), Mp, Np))
        io_aliases = {len(args) - 1: 0}   # residual HBM buffer aliased with the output
        bytes_acc += Mp * Np * 2

    cost = pl.CostEstimate(flops=2 * Mp * Np * Kp, transcendentals=0,
                           bytes_accessed=bytes_acc)

    out = pl.pallas_call(
        functools.partial(_linear_tiled_kernel, act=act, has_bias=has_bias, has_res=has_res),
        out_shape=jax.ShapeDtypeStruct((Mp, Np), out_dtype),
        grid=(Mp // bm, Np // bn, Kp // bk),
        in_specs=in_specs,
        out_specs=pl.BlockSpec((bm, bn), lambda i, j, k: (i, j)),
        scratch_shapes=[pltpu.VMEM((bm, bn), jnp.float32)],
        input_output_aliases=io_aliases,
        cost_estimate=cost,
        compiler_params=_compiler_params(("parallel", "parallel", "arbitrary")),
    )(*args)
    if (Mp, Np) != (M, N):
        out = out[:M, :N]
    return out


# ----------------------------- fused LayerNorm + linear (+QuickGELU) -----------------------------
# LayerNorm of the row block is computed once (j == 0) into a VMEM scratch and reused
# across all N tiles; the N axis is therefore marked "arbitrary".

def _ln_linear_kernel(x_ref, g_ref, bln_ref, w_ref, *rest, act, has_bias):
    if has_bias:
        b_ref, o_ref, h_ref = rest
    else:
        b_ref = None
        o_ref, h_ref = rest

    @pl.when(pl.program_id(1) == 0)
    def _():
        x = x_ref[...].astype(jnp.float32)
        mu = jnp.mean(x, axis=-1, keepdims=True)
        var = jnp.mean(jnp.square(x - mu), axis=-1, keepdims=True)
        h = (x - mu) * jax.lax.rsqrt(var + 1e-5) * g_ref[...] + bln_ref[...]
        h_ref[...] = h.astype(jnp.bfloat16)

    y = jnp.dot(h_ref[...], w_ref[...].astype(jnp.bfloat16),
                preferred_element_type=jnp.float32)
    if has_bias:
        y = y + b_ref[...]
    if act == "quick_gelu":
        y = y * jax.nn.sigmoid(1.702 * y)
    o_ref[...] = y.astype(o_ref.dtype)


def pl_ln_linear(x, g, b_ln, w, bias=None, act="none", tm=512, tn=1024,
                 out_dtype=jnp.bfloat16):
    M, K = x.shape
    K2, N = w.shape
    assert K == K2
    bm = _choose_tile(M, tm, 8)
    bn = _choose_tile(N, tn, 128)
    Mp, Np = _round_up(M, bm), _round_up(N, bn)

    xp = _pad2(x.astype(jnp.bfloat16), Mp, K)
    wp = _pad2(w.astype(jnp.bfloat16), K, Np)
    args = [xp, g.reshape(1, K).astype(jnp.float32), b_ln.reshape(1, K).astype(jnp.float32), wp]
    in_specs = [pl.BlockSpec((bm, K), lambda i, j: (i, 0)),
                pl.BlockSpec((1, K), lambda i, j: (0, 0)),
                pl.BlockSpec((1, K), lambda i, j: (0, 0)),
                pl.BlockSpec((K, bn), lambda i, j: (0, j))]
    has_bias = bias is not None
    if has_bias:
        in_specs.append(pl.BlockSpec((1, bn), lambda i, j: (0, j)))
        args.append(_pad2(bias.reshape(1, N).astype(jnp.float32), 1, Np))

    trans = Mp + (Mp * Np if act == "quick_gelu" else 0)
    cost = pl.CostEstimate(flops=2 * Mp * Np * K + 8 * Mp * K, transcendentals=int(trans),
                           bytes_accessed=(Mp * K + K * Np + Mp * Np) * 2)

    out = pl.pallas_call(
        functools.partial(_ln_linear_kernel, act=act, has_bias=has_bias),
        out_shape=jax.ShapeDtypeStruct((Mp, Np), out_dtype),
        grid=(Mp // bm, Np // bn),
        in_specs=in_specs,
        out_specs=pl.BlockSpec((bm, bn), lambda i, j: (i, j)),
        scratch_shapes=[pltpu.VMEM((bm, K), jnp.bfloat16)],
        cost_estimate=cost,
        compiler_params=_compiler_params(("parallel", "arbitrary")),
    )(*args)
    if (Mp, Np) != (M, N):
        out = out[:M, :N]
    return out


# ----------------------------- ln_pre with fused positional-embedding add -----------------------------

def _ln_pre_kernel(x_ref, pos_ref, g_ref, b_ref, o_ref):
    x = x_ref[...].astype(jnp.float32) + pos_ref[...]
    mu = jnp.mean(x, axis=-1, keepdims=True)
    var = jnp.mean(jnp.square(x - mu), axis=-1, keepdims=True)
    o_ref[...] = ((x - mu) * jax.lax.rsqrt(var + 1e-5) * g_ref[...] + b_ref[...]
                  ).astype(o_ref.dtype)


def pl_ln_pre(x_bsw, pos_emb, g, b):
    B, S, W = x_bsw.shape
    Bt = _largest_divisor(B, 8)
    return pl.pallas_call(
        _ln_pre_kernel,
        out_shape=jax.ShapeDtypeStruct((B, S, W), jnp.bfloat16),
        grid=(B // Bt,),
        in_specs=[pl.BlockSpec((Bt, S, W), lambda i: (i, 0, 0)),
                  pl.BlockSpec((1, S, W), lambda i: (0, 0, 0)),
                  pl.BlockSpec((1, 1, W), lambda i: (0, 0, 0)),
                  pl.BlockSpec((1, 1, W), lambda i: (0, 0, 0))],
        out_specs=pl.BlockSpec((Bt, S, W), lambda i: (i, 0, 0)),
        compiler_params=_compiler_params(("parallel",)),
    )(x_bsw, pos_emb.reshape(1, S, W).astype(jnp.float32),
      g.reshape(1, 1, W).astype(jnp.float32), b.reshape(1, 1, W).astype(jnp.float32))


# ----------------------------- attention: heads fused inside, lane-dense output -----------------------------
# qkv stays in its natural (B, S, 3*width) layout; heads are static lane slices inside the
# kernel; output is written as (B, S, width) with heads concatenated along lanes.
# 1/sqrt(head_dim) is pre-folded into the QKV weights at init.

def _attention_kernel(qkv_ref, o_ref, *, heads, hd, width):
    qkv = qkv_ref[...]                                  # (Bt, S, 3*width) bf16
    outs = []
    for h in range(heads):
        q = qkv[:, :, h * hd:(h + 1) * hd]
        k = qkv[:, :, width + h * hd: width + (h + 1) * hd]
        v = qkv[:, :, 2 * width + h * hd: 2 * width + (h + 1) * hd]
        s = jnp.einsum("bqd,bkd->bqk", q, k, preferred_element_type=jnp.float32)
        s = s - jnp.max(s, axis=-1, keepdims=True)
        p = jnp.exp(s)
        p = p * pl.reciprocal(jnp.sum(p, axis=-1, keepdims=True), approx=True)
        outs.append(jnp.einsum("bqk,bkd->bqd", p.astype(qkv.dtype), v,
                               preferred_element_type=jnp.float32))
    o_ref[...] = jnp.concatenate(outs, axis=-1).astype(o_ref.dtype)


def pl_attention(qkv_bsw, heads, hd):
    B, S, W3 = qkv_bsw.shape
    width = W3 // 3
    Bt = _largest_divisor(B, 8)
    return pl.pallas_call(
        functools.partial(_attention_kernel, heads=heads, hd=hd, width=width),
        out_shape=jax.ShapeDtypeStruct((B, S, width), jnp.bfloat16),
        grid=(B // Bt,),
        in_specs=[pl.BlockSpec((Bt, S, W3), lambda b: (b, 0, 0))],
        out_specs=pl.BlockSpec((Bt, S, width), lambda b: (b, 0, 0)),
        compiler_params=_compiler_params(("parallel",)),
    )(qkv_bsw)


# ----------------------------- L2-normalize + 100 * feats @ zeroshot_weights -----------------------------

def _norm_logits_kernel(f_ref, w_ref, o_ref):
    f = f_ref[...].astype(jnp.float32)
    inv = jax.lax.rsqrt(jnp.sum(f * f, axis=-1, keepdims=True) + 1e-12)
    o_ref[...] = 100.0 * jnp.dot((f * inv).astype(jnp.bfloat16), w_ref[...],
                                 preferred_element_type=jnp.float32)


def pl_norm_logits(feats, zeroshot_weights, tm=256, tn=512):
    B, E = feats.shape
    E2, C = zeroshot_weights.shape
    assert E == E2
    bm = _choose_tile(B, tm, 8)
    bn = _choose_tile(C, tn, 128)   # keeps >= 2 N blocks for real class counts (v7x megacore)
    Bp, Cp = _round_up(B, bm), _round_up(C, bn)
    out = pl.pallas_call(
        _norm_logits_kernel,
        out_shape=jax.ShapeDtypeStruct((Bp, Cp), jnp.float32),
        grid=(Bp // bm, Cp // bn),
        in_specs=[pl.BlockSpec((bm, E), lambda i, j: (i, 0)),
                  pl.BlockSpec((E, bn), lambda i, j: (0, j))],
        out_specs=pl.BlockSpec((bm, bn), lambda i, j: (i, j)),
        compiler_params=_compiler_params(("parallel", "parallel")),
    )(_pad2(feats.astype(jnp.bfloat16), Bp, E),
      _pad2(zeroshot_weights.astype(jnp.bfloat16), E, Cp))
    return out[:B, :C] if (Bp, Cp) != (B, C) else out


# ----------------------------- model (glue + kernels) -----------------------------

def vision_transformer(x_nchw, params, cfg):
    B, C, H, W = x_nchw.shape
    ps = cfg["patch"]
    gh, gw = H // ps, W // ps
    n = gh * gw
    width = cfg["width"]
    heads = cfg["heads"]
    hd = width // heads

    # Patch embedding: conv2d(kernel=stride=patch, no bias) == patchify + tiled matmul (bf16).
    patches = (x_nchw.reshape(B, C, gh, ps, gw, ps)
               .transpose(0, 2, 4, 1, 3, 5)
               .reshape(B * n, C * ps * ps)).astype(jnp.bfloat16)
    tok = pl_linear_tiled(patches, params["conv_w"]).reshape(B, n, width)

    cls = jnp.broadcast_to(params["class_embedding"], (B, 1, width))
    x = jnp.concatenate([cls, tok], axis=1)                     # (B, S, width) bf16
    S = n + 1

    # ln_pre with fused positional-embedding add
    x = pl_ln_pre(x, params["pos_emb"], params["ln_pre_g"], params["ln_pre_b"])
    x = x.reshape(B * S, width)

    for blk in params["blocks"]:
        # --- multi-head self attention (pre-LN fused into QKV, residual fused into out-proj) ---
        qkv = pl_ln_linear(x, blk["ln1_g"], blk["ln1_b"], blk["attn_in_w"], blk["attn_in_b"])
        o = pl_attention(qkv.reshape(B, S, 3 * width), heads, hd).reshape(B * S, width)
        x = pl_linear_tiled(o, blk["attn_out_w"], bias=blk["attn_out_b"], residual=x)
        # --- MLP (LN2 + fc + QuickGELU fused; proj + residual fused) ---
        h = pl_ln_linear(x, blk["ln2_g"], blk["ln2_b"], blk["fc_w"], blk["fc_b"],
                         act="quick_gelu")
        x = pl_linear_tiled(h, blk["proj_w"], bias=blk["proj_b"], residual=x)

    x = x.reshape(B, S, width)
    cls_tok = x[:, 0, :]
    # fused ln_post + visual projection (no bias)
    feats = pl_ln_linear(cls_tok, params["ln_post_g"], params["ln_post_b"], params["proj"])
    return feats


def clip_with_labels_forward(x_nchw, params, cfg):
    image_features = vision_transformer(x_nchw, params, cfg)
    # image_features /= ||image_features||  ;  logits = 100 * feats @ zeroshot_weights
    return pl_norm_logits(image_features, params["zeroshot_weights"])


# ----------------------------- deterministic parameter init -----------------------------

def init_params(key, cfg):
    C = cfg["channels"]
    ps = cfg["patch"]
    width = cfg["width"]
    layers = cfg["layers"]
    heads = cfg["heads"]
    mlp = 4 * width
    embed_dim = cfg["embed_dim"]
    n_classes = cfg["num_classes"]
    seq = (cfg["image"] // ps) ** 2 + 1

    keys = iter(jax.random.split(key, 16 + 16 * layers))

    def normal(shape, scale=0.02):
        return (scale * jax.random.normal(next(keys), shape)).astype(jnp.float32)

    # Weights are pre-transposed / pre-flattened once here and stored in bf16 (MXU input dtype).
    params = {
        "conv_w": normal((width, C, ps, ps)).reshape(width, C * ps * ps).T.astype(jnp.bfloat16),
        "class_embedding": normal((width,)).astype(jnp.bfloat16),
        "pos_emb": normal((seq, width)),
        "ln_pre_g": jnp.ones((width,), jnp.float32),
        "ln_pre_b": jnp.zeros((width,), jnp.float32),
        "ln_post_g": jnp.ones((width,), jnp.float32),
        "ln_post_b": jnp.zeros((width,), jnp.float32),
        "proj": normal((width, embed_dim)).astype(jnp.bfloat16),
        "blocks": [],
    }
    scale = float(width // heads) ** -0.5
    for _ in range(layers):
        # 1/sqrt(head_dim) folded into the q rows of the QKV projection (weight transform, free).
        w_in = normal((3 * width, width))
        w_in = w_in.at[:width, :].multiply(scale)
        b_in = jnp.zeros((3 * width,), jnp.float32)
        b_in = b_in.at[:width].multiply(scale)
        params["blocks"].append({
            "ln1_g": jnp.ones((width,), jnp.float32),
            "ln1_b": jnp.zeros((width,), jnp.float32),
            "attn_in_w": w_in.T.astype(jnp.bfloat16),                         # (width, 3*width)
            "attn_in_b": b_in,
            "attn_out_w": normal((width, width)).T.astype(jnp.bfloat16),      # (width, width)
            "attn_out_b": jnp.zeros((width,), jnp.float32),
            "ln2_g": jnp.ones((width,), jnp.float32),
            "ln2_b": jnp.zeros((width,), jnp.float32),
            "fc_w": normal((mlp, width)).T.astype(jnp.bfloat16),              # (width, mlp)
            "fc_b": jnp.zeros((mlp,), jnp.float32),
            "proj_w": normal((width, mlp)).T.astype(jnp.bfloat16),            # (mlp, width)
            "proj_b": jnp.zeros((width,), jnp.float32),
        })

    # Synthetic zero-shot classifier weights (unit-norm class embeddings, [embed_dim, n_classes]).
    # TODO(synk): real module builds these with the CLIP text encoder over ImageNet prompts; synthesized here.
    zw = jax.random.normal(next(keys), (embed_dim, n_classes)).astype(jnp.float32)
    zw = zw / jnp.linalg.norm(zw, axis=0, keepdims=True)
    params["zeroshot_weights"] = zw.astype(jnp.bfloat16)
    return params


# ----------------------------- main -----------------------------

if __name__ == "__main__":
    cfg = dict(
        channels=3,
        image=64,       # small stand-in for input_resolution (224 in real ViT-B/32)
        patch=32,       # ViT-B/32 patch size
        width=32,       # transformer width (768 in real model)
        heads=4,        # (12 in real model)
        layers=2,       # (12 in real model)
        embed_dim=16,   # (512 in real model)
        num_classes=8,  # (1000 ImageNet classes in real model)
    )

    key = jax.random.PRNGKey(0)
    pkey, xkey = jax.random.split(key)
    params = init_params(pkey, cfg)

    x = jax.random.normal(xkey, (2, cfg["channels"], cfg["image"], cfg["image"]),
                          dtype=jnp.float32)  # NCHW, like PyTorch

    logits = jax.jit(lambda inp: clip_with_labels_forward(inp, params, cfg))(x)
    jax.block_until_ready(logits)
    assert logits.shape == (2, cfg["num_classes"])
    assert logits.dtype == jnp.float32
    assert bool(jnp.all(jnp.isfinite(logits)))
    print("KERNEL_OK")
</pallas_src>

<mosaic_0001>
module attributes {stable_mosaic.version = 11 : i64} {
  func.func @_linear_tiled_kernel(%arg0: i32, %arg1: i32, %arg2: i32, %arg3: memref<8x1024xbf16, #tpu.memory_space<vmem>>, %arg4: memref<1024x128xbf16, #tpu.memory_space<vmem>>, %arg5: memref<8x128xbf16, #tpu.memory_space<vmem>>, %arg6: memref<8x128xf32, #tpu.memory_space<vmem>>) attributes {dimension_semantics = [#tpu.dimension_semantics<parallel>, #tpu.dimension_semantics<parallel>, #tpu.dimension_semantics<arbitrary>], iteration_bounds = array<i64: 1, 1, 3>, scalar_prefetch = 0 : i64, scratch_operands = 1 : i64, tpu.core_type = #tpu.core_type<tc>, window_params = [{transform_indices = @transform_0, window_bounds = array<i64: 8, 1024>}, {transform_indices = @transform_1, window_bounds = array<i64: 1024, 128>}, {transform_indices = @transform_2, window_bounds = array<i64: 8, 128>}]} {
    %c0_i32 = arith.constant 0 : i32
    %0 = arith.cmpi eq, %arg2, %c0_i32 : i32
    %1 = arith.extui %0 : i1 to i32
    %c0_i32_0 = arith.constant 0 : i32
    %2 = arith.cmpi ne, %1, %c0_i32_0 : i32
    scf.if %2 {
      %cst_9 = arith.constant 0.000000e+00 : f32
      %12 = vector.broadcast %cst_9 : f32 to vector<8x128xf32>
      %c0_10 = arith.constant 0 : index
      %c0_11 = arith.constant 0 : index
      %13 = vector.load %arg6[%c0_10, %c0_11] : memref<8x128xf32, #tpu.memory_space<vmem>>, vector<8x128xf32>
      tpu.vector_store %arg6[%c0_10, %c0_11], %12 {strides = array<i32>} : memref<8x128xf32, #tpu.memory_space<vmem>>, vector<8x128xf32>,
    } else {
    }
    %c0 = arith.constant 0 : index
    %c0_1 = arith.constant 0 : index
    %3 = vector.load %arg6[%c0, %c0_1] : memref<8x128xf32, #tpu.memory_space<vmem>>, vector<8x128xf32>
    %c0_2 = arith.constant 0 : index
    %c0_3 = arith.constant 0 : index
    %4 = vector.load %arg3[%c0_2, %c0_3] : memref<8x1024xbf16, #tpu.memory_space<vmem>>, vector<8x1024xbf16>
    %c0_4 = arith.constant 0 : index
    %c0_5 = arith.constant 0 : index
    %5 = vector.load %arg4[%c0_4, %c0_5] : memref<1024x128xbf16, #tpu.memory_space<vmem>>, vector<1024x128xbf16>
    %cst = arith.constant dense<0.000000e+00> : vector<8x128xf32>
    %6 = tpu.matmul %4, %5, %cst {dimension_numbers = #tpu.dot_dimension_numbers<[1], [0], [0], [1], [0, 0, 1, 1], [], []>} : vector<8x1024xbf16>, vector<1024x128xbf16>, vector<8x128xf32> -> vector<8x128xf32>
    %7 = arith.addf %3, %6 : vector<8x128xf32>
    %c0_6 = arith.constant 0 : index
    %c0_7 = arith.constant 0 : index
    %8 = vector.load %arg6[%c0_6, %c0_7] : memref<8x128xf32, #tpu.memory_space<vmem>>, vector<8x128xf32>
    tpu.vector_store %arg6[%c0_6, %c0_7], %7 {strides = array<i32>} : memref<8x128xf32, #tpu.memory_space<vmem>>, vector<8x128xf32>,
    %c2_i32 = arith.constant 2 : i32
    %9 = arith.cmpi eq, %arg2, %c2_i32 : i32
    %10 = arith.extui %9 : i1 to i32
    %c0_i32_8 = arith.constant 0 : i32
    %11 = arith.cmpi ne, %10, %c0_i32_8 : i32
    scf.if %11 {
      %c0_9 = arith.constant 0 : index
      %c0_10 = arith.constant 0 : index
      %12 = vector.load %arg6[%c0_9, %c0_10] : memref<8x128xf32, #tpu.memory_space<vmem>>, vector<8x128xf32>
      %13 = arith.truncf %12 : vector<8x128xf32> to vector<8x128xbf16>
      %c0_11 = arith.constant 0 : index
      %c0_12 = arith.constant 0 : index
      %14 = vector.load %arg5[%c0_11, %c0_12] : memref<8x128xbf16, #tpu.memory_space<vmem>>, vector<8x128xbf16>
      tpu.vector_store %arg5[%c0_11, %c0_12], %13 {strides = array<i32>} : memref<8x128xbf16, #tpu.memory_space<vmem>>, vector<8x128xbf16>,
    } else {
    }
    return
  }
  func.func @transform_0(%arg0: i32, %arg1: i32, %arg2: i32) -> (i32, i32) {
    %c0_i32 = arith.constant 0 : i32
    return %arg0, %arg2 : i32, i32
  }
  func.func @transform_1(%arg0: i32, %arg1: i32, %arg2: i32) -> (i32, i32) {
    %c0_i32 = arith.constant 0 : i32
    return %arg2, %arg1 : i32, i32
  }
  func.func @transform_2(%arg0: i32, %arg1: i32, %arg2: i32) -> (i32, i32) {
    %c0_i32 = arith.constant 0 : i32
    return %arg0, %arg1 : i32, i32
  }
}

module attributes {stable_mosaic.version = 11 : i64} {
  func.func @_ln_pre_kernel(%arg0: i32, %arg1: memref<2x5x32xbf16, #tpu.memory_space<vmem>>, %arg2: memref<1x5x32xf32, #tpu.memory_space<vmem>>, %arg3: memref<1x1x32xf32, #tpu.memory_space<vmem>>, %arg4: memref<1x1x32xf32, #tpu.memory_space<vmem>>, %arg5: memref<2x5x32xbf16, #tpu.memory_space<vmem>>) attributes {dimension_semantics = [#tpu.dimension_semantics<parallel>], iteration_bounds = array<i64: 1>, scalar_prefetch = 0 : i64, scratch_operands = 0 : i64, tpu.core_type = #tpu.core_type<tc>, window_params = [{transform_indices = @transform_0, window_bounds = array<i64: 2, 5, 32>}, {pipeline_mode = #tpu.pipeline_mode<synchronous>, transform_indices = @transform_1, window_bounds = array<i64: 1, 5, 32>}, {pipeline_mode = #tpu.pipeline_mode<synchronous>, transform_indices = @transform_2, window_bounds = array<i64: 1, 1, 32>}, {pipeline_mode = #tpu.pipeline_mode<synchronous>, transform_indices = @transform_3, window_bounds = array<i64: 1, 1, 32>}, {transform_indices = @transform_4, window_bounds = array<i64: 2, 5, 32>}]} {
    %c0 = arith.constant 0 : index
    %c0_0 = arith.constant 0 : index
    %c0_1 = arith.constant 0 : index
    %0 = vector.load %arg1[%c0, %c0_0, %c0_1] : memref<2x5x32xbf16, #tpu.memory_space<vmem>>, vector<2x5x32xbf16>
    %1 = arith.extf %0 : vector<2x5x32xbf16> to vector<2x5x32xf32>
    %c0_2 = arith.constant 0 : index
    %c0_3 = arith.constant 0 : index
    %c0_4 = arith.constant 0 : index
    %2 = vector.load %arg2[%c0_2, %c0_3, %c0_4] : memref<1x5x32xf32, #tpu.memory_space<vmem>>, vector<1x5x32xf32>
    %3 = vector.broadcast %2 : vector<1x5x32xf32> to vector<2x5x32xf32>
    %4 = arith.addf %1, %3 : vector<2x5x32xf32>
    %cst = arith.constant dense<0.000000e+00> : vector<2x5xf32>
    %5 = vector.multi_reduction <add>, %4, %cst [2] : vector<2x5x32xf32> to vector<2x5xf32>
    %6 = vector.shape_cast %5 : vector<2x5xf32> to vector<2x5x1xf32>
    %cst_5 = arith.constant 3.200000e+01 : f32
    %7 = vector.broadcast %cst_5 : f32 to vector<2x5x1xf32>
    %8 = arith.divf %6, %7 : vector<2x5x1xf32>
    %9 = vector.broadcast %8 : vector<2x5x1xf32> to vector<2x5x32xf32>
    %10 = arith.subf %4, %9 : vector<2x5x32xf32>
    %11 = arith.mulf %10, %10 : vector<2x5x32xf32>
    %cst_6 = arith.constant dense<0.000000e+00> : vector<2x5xf32>
    %12 = vector.multi_reduction <add>, %11, %cst_6 [2] : vector<2x5x32xf32> to vector<2x5xf32>
    %13 = vector.shape_cast %12 : vector<2x5xf32> to vector<2x5x1xf32>
    %cst_7 = arith.constant 3.200000e+01 : f32
    %14 = vector.broadcast %cst_7 : f32 to vector<2x5x1xf32>
    %15 = arith.divf %13, %14 : vector<2x5x1xf32>
    %16 = vector.broadcast %8 : vector<2x5x1xf32> to vector<2x5x32xf32>
    %17 = arith.subf %4, %16 : vector<2x5x32xf32>
    %cst_8 = arith.constant 9.99999974E-6 : f32
    %18 = vector.broadcast %cst_8 : f32 to vector<2x5x1xf32>
    %19 = arith.addf %15, %18 : vector<2x5x1xf32>
    %20 = math.rsqrt %19 : vector<2x5x1xf32>
    %21 = vector.broadcast %20 : vector<2x5x1xf32> to vector<2x5x32xf32>
    %22 = arith.mulf %17, %21 : vector<2x5x32xf32>
    %c0_9 = arith.constant 0 : index
    %c0_10 = arith.constant 0 : index
    %c0_11 = arith.constant 0 : index
    %23 = vector.load %arg3[%c0_9, %c0_10, %c0_11] : memref<1x1x32xf32, #tpu.memory_space<vmem>>, vector<1x1x32xf32>
    %24 = vector.broadcast %23 : vector<1x1x32xf32> to vector<2x5x32xf32>
    %25 = arith.mulf %22, %24 : vector<2x5x32xf32>
    %c0_12 = arith.constant 0 : index
    %c0_13 = arith.constant 0 : index
    %c0_14 = arith.constant 0 : index
    %26 = vector.load %arg4[%c0_12, %c0_13, %c0_14] : memref<1x1x32xf32, #tpu.memory_space<vmem>>, vector<1x1x32xf32>
    %27 = vector.broadcast %26 : vector<1x1x32xf32> to vector<2x5x32xf32>
    %28 = arith.addf %25, %27 : vector<2x5x32xf32>
    %29 = arith.truncf %28 : vector<2x5x32xf32> to vector<2x5x32xbf16>
    %c0_15 = arith.constant 0 : index
    %c0_16 = arith.constant 0 : index
    %c0_17 = arith.constant 0 : index
    %30 = vector.load %arg5[%c0_15, %c0_16, %c0_17] : memref<2x5x32xbf16, #tpu.memory_space<vmem>>, vector<2x5x32xbf16>
    tpu.vector_store %arg5[%c0_15, %c0_16, %c0_17], %29 {strides = array<i32>} : memref<2x5x32xbf16, #tpu.memory_space<vmem>>, vector<2x5x32xbf16>,
    return
  }
  func.func @transform_0(%arg0: i32) -> (i32, i32, i32) {
    %c0_i32 = arith.constant 0 : i32
    %c0_i32_0 = arith.constant 0 : i32
    %c0_i32_1 = arith.constant 0 : i32
    return %arg0, %c0_i32, %c0_i32_0 : i32, i32, i32
  }
  func.func @transform_1(%arg0: i32) -> (i32, i32, i32) {
    %c0_i32 = arith.constant 0 : i32
    %c0_i32_0 = arith.constant 0 : i32
    %c0_i32_1 = arith.constant 0 : i32
    %c0_i32_2 = arith.constant 0 : i32
    return %c0_i32, %c0_i32_0, %c0_i32_1 : i32, i32, i32
  }
  func.func @transform_2(%arg0: i32) -> (i32, i32, i32) {
    %c0_i32 = arith.constant 0 : i32
    %c0_i32_0 = arith.constant 0 : i32
    %c0_i32_1 = arith.constant 0 : i32
    %c0_i32_2 = arith.constant 0 : i32
    return %c0_i32, %c0_i32_0, %c0_i32_1 : i32, i32, i32
  }
  func.func @transform_3(%arg0: i32) -> (i32, i32, i32) {
    %c0_i32 = arith.constant 0 : i32
    %c0_i32_0 = arith.constant 0 : i32
    %c0_i32_1 = arith.constant 0 : i32
    %c0_i32_2 = arith.constant 0 : i32
    return %c0_i32, %c0_i32_0, %c0_i32_1 : i32, i32, i32
  }
  func.func @transform_4(%arg0: i32) -> (i32, i32, i32) {
    %c0_i32 = arith.constant 0 : i32
    %c0_i32_0 = arith.constant 0 : i32
    %c0_i32_1 = arith.constant 0 : i32
    return %arg0, %c0_i32, %c0_i32_0 : i32, i32, i32
  }
}

module attributes {stable_mosaic.version = 11 : i64} {
  func.func @_ln_linear_kernel(%arg0: i32, %arg1: i32, %arg2: memref<16x32xbf16, #tpu.memory_space<vmem>>, %arg3: memref<1x32xf32, #tpu.memory_space<vmem>>, %arg4: memref<1x32xf32, #tpu.memory_space<vmem>>, %arg5: memref<32x128xbf16, #tpu.memory_space<vmem>>, %arg6: memref<1x128xf32, #tpu.memory_space<vmem>>, %arg7: memref<16x128xbf16, #tpu.memory_space<vmem>>, %arg8: memref<16x32xbf16, #tpu.memory_space<vmem>>) attributes {dimension_semantics = [#tpu.dimension_semantics<parallel>, #tpu.dimension_semantics<arbitrary>], iteration_bounds = array<i64: 1, 1>, scalar_prefetch = 0 : i64, scratch_operands = 1 : i64, tpu.core_type = #tpu.core_type<tc>, window_params = [{transform_indices = @transform_0, window_bounds = array<i64: 16, 32>}, {pipeline_mode = #tpu.pipeline_mode<synchronous>, transform_indices = @transform_1, window_bounds = array<i64: 1, 32>}, {pipeline_mode = #tpu.pipeline_mode<synchronous>, transform_indices = @transform_2, window_bounds = array<i64: 1, 32>}, {transform_indices = @transform_3, window_bounds = array<i64: 32, 128>}, {transform_indices = @transform_4, window_bounds = array<i64: 1, 128>}, {transform_indices = @transform_5, window_bounds = array<i64: 16, 128>}]} {
    %c0_i32 = arith.constant 0 : i32
    %0 = arith.cmpi eq, %arg1, %c0_i32 : i32
    %1 = arith.extui %0 : i1 to i32
    %c0_i32_0 = arith.constant 0 : i32
    %2 = arith.cmpi ne, %1, %c0_i32_0 : i32
    scf.if %2 {
      %c0_8 = arith.constant 0 : index
      %c0_9 = arith.constant 0 : index
      %11 = vector.load %arg2[%c0_8, %c0_9] : memref<16x32xbf16, #tpu.memory_space<vmem>>, vector<16x32xbf16>
      %12 = arith.extf %11 : vector<16x32xbf16> to vector<16x32xf32>
      %cst_10 = arith.constant dense<0.000000e+00> : vector<16xf32>
      %13 = vector.multi_reduction <add>, %12, %cst_10 [1] : vector<16x32xf32> to vector<16xf32>
      %14 = vector.shape_cast %13 : vector<16xf32> to vector<16x1xf32>
      %cst_11 = arith.constant 3.200000e+01 : f32
      %15 = vector.broadcast %cst_11 : f32 to vector<16x1xf32>
      %16 = arith.divf %14, %15 : vector<16x1xf32>
      %17 = vector.broadcast %16 : vector<16x1xf32> to vector<16x32xf32>
      %18 = arith.subf %12, %17 : vector<16x32xf32>
      %19 = arith.mulf %18, %18 : vector<16x32xf32>
      %cst_12 = arith.constant dense<0.000000e+00> : vector<16xf32>
      %20 = vector.multi_reduction <add>, %19, %cst_12 [1] : vector<16x32xf32> to vector<16xf32>
      %21 = vector.shape_cast %20 : vector<16xf32> to vector<16x1xf32>
      %cst_13 = arith.constant 3.200000e+01 : f32
      %22 = vector.broadcast %cst_13 : f32 to vector<16x1xf32>
      %23 = arith.divf %21, %22 : vector<16x1xf32>
      %24 = vector.broadcast %16 : vector<16x1xf32> to vector<16x32xf32>
      %25 = arith.subf %12, %24 : vector<16x32xf32>
      %cst_14 = arith.constant 9.99999974E-6 : f32
      %26 = vector.broadcast %cst_14 : f32 to vector<16x1xf32>
      %27 = arith.addf %23, %26 : vector<16x1xf32>
      %28 = math.rsqrt %27 : vector<16x1xf32>
      %29 = vector.broadcast %28 : vector<16x1xf32> to vector<16x32xf32>
      %30 = arith.mulf %25, %29 : vector<16x32xf32>
      %c0_15 = arith.constant 0 : index
      %c0_16 = arith.constant 0 : index
      %31 = vector.load %arg3[%c0_15, %c0_16] : memref<1x32xf32, #tpu.memory_space<vmem>>, vector<1x32xf32>
      %32 = vector.broadcast %31 : vector<1x32xf32> to vector<16x32xf32>
      %33 = arith.mulf %30, %32 : vector<16x32xf32>
      %c0_17 = arith.constant 0 : index
      %c0_18 = arith.constant 0 : index
      %34 = vector.load %arg4[%c0_17, %c0_18] : memref<1x32xf32, #tpu.memory_space<vmem>>, vector<1x32xf32>
      %35 = vector.broadcast %34 : vector<1x32xf32> to vector<16x32xf32>
      %36 = arith.addf %33, %35 : vector<16x32xf32>
      %37 = arith.truncf %36 : vector<16x32xf32> to vector<16x32xbf16>
      %c0_19 = arith.constant 0 : index
      %c0_20 = arith.constant 0 : index
      %38 = vector.load %arg8[%c0_19, %c0_20] : memref<16x32xbf16, #tpu.memory_space<vmem>>, vector<16x32xbf16>
      tpu.vector_store %arg8[%c0_19, %c0_20], %37 {strides = array<i32>} : memref<16x32xbf16, #tpu.memory_space<vmem>>, vector<16x32xbf16>,
    } else {
    }
    %c0 = arith.constant 0 : index
    %c0_1 = arith.constant 0 : index
    %3 = vector.load %arg8[%c0, %c0_1] : memref<16x32xbf16, #tpu.memory_space<vmem>>, vector<16x32xbf16>
    %c0_2 = arith.constant 0 : index
    %c0_3 = arith.constant 0 : index
    %4 = vector.load %arg5[%c0_2, %c0_3] : memref<32x128xbf16, #tpu.memory_space<vmem>>, vector<32x128xbf16>
    %cst = arith.constant dense<0.000000e+00> : vector<16x128xf32>
    %5 = tpu.matmul %3, %4, %cst {dimension_numbers = #tpu.dot_dimension_numbers<[1], [0], [0], [1], [0, 0, 1, 1], [], []>} : vector<16x32xbf16>, vector<32x128xbf16>, vector<16x128xf32> -> vector<16x128xf32>
    %c0_4 = arith.constant 0 : index
    %c0_5 = arith.constant 0 : index
    %6 = vector.load %arg6[%c0_4, %c0_5] : memref<1x128xf32, #tpu.memory_space<vmem>>, vector<1x128xf32>
    %7 = vector.broadcast %6 : vector<1x128xf32> to vector<16x128xf32>
    %8 = arith.addf %5, %7 : vector<16x128xf32>
    %9 = arith.truncf %8 : vector<16x128xf32> to vector<16x128xbf16>
    %c0_6 = arith.constant 0 : index
    %c0_7 = arith.constant 0 : index
    %10 = vector.load %arg7[%c0_6, %c0_7] : memref<16x128xbf16, #tpu.memory_space<vmem>>, vector<16x128xbf16>
    tpu.vector_store %arg7[%c0_6, %c0_7], %9 {strides = array<i32>} : memref<16x128xbf16, #tpu.memory_space<vmem>>, vector<16x128xbf16>,
    return
  }
  func.func @transform_0(%arg0: i32, %arg1: i32) -> (i32, i32) {
    %c0_i32 = arith.constant 0 : i32
    %c0_i32_0 = arith.constant 0 : i32
    return %arg0, %c0_i32 : i32, i32
  }
  func.func @transform_1(%arg0: i32, %arg1: i32) -> (i32, i32) {
    %c0_i32 = arith.constant 0 : i32
    %c0_i32_0 = arith.constant 0 : i32
    %c0_i32_1 = arith.constant 0 : i32
    return %c0_i32, %c0_i32_0 : i32, i32
  }
  func.func @transform_2(%arg0: i32, %arg1: i32) -> (i32, i32) {
    %c0_i32 = arith.constant 0 : i32
    %c0_i32_0 = arith.constant 0 : i32
    %c0_i32_1 = arith.constant 0 : i32
    return %c0_i32, %c0_i32_0 : i32, i32
  }
  func.func @transform_3(%arg0: i32, %arg1: i32) -> (i32, i32) {
    %c0_i32 = arith.constant 0 : i32
    %c0_i32_0 = arith.constant 0 : i32
    return %c0_i32, %arg1 : i32, i32
  }
  func.func @transform_4(%arg0: i32, %arg1: i32) -> (i32, i32) {
    %c0_i32 = arith.constant 0 : i32
    %c0_i32_0 = arith.constant 0 : i32
    return %c0_i32, %arg1 : i32, i32
  }
  func.func @transform_5(%arg0: i32, %arg1: i32) -> (i32, i32) {
    %c0_i32 = arith.constant 0 : i32
    return %arg0, %arg1 : i32, i32
  }
}

module attributes {stable_mosaic.version = 11 : i64} {
  func.func @_ln_linear_kernel(%arg0: i32, %arg1: i32, %arg2: memref<16x32xbf16, #tpu.memory_space<vmem>>, %arg3: memref<1x32xf32, #tpu.memory_space<vmem>>, %arg4: memref<1x32xf32, #tpu.memory_space<vmem>>, %arg5: memref<32x128xbf16, #tpu.memory_space<vmem>>, %arg6: memref<1x128xf32, #tpu.memory_space<vmem>>, %arg7: memref<16x128xbf16, #tpu.memory_space<vmem>>, %arg8: memref<16x32xbf16, #tpu.memory_space<vmem>>) attributes {dimension_semantics = [#tpu.dimension_semantics<parallel>, #tpu.dimension_semantics<arbitrary>], iteration_bounds = array<i64: 1, 1>, scalar_prefetch = 0 : i64, scratch_operands = 1 : i64, tpu.core_type = #tpu.core_type<tc>, window_params = [{transform_indices = @transform_0, window_bounds = array<i64: 16, 32>}, {pipeline_mode = #tpu.pipeline_mode<synchronous>, transform_indices = @transform_1, window_bounds = array<i64: 1, 32>}, {pipeline_mode = #tpu.pipeline_mode<synchronous>, transform_indices = @transform_2, window_bounds = array<i64: 1, 32>}, {transform_indices = @transform_3, window_bounds = array<i64: 32, 128>}, {transform_indices = @transform_4, window_bounds = array<i64: 1, 128>}, {transform_indices = @transform_5, window_bounds = array<i64: 16, 128>}]} {
    %c0_i32 = arith.constant 0 : i32
    %0 = arith.cmpi eq, %arg1, %c0_i32 : i32
    %1 = arith.extui %0 : i1 to i32
    %c0_i32_0 = arith.constant 0 : i32
    %2 = arith.cmpi ne, %1, %c0_i32_0 : i32
    scf.if %2 {
      %c0_10 = arith.constant 0 : index
      %c0_11 = arith.constant 0 : index
      %19 = vector.load %arg2[%c0_10, %c0_11] : memref<16x32xbf16, #tpu.memory_space<vmem>>, vector<16x32xbf16>
      %20 = arith.extf %19 : vector<16x32xbf16> to vector<16x32xf32>
      %cst_12 = arith.constant dense<0.000000e+00> : vector<16xf32>
      %21 = vector.multi_reduction <add>, %20, %cst_12 [1] : vector<16x32xf32> to vector<16xf32>
      %22 = vector.shape_cast %21 : vector<16xf32> to vector<16x1xf32>
      %cst_13 = arith.constant 3.200000e+01 : f32
      %23 = vector.broadcast %cst_13 : f32 to vector<16x1xf32>
      %24 = arith.divf %22, %23 : vector<16x1xf32>
      %25 = vector.broadcast %24 : vector<16x1xf32> to vector<16x32xf32>
      %26 = arith.subf %20, %25 : vector<16x32xf32>
      %27 = arith.mulf %26, %26 : vector<16x32xf32>
      %cst_14 = arith.constant dense<0.000000e+00> : vector<16xf32>
      %28 = vector.multi_reduction <add>, %27, %cst_14 [1] : vector<16x32xf32> to vector<16xf32>
      %29 = vector.shape_cast %28 : vector<16xf32> to vector<16x1xf32>
      %cst_15 = arith.constant 3.200000e+01 : f32
      %30 = vector.broadcast %cst_15 : f32 to vector<16x1xf32>
      %31 = arith.divf %29, %30 : vector<16x1xf32>
      %32 = vector.broadcast %24 : vector<16x1xf32> to vector<16x32xf32>
      %33 = arith.subf %20, %32 : vector<16x32xf32>
      %cst_16 = arith.constant 9.99999974E-6 : f32
      %34 = vector.broadcast %cst_16 : f32 to vector<16x1xf32>
      %35 = arith.addf %31, %34 : vector<16x1xf32>
      %36 = math.rsqrt %35 : vector<16x1xf32>
      %37 = vector.broadcast %36 : vector<16x1xf32> to vector<16x32xf32>
      %38 = arith.mulf %33, %37 : vector<16x32xf32>
      %c0_17 = arith.constant 0 : index
      %c0_18 = arith.constant 0 : index
      %39 = vector.load %arg3[%c0_17, %c0_18] : memref<1x32xf32, #tpu.memory_space<vmem>>, vector<1x32xf32>
      %40 = vector.broadcast %39 : vector<1x32xf32> to vector<16x32xf32>
      %41 = arith.mulf %38, %40 : vector<16x32xf32>
      %c0_19 = arith.constant 0 : index
      %c0_20 = arith.constant 0 : index
      %42 = vector.load %arg4[%c0_19, %c0_20] : memref<1x32xf32, #tpu.memory_space<vmem>>, vector<1x32xf32>
      %43 = vector.broadcast %42 : vector<1x32xf32> to vector<16x32xf32>
      %44 = arith.addf %41, %43 : vector<16x32xf32>
      %45 = arith.truncf %44 : vector<16x32xf32> to vector<16x32xbf16>
      %c0_21 = arith.constant 0 : index
      %c0_22 = arith.constant 0 : index
      %46 = vector.load %arg8[%c0_21, %c0_22] : memref<16x32xbf16, #tpu.memory_space<vmem>>, vector<16x32xbf16>
      tpu.vector_store %arg8[%c0_21, %c0_22], %45 {strides = array<i32>} : memref<16x32xbf16, #tpu.memory_space<vmem>>, vector<16x32xbf16>,
    } else {
    }
    %c0 = arith.constant 0 : index
    %c0_1 = arith.constant 0 : index
    %3 = vector.load %arg8[%c0, %c0_1] : memref<16x32xbf16, #tpu.memory_space<vmem>>, vector<16x32xbf16>
    %c0_2 = arith.constant 0 : index
    %c0_3 = arith.constant 0 : index
    %4 = vector.load %arg5[%c0_2, %c0_3] : memref<32x128xbf16, #tpu.memory_space<vmem>>, vector<32x128xbf16>
    %cst = arith.constant dense<0.000000e+00> : vector<16x128xf32>
    %5 = tpu.matmul %3, %4, %cst {dimension_numbers = #tpu.dot_dimension_numbers<[1], [0], [0], [1], [0, 0, 1, 1], [], []>} : vector<16x32xbf16>, vector<32x128xbf16>, vector<16x128xf32> -> vector<16x128xf32>
    %c0_4 = arith.constant 0 : index
    %c0_5 = arith.constant 0 : index
    %6 = vector.load %arg6[%c0_4, %c0_5] : memref<1x128xf32, #tpu.memory_space<vmem>>, vector<1x128xf32>
    %7 = vector.broadcast %6 : vector<1x128xf32> to vector<16x128xf32>
    %8 = arith.addf %5, %7 : vector<16x128xf32>
    %cst_6 = arith.constant 1.702000e+00 : f32
    %9 = vector.broadcast %cst_6 : f32 to vector<16x128xf32>
    %10 = arith.mulf %9, %8 : vector<16x128xf32>
    %11 = arith.negf %10 : vector<16x128xf32>
    %12 = math.exp %11 : vector<16x128xf32>
    %cst_7 = arith.constant 1.000000e+00 : f32
    %13 = vector.broadcast %cst_7 : f32 to vector<16x128xf32>
    %14 = arith.addf %13, %12 : vector<16x128xf32>
    %15 = arith.divf %13, %14 : vector<16x128xf32>
    %16 = arith.mulf %8, %15 : vector<16x128xf32>
    %17 = arith.truncf %16 : vector<16x128xf32> to vector<16x128xbf16>
    %c0_8 = arith.constant 0 : index
    %c0_9 = arith.constant 0 : index
    %18 = vector.load %arg7[%c0_8, %c0_9] : memref<16x128xbf16, #tpu.memory_space<vmem>>, vector<16x128xbf16>
    tpu.vector_store %arg7[%c0_8, %c0_9], %17 {strides = array<i32>} : memref<16x128xbf16, #tpu.memory_space<vmem>>, vector<16x128xbf16>,
    return
  }
  func.func @transform_0(%arg0: i32, %arg1: i32) -> (i32, i32) {
    %c0_i32 = arith.constant 0 : i32
    %c0_i32_0 = arith.constant 0 : i32
    return %arg0, %c0_i32 : i32, i32
  }
  func.func @transform_1(%arg0: i32, %arg1: i32) -> (i32, i32) {
    %c0_i32 = arith.constant 0 : i32
    %c0_i32_0 = arith.constant 0 : i32
    %c0_i32_1 = arith.constant 0 : i32
    return %c0_i32, %c0_i32_0 : i32, i32
  }
  func.func @transform_2(%arg0: i32, %arg1: i32) -> (i32, i32) {
    %c0_i32 = arith.constant 0 : i32
    %c0_i32_0 = arith.constant 0 : i32
    %c0_i32_1 = arith.constant 0 : i32
    return %c0_i32, %c0_i32_0 : i32, i32
  }
  func.func @transform_3(%arg0: i32, %arg1: i32) -> (i32, i32) {
    %c0_i32 = arith.constant 0 : i32
    %c0_i32_0 = arith.constant 0 : i32
    return %c0_i32, %arg1 : i32, i32
  }
  func.func @transform_4(%arg0: i32, %arg1: i32) -> (i32, i32) {
    %c0_i32 = arith.constant 0 : i32
    %c0_i32_0 = arith.constant 0 : i32
    return %c0_i32, %arg1 : i32, i32
  }
  func.func @transform_5(%arg0: i32, %arg1: i32) -> (i32, i32) {
    %c0_i32 = arith.constant 0 : i32
    return %arg0, %arg1 : i32, i32
  }
}

module attributes {stable_mosaic.version = 11 : i64} {
  func.func @_linear_tiled_kernel(%arg0: i32, %arg1: i32, %arg2: i32, %arg3: memref<16x128xbf16, #tpu.memory_space<vmem>>, %arg4: memref<128x128xbf16, #tpu.memory_space<vmem>>, %arg5: memref<1x128xf32, #tpu.memory_space<vmem>>, %arg6: memref<16x128xbf16, #tpu.memory_space<vmem>>, %arg7: memref<16x128xbf16, #tpu.memory_space<vmem>>, %arg8: memref<16x128xf32, #tpu.memory_space<vmem>>) attributes {dimension_semantics = [#tpu.dimension_semantics<parallel>, #tpu.dimension_semantics<parallel>, #tpu.dimension_semantics<arbitrary>], iteration_bounds = array<i64: 1, 1, 1>, scalar_prefetch = 0 : i64, scratch_operands = 1 : i64, tpu.core_type = #tpu.core_type<tc>, window_params = [{transform_indices = @transform_0, window_bounds = array<i64: 16, 128>}, {transform_indices = @transform_1, window_bounds = array<i64: 128, 128>}, {transform_indices = @transform_2, window_bounds = array<i64: 1, 128>}, {transform_indices = @transform_3, window_bounds = array<i64: 16, 128>}, {transform_indices = @transform_4, window_bounds = array<i64: 16, 128>}]} {
    %c0_i32 = arith.constant 0 : i32
    %0 = arith.cmpi eq, %arg2, %c0_i32 : i32
    %1 = arith.extui %0 : i1 to i32
    %c0_i32_0 = arith.constant 0 : i32
    %2 = arith.cmpi ne, %1, %c0_i32_0 : i32
    scf.if %2 {
      %cst_10 = arith.constant 0.000000e+00 : f32
      %12 = vector.broadcast %cst_10 : f32 to vector<16x128xf32>
      %c0_11 = arith.constant 0 : index
      %c0_12 = arith.constant 0 : index
      %13 = vector.load %arg8[%c0_11, %c0_12] : memref<16x128xf32, #tpu.memory_space<vmem>>, vector<16x128xf32>
      tpu.vector_store %arg8[%c0_11, %c0_12], %12 {strides = array<i32>} : memref<16x128xf32, #tpu.memory_space<vmem>>, vector<16x128xf32>,
    } else {
    }
    %c0 = arith.constant 0 : index
    %c0_1 = arith.constant 0 : index
    %3 = vector.load %arg8[%c0, %c0_1] : memref<16x128xf32, #tpu.memory_space<vmem>>, vector<16x128xf32>
    %c0_2 = arith.constant 0 : index
    %c0_3 = arith.constant 0 : index
    %4 = vector.load %arg3[%c0_2, %c0_3] : memref<16x128xbf16, #tpu.memory_space<vmem>>, vector<16x128xbf16>
    %c0_4 = arith.constant 0 : index
    %c0_5 = arith.constant 0 : index
    %5 = vector.load %arg4[%c0_4, %c0_5] : memref<128x128xbf16, #tpu.memory_space<vmem>>, vector<128x128xbf16>
    %cst = arith.constant dense<0.000000e+00> : vector<16x128xf32>
    %6 = tpu.matmul %4, %5, %cst {dimension_numbers = #tpu.dot_dimension_numbers<[1], [0], [0], [1], [0, 0, 1, 1], [], []>} : vector<16x128xbf16>, vector<128x128xbf16>, vector<16x128xf32> -> vector<16x128xf32>
    %7 = arith.addf %3, %6 : vector<16x128xf32>
    %c0_6 = arith.constant 0 : index
    %c0_7 = arith.constant 0 : index
    %8 = vector.load %arg8[%c0_6, %c0_7] : memref<16x128xf32, #tpu.memory_space<vmem>>, vector<16x128xf32>
    tpu.vector_store %arg8[%c0_6, %c0_7], %7 {strides = array<i32>} : memref<16x128xf32, #tpu.memory_space<vmem>>, vector<16x128xf32>,
    %c0_i32_8 = arith.constant 0 : i32
    %9 = arith.cmpi eq, %arg2, %c0_i32_8 : i32
    %10 = arith.extui %9 : i1 to i32
    %c0_i32_9 = arith.constant 0 : i32
    %11 = arith.cmpi ne, %10, %c0_i32_9 : i32
    scf.if %11 {
      %c0_10 = arith.constant 0 : index
      %c0_11 = arith.constant 0 : index
      %12 = vector.load %arg8[%c0_10, %c0_11] : memref<16x128xf32, #tpu.memory_space<vmem>>, vector<16x128xf32>
      %c0_12 = arith.constant 0 : index
      %c0_13 = arith.constant 0 : index
      %13 = vector.load %arg5[%c0_12, %c0_13] : memref<1x128xf32, #tpu.memory_space<vmem>>, vector<1x128xf32>
      %14 = vector.broadcast %13 : vector<1x128xf32> to vector<16x128xf32>
      %15 = arith.addf %12, %14 : vector<16x128xf32>
      %c0_14 = arith.constant 0 : index
      %c0_15 = arith.constant 0 : index
      %16 = vector.load %arg6[%c0_14, %c0_15] : memref<16x128xbf16, #tpu.memory_space<vmem>>, vector<16x128xbf16>
      %17 = arith.extf %16 : vector<16x128xbf16> to vector<16x128xf32>
      %18 = arith.addf %15, %17 : vector<16x128xf32>
      %19 = arith.truncf %18 : vector<16x128xf32> to vector<16x128xbf16>
      %c0_16 = arith.constant 0 : index
      %c0_17 = arith.constant 0 : index
      %20 = vector.load %arg7[%c0_16, %c0_17] : memref<16x128xbf16, #tpu.memory_space<vmem>>, vector<16x128xbf16>
      tpu.vector_store %arg7[%c0_16, %c0_17], %19 {strides = array<i32>} : memref<16x128xbf16, #tpu.memory_space<vmem>>, vector<16x128xbf16>,
    } else {
    }
    return
  }
  func.func @transform_0(%arg0: i32, %arg1: i32, %arg2: i32) -> (i32, i32) {
    %c0_i32 = arith.constant 0 : i32
    return %arg0, %arg2 : i32, i32
  }
  func.func @transform_1(%arg0: i32, %arg1: i32, %arg2: i32) -> (i32, i32) {
    %c0_i32 = arith.constant 0 : i32
    return %arg2, %arg1 : i32, i32
  }
  func.func @transform_2(%arg0: i32, %arg1: i32, %arg2: i32) -> (i32, i32) {
    %c0_i32 = arith.constant 0 : i32
    %c0_i32_0 = arith.constant 0 : i32
    return %c0_i32, %arg1 : i32, i32
  }
  func.func @transform_3(%arg0: i32, %arg1: i32, %arg2: i32) -> (i32, i32) {
    %c0_i32 = arith.constant 0 : i32
    return %arg0, %arg1 : i32, i32
  }
  func.func @transform_4(%arg0: i32, %arg1: i32, %arg2: i32) -> (i32, i32) {
    %c0_i32 = arith.constant 0 : i32
    return %arg0, %arg1 : i32, i32
  }
}

module attributes {stable_mosaic.version = 11 : i64} {
  func.func @_attention_kernel(%arg0: i32, %arg1: memref<2x5x96xbf16, #tpu.memory_space<vmem>>, %arg2: memref<2x5x32xbf16, #tpu.memory_space<vmem>>) attributes {dimension_semantics = [#tpu.dimension_semantics<parallel>], iteration_bounds = array<i64: 1>, scalar_prefetch = 0 : i64, scratch_operands = 0 : i64, tpu.core_type = #tpu.core_type<tc>, window_params = [{transform_indices = @transform_0, window_bounds = array<i64: 2, 5, 96>}, {transform_indices = @transform_1, window_bounds = array<i64: 2, 5, 32>}]} {
    %c0 = arith.constant 0 : index
    %c0_0 = arith.constant 0 : index
    %c0_1 = arith.constant 0 : index
    %0 = vector.load %arg1[%c0, %c0_0, %c0_1] : memref<2x5x96xbf16, #tpu.memory_space<vmem>>, vector<2x5x96xbf16>
    %1 = vector.extract_strided_slice %0 {offsets = [0, 0, 0], sizes = [2, 5, 8], strides = [1, 1, 1]} : vector<2x5x96xbf16> to vector<2x5x8xbf16>
    %2 = vector.extract_strided_slice %0 {offsets = [0, 0, 32], sizes = [2, 5, 8], strides = [1, 1, 1]} : vector<2x5x96xbf16> to vector<2x5x8xbf16>
    %3 = vector.extract_strided_slice %0 {offsets = [0, 0, 64], sizes = [2, 5, 8], strides = [1, 1, 1]} : vector<2x5x96xbf16> to vector<2x5x8xbf16>
    "tpu.trace_start"() <{level = 10 : i32, message = "bqd,bkd->bqk"}> : () -> ()
    %cst = arith.constant dense<0.000000e+00> : vector<2x5x5xf32>
    %4 = tpu.matmul %1, %2, %cst {dimension_numbers = #tpu.dot_dimension_numbers<[2], [2], [1], [1], [0, 0, 0, 1, 1, 1], [0], [0]>} : vector<2x5x8xbf16>, vector<2x5x8xbf16>, vector<2x5x5xf32> -> vector<2x5x5xf32>
    "tpu.trace_stop"() : () -> ()
    %cst_2 = arith.constant dense<0xFF800000> : vector<2x5xf32>
    %5 = vector.multi_reduction <maximumf>, %4, %cst_2 [2] : vector<2x5x5xf32> to vector<2x5xf32>
    %6 = vector.shape_cast %5 : vector<2x5xf32> to vector<2x5x1xf32>
    %7 = vector.broadcast %6 : vector<2x5x1xf32> to vector<2x5x5xf32>
    %8 = arith.subf %4, %7 : vector<2x5x5xf32>
    %9 = math.exp %8 : vector<2x5x5xf32>
    %cst_3 = arith.constant dense<0.000000e+00> : vector<2x5xf32>
    %10 = vector.multi_reduction <add>, %9, %cst_3 [2] : vector<2x5x5xf32> to vector<2x5xf32>
    %11 = vector.shape_cast %10 : vector<2x5xf32> to vector<2x5x1xf32>
    %12 = tpu.reciprocal %11 {approx = true} : vector<2x5x1xf32> -> vector<2x5x1xf32>
    %13 = vector.broadcast %12 : vector<2x5x1xf32> to vector<2x5x5xf32>
    %14 = arith.mulf %9, %13 : vector<2x5x5xf32>
    %15 = arith.truncf %14 : vector<2x5x5xf32> to vector<2x5x5xbf16>
    "tpu.trace_start"() <{level = 10 : i32, message = "bqk,bkd->bqd"}> : () -> ()
    %cst_4 = arith.constant dense<0.000000e+00> : vector<2x5x8xf32>
    %16 = tpu.matmul %15, %3, %cst_4 {dimension_numbers = #tpu.dot_dimension_numbers<[2], [1], [1], [2], [0, 0, 0, 1, 1, 2], [0], [0]>} : vector<2x5x5xbf16>, vector<2x5x8xbf16>, vector<2x5x8xf32> -> vector<2x5x8xf32>
    "tpu.trace_stop"() : () -> ()
    %17 = vector.extract_strided_slice %0 {offsets = [0, 0, 8], sizes = [2, 5, 8], strides = [1, 1, 1]} : vector<2x5x96xbf16> to vector<2x5x8xbf16>
    %18 = vector.extract_strided_slice %0 {offsets = [0, 0, 40], sizes = [2, 5, 8], strides = [1, 1, 1]} : vector<2x5x96xbf16> to vector<2x5x8xbf16>
    %19 = vector.extract_strided_slice %0 {offsets = [0, 0, 72], sizes = [2, 5, 8], strides = [1, 1, 1]} : vector<2x5x96xbf16> to vector<2x5x8xbf16>
    "tpu.trace_start"() <{level = 10 : i32, message = "bqd,bkd->bqk"}> : () -> ()
    %cst_5 = arith.constant dense<0.000000e+00> : vector<2x5x5xf32>
    %20 = tpu.matmul %17, %18, %cst_5 {dimension_numbers = #tpu.dot_dimension_numbers<[2], [2], [1], [1], [0, 0, 0, 1, 1, 1], [0], [0]>} : vector<2x5x8xbf16>, vector<2x5x8xbf16>, vector<2x5x5xf32> -> vector<2x5x5xf32>
    "tpu.trace_stop"() : () -> ()
    %cst_6 = arith.constant dense<0xFF800000> : vector<2x5xf32>
    %21 = vector.multi_reduction <maximumf>, %20, %cst_6 [2] : vector<2x5x5xf32> to vector<2x5xf32>
    %22 = vector.shape_cast %21 : vector<2x5xf32> to vector<2x5x1xf32>
    %23 = vector.broadcast %22 : vector<2x5x1xf32> to vector<2x5x5xf32>
    %24 = arith.subf %20, %23 : vector<2x5x5xf32>
    %25 = math.exp %24 : vector<2x5x5xf32>
    %cst_7 = arith.constant dense<0.000000e+00> : vector<2x5xf32>
    %26 = vector.multi_reduction <add>, %25, %cst_7 [2] : vector<2x5x5xf32> to vector<2x5xf32>
    %27 = vector.shape_cast %26 : vector<2x5xf32> to vector<2x5x1xf32>
    %28 = tpu.reciprocal %27 {approx = true} : vector<2x5x1xf32> -> vector<2x5x1xf32>
    %29 = vector.broadcast %28 : vector<2x5x1xf32> to vector<2x5x5xf32>
    %30 = arith.mulf %25, %29 : vector<2x5x5xf32>
    %31 = arith.truncf %30 : vector<2x5x5xf32> to vector<2x5x5xbf16>
    "tpu.trace_start"() <{level = 10 : i32, message = "bqk,bkd->bqd"}> : () -> ()
    %cst_8 = arith.constant dense<0.000000e+00> : vector<2x5x8xf32>
    %32 = tpu.matmul %31, %19, %cst_8 {dimension_numbers = #tpu.dot_dimension_numbers<[2], [1], [1], [2], [0, 0, 0, 1, 1, 2], [0], [0]>} : vector<2x5x5xbf16>, vector<2x5x8xbf16>, vector<2x5x8xf32> -> vector<2x5x8xf32>
    "tpu.trace_stop"() : () -> ()
    %33 = vector.extract_strided_slice %0 {offsets = [0, 0, 16], sizes = [2, 5, 8], strides = [1, 1, 1]} : vector<2x5x96xbf16> to vector<2x5x8xbf16>
    %34 = vector.extract_strided_slice %0 {offsets = [0, 0, 48], sizes = [2, 5, 8], strides = [1, 1, 1]} : vector<2x5x96xbf16> to vector<2x5x8xbf16>
    %35 = vector.extract_strided_slice %0 {offsets = [0, 0, 80], sizes = [2, 5, 8], strides = [1, 1, 1]} : vector<2x5x96xbf16> to vector<2x5x8xbf16>
    "tpu.trace_start"() <{level = 10 : i32, message = "bqd,bkd->bqk"}> : () -> ()
    %cst_9 = arith.constant dense<0.000000e+00> : vector<2x5x5xf32>
    %36 = tpu.matmul %33, %34, %cst_9 {dimension_numbers = #tpu.dot_dimension_numbers<[2], [2], [1], [1], [0, 0, 0, 1, 1, 1], [0], [0]>} : vector<2x5x8xbf16>, vector<2x5x8xbf16>, vector<2x5x5xf32> -> vector<2x5x5xf32>
    "tpu.trace_stop"() : () -> ()
    %cst_10 = arith.constant dense<0xFF800000> : vector<2x5xf32>
    %37 = vector.multi_reduction <maximumf>, %36, %cst_10 [2] : vector<2x5x5xf32> to vector<2x5xf32>
    %38 = vector.shape_cast %37 : vector<2x5xf32> to vector<2x5x1xf32>
    %39 = vector.broadcast %38 : vector<2x5x1xf32> to vector<2x5x5xf32>
    %40 = arith.subf %36, %39 : vector<2x5x5xf32>
    %41 = math.exp %40 : vector<2x5x5xf32>
    %cst_11 = arith.constant dense<0.000000e+00> : vector<2x5xf32>
    %42 = vector.multi_reduction <add>, %41, %cst_11 [2] : vector<2x5x5xf32> to vector<2x5xf32>
    %43 = vector.shape_cast %42 : vector<2x5xf32> to vector<2x5x1xf32>
    %44 = tpu.reciprocal %43 {approx = true} : vector<2x5x1xf32> -> vector<2x5x1xf32>
    %45 = vector.broadcast %44 : vector<2x5x1xf32> to vector<2x5x5xf32>
    %46 = arith.mulf %41, %45 : vector<2x5x5xf32>
    %47 = arith.truncf %46 : vector<2x5x5xf32> to vector<2x5x5xbf16>
    "tpu.trace_start"() <{level = 10 : i32, message = "bqk,bkd->bqd"}> : () -> ()
    %cst_12 = arith.constant dense<0.000000e+00> : vector<2x5x8xf32>
    %48 = tpu.matmul %47, %35, %cst_12 {dimension_numbers = #tpu.dot_dimension_numbers<[2], [1], [1], [2], [0, 0, 0, 1, 1, 2], [0], [0]>} : vector<2x5x5xbf16>, vector<2x5x8xbf16>, vector<2x5x8xf32> -> vector<2x5x8xf32>
    "tpu.trace_stop"() : () -> ()
    %49 = vector.extract_strided_slice %0 {offsets = [0, 0, 24], sizes = [2, 5, 8], strides = [1, 1, 1]} : vector<2x5x96xbf16> to vector<2x5x8xbf16>
    %50 = vector.extract_strided_slice %0 {offsets = [0, 0, 56], sizes = [2, 5, 8], strides = [1, 1, 1]} : vector<2x5x96xbf16> to vector<2x5x8xbf16>
    %51 = vector.extract_strided_slice %0 {offsets = [0, 0, 88], sizes = [2, 5, 8], strides = [1, 1, 1]} : vector<2x5x96xbf16> to vector<2x5x8xbf16>
    "tpu.trace_start"() <{level = 10 : i32, message = "bqd,bkd->bqk"}> : () -> ()
    %cst_13 = arith.constant dense<0.000000e+00> : vector<2x5x5xf32>
    %52 = tpu.matmul %49, %50, %cst_13 {dimension_numbers = #tpu.dot_dimension_numbers<[2], [2], [1], [1], [0, 0, 0, 1, 1, 1], [0], [0]>} : vector<2x5x8xbf16>, vector<2x5x8xbf16>, vector<2x5x5xf32> -> vector<2x5x5xf32>
    "tpu.trace_stop"() : () -> ()
    %cst_14 = arith.constant dense<0xFF800000> : vector<2x5xf32>
    %53 = vector.multi_reduction <maximumf>, %52, %cst_14 [2] : vector<2x5x5xf32> to vector<2x5xf32>
    %54 = vector.shape_cast %53 : vector<2x5xf32> to vector<2x5x1xf32>
    %55 = vector.broadcast %54 : vector<2x5x1xf32> to vector<2x5x5xf32>
    %56 = arith.subf %52, %55 : vector<2x5x5xf32>
    %57 = math.exp %56 : vector<2x5x5xf32>
    %cst_15 = arith.constant dense<0.000000e+00> : vector<2x5xf32>
    %58 = vector.multi_reduction <add>, %57, %cst_15 [2] : vector<2x5x5xf32> to vector<2x5xf32>
    %59 = vector.shape_cast %58 : vector<2x5xf32> to vector<2x5x1xf32>
    %60 = tpu.reciprocal %59 {approx = true} : vector<2x5x1xf32> -> vector<2x5x1xf32>
    %61 = vector.broadcast %60 : vector<2x5x1xf32> to vector<2x5x5xf32>
    %62 = arith.mulf %57, %61 : vector<2x5x5xf32>
    %63 = arith.truncf %62 : vector<2x5x5xf32> to vector<2x5x5xbf16>
    "tpu.trace_start"() <{level = 10 : i32, message = "bqk,bkd->bqd"}> : () -> ()
    %cst_16 = arith.constant dense<0.000000e+00> : vector<2x5x8xf32>
    %64 = tpu.matmul %63, %51, %cst_16 {dimension_numbers = #tpu.dot_dimension_numbers<[2], [1], [1], [2], [0, 0, 0, 1, 1, 2], [0], [0]>} : vector<2x5x5xbf16>, vector<2x5x8xbf16>, vector<2x5x8xf32> -> vector<2x5x8xf32>
    "tpu.trace_stop"() : () -> ()
    %65 = tpu.concatenate %16, %32, %48, %64 in 2 : vector<2x5x8xf32>, vector<2x5x8xf32>, vector<2x5x8xf32>, vector<2x5x8xf32> -> vector<2x5x32xf32>
    %66 = arith.truncf %65 : vector<2x5x32xf32> to vector<2x5x32xbf16>
    %c0_17 = arith.constant 0 : index
    %c0_18 = arith.constant 0 : index
    %c0_19 = arith.constant 0 : index
    %67 = vector.load %arg2[%c0_17, %c0_18, %c0_19] : memref<2x5x32xbf16, #tpu.memory_space<vmem>>, vector<2x5x32xbf16>
    tpu.vector_store %arg2[%c0_17, %c0_18, %c0_19], %66 {strides = array<i32>} : memref<2x5x32xbf16, #tpu.memory_space<vmem>>, vector<2x5x32xbf16>,
    return
  }
  func.func @transform_0(%arg0: i32) -> (i32, i32, i32) {
    %c0_i32 = arith.constant 0 : i32
    %c0_i32_0 = arith.constant 0 : i32
    %c0_i32_1 = arith.constant 0 : i32
    return %arg0, %c0_i32, %c0_i32_0 : i32, i32, i32
  }
  func.func @transform_1(%arg0: i32) -> (i32, i32, i32) {
    %c0_i32 = arith.constant 0 : i32
    %c0_i32_0 = arith.constant 0 : i32
    %c0_i32_1 = arith.constant 0 : i32
    return %arg0, %c0_i32, %c0_i32_0 : i32, i32, i32
  }
}

module attributes {stable_mosaic.version = 11 : i64} {
  func.func @_ln_linear_kernel(%arg0: i32, %arg1: i32, %arg2: memref<8x32xbf16, #tpu.memory_space<vmem>>, %arg3: memref<1x32xf32, #tpu.memory_space<vmem>>, %arg4: memref<1x32xf32, #tpu.memory_space<vmem>>, %arg5: memref<32x128xbf16, #tpu.memory_space<vmem>>, %arg6: memref<8x128xbf16, #tpu.memory_space<vmem>>, %arg7: memref<8x32xbf16, #tpu.memory_space<vmem>>) attributes {dimension_semantics = [#tpu.dimension_semantics<parallel>, #tpu.dimension_semantics<arbitrary>], iteration_bounds = array<i64: 1, 1>, scalar_prefetch = 0 : i64, scratch_operands = 1 : i64, tpu.core_type = #tpu.core_type<tc>, window_params = [{transform_indices = @transform_0, window_bounds = array<i64: 8, 32>}, {pipeline_mode = #tpu.pipeline_mode<synchronous>, transform_indices = @transform_1, window_bounds = array<i64: 1, 32>}, {pipeline_mode = #tpu.pipeline_mode<synchronous>, transform_indices = @transform_2, window_bounds = array<i64: 1, 32>}, {transform_indices = @transform_3, window_bounds = array<i64: 32, 128>}, {transform_indices = @transform_4, window_bounds = array<i64: 8, 128>}]} {
    %c0_i32 = arith.constant 0 : i32
    %0 = arith.cmpi eq, %arg1, %c0_i32 : i32
    %1 = arith.extui %0 : i1 to i32
    %c0_i32_0 = arith.constant 0 : i32
    %2 = arith.cmpi ne, %1, %c0_i32_0 : i32
    scf.if %2 {
      %c0_6 = arith.constant 0 : index
      %c0_7 = arith.constant 0 : index
      %8 = vector.load %arg2[%c0_6, %c0_7] : memref<8x32xbf16, #tpu.memory_space<vmem>>, vector<8x32xbf16>
      %9 = arith.extf %8 : vector<8x32xbf16> to vector<8x32xf32>
      %cst_8 = arith.constant dense<0.000000e+00> : vector<8xf32>
      %10 = vector.multi_reduction <add>, %9, %cst_8 [1] : vector<8x32xf32> to vector<8xf32>
      %11 = vector.shape_cast %10 : vector<8xf32> to vector<8x1xf32>
      %cst_9 = arith.constant 3.200000e+01 : f32
      %12 = vector.broadcast %cst_9 : f32 to vector<8x1xf32>
      %13 = arith.divf %11, %12 : vector<8x1xf32>
      %14 = vector.broadcast %13 : vector<8x1xf32> to vector<8x32xf32>
      %15 = arith.subf %9, %14 : vector<8x32xf32>
      %16 = arith.mulf %15, %15 : vector<8x32xf32>
      %cst_10 = arith.constant dense<0.000000e+00> : vector<8xf32>
      %17 = vector.multi_reduction <add>, %16, %cst_10 [1] : vector<8x32xf32> to vector<8xf32>
      %18 = vector.shape_cast %17 : vector<8xf32> to vector<8x1xf32>
      %cst_11 = arith.constant 3.200000e+01 : f32
      %19 = vector.broadcast %cst_11 : f32 to vector<8x1xf32>
      %20 = arith.divf %18, %19 : vector<8x1xf32>
      %21 = vector.broadcast %13 : vector<8x1xf32> to vector<8x32xf32>
      %22 = arith.subf %9, %21 : vector<8x32xf32>
      %cst_12 = arith.constant 9.99999974E-6 : f32
      %23 = vector.broadcast %cst_12 : f32 to vector<8x1xf32>
      %24 = arith.addf %20, %23 : vector<8x1xf32>
      %25 = math.rsqrt %24 : vector<8x1xf32>
      %26 = vector.broadcast %25 : vector<8x1xf32> to vector<8x32xf32>
      %27 = arith.mulf %22, %26 : vector<8x32xf32>
      %c0_13 = arith.constant 0 : index
      %c0_14 = arith.constant 0 : index
      %28 = vector.load %arg3[%c0_13, %c0_14] : memref<1x32xf32, #tpu.memory_space<vmem>>, vector<1x32xf32>
      %29 = vector.broadcast %28 : vector<1x32xf32> to vector<8x32xf32>
      %30 = arith.mulf %27, %29 : vector<8x32xf32>
      %c0_15 = arith.constant 0 : index
      %c0_16 = arith.constant 0 : index
      %31 = vector.load %arg4[%c0_15, %c0_16] : memref<1x32xf32, #tpu.memory_space<vmem>>, vector<1x32xf32>
      %32 = vector.broadcast %31 : vector<1x32xf32> to vector<8x32xf32>
      %33 = arith.addf %30, %32 : vector<8x32xf32>
      %34 = arith.truncf %33 : vector<8x32xf32> to vector<8x32xbf16>
      %c0_17 = arith.constant 0 : index
      %c0_18 = arith.constant 0 : index
      %35 = vector.load %arg7[%c0_17, %c0_18] : memref<8x32xbf16, #tpu.memory_space<vmem>>, vector<8x32xbf16>
      tpu.vector_store %arg7[%c0_17, %c0_18], %34 {strides = array<i32>} : memref<8x32xbf16, #tpu.memory_space<vmem>>, vector<8x32xbf16>,
    } else {
    }
    %c0 = arith.constant 0 : index
    %c0_1 = arith.constant 0 : index
    %3 = vector.load %arg7[%c0, %c0_1] : memref<8x32xbf16, #tpu.memory_space<vmem>>, vector<8x32xbf16>
    %c0_2 = arith.constant 0 : index
    %c0_3 = arith.constant 0 : index
    %4 = vector.load %arg5[%c0_2, %c0_3] : memref<32x128xbf16, #tpu.memory_space<vmem>>, vector<32x128xbf16>
    %cst = arith.constant dense<0.000000e+00> : vector<8x128xf32>
    %5 = tpu.matmul %3, %4, %cst {dimension_numbers = #tpu.dot_dimension_numbers<[1], [0], [0], [1], [0, 0, 1, 1], [], []>} : vector<8x32xbf16>, vector<32x128xbf16>, vector<8x128xf32> -> vector<8x128xf32>
    %6 = arith.truncf %5 : vector<8x128xf32> to vector<8x128xbf16>
    %c0_4 = arith.constant 0 : index
    %c0_5 = arith.constant 0 : index
    %7 = vector.load %arg6[%c0_4, %c0_5] : memref<8x128xbf16, #tpu.memory_space<vmem>>, vector<8x128xbf16>
    tpu.vector_store %arg6[%c0_4, %c0_5], %6 {strides = array<i32>} : memref<8x128xbf16, #tpu.memory_space<vmem>>, vector<8x128xbf16>,
    return
  }
  func.func @transform_0(%arg0: i32, %arg1: i32) -> (i32, i32) {
    %c0_i32 = arith.constant 0 : i32
    %c0_i32_0 = arith.constant 0 : i32
    return %arg0, %c0_i32 : i32, i32
  }
  func.func @transform_1(%arg0: i32, %arg1: i32) -> (i32, i32) {
    %c0_i32 = arith.constant 0 : i32
    %c0_i32_0 = arith.constant 0 : i32
    %c0_i32_1 = arith.constant 0 : i32
    return %c0_i32, %c0_i32_0 : i32, i32
  }
  func.func @transform_2(%arg0: i32, %arg1: i32) -> (i32, i32) {
    %c0_i32 = arith.constant 0 : i32
    %c0_i32_0 = arith.constant 0 : i32
    %c0_i32_1 = arith.constant 0 : i32
    return %c0_i32, %c0_i32_0 : i32, i32
  }
  func.func @transform_3(%arg0: i32, %arg1: i32) -> (i32, i32) {
    %c0_i32 = arith.constant 0 : i32
    %c0_i32_0 = arith.constant 0 : i32
    return %c0_i32, %arg1 : i32, i32
  }
  func.func @transform_4(%arg0: i32, %arg1: i32) -> (i32, i32) {
    %c0_i32 = arith.constant 0 : i32
    return %arg0, %arg1 : i32, i32
  }
}

module attributes {stable_mosaic.version = 11 : i64} {
  func.func @_norm_logits_kernel(%arg0: i32, %arg1: i32, %arg2: memref<8x16xbf16, #tpu.memory_space<vmem>>, %arg3: memref<16x128xbf16, #tpu.memory_space<vmem>>, %arg4: memref<8x128xf32, #tpu.memory_space<vmem>>) attributes {dimension_semantics = [#tpu.dimension_semantics<parallel>, #tpu.dimension_semantics<parallel>], iteration_bounds = array<i64: 1, 1>, scalar_prefetch = 0 : i64, scratch_operands = 0 : i64, tpu.core_type = #tpu.core_type<tc>, window_params = [{transform_indices = @transform_0, window_bounds = array<i64: 8, 16>}, {transform_indices = @transform_1, window_bounds = array<i64: 16, 128>}, {transform_indices = @transform_2, window_bounds = array<i64: 8, 128>}]} {
    %c0 = arith.constant 0 : index
    %c0_0 = arith.constant 0 : index
    %0 = vector.load %arg2[%c0, %c0_0] : memref<8x16xbf16, #tpu.memory_space<vmem>>, vector<8x16xbf16>
    %1 = arith.extf %0 : vector<8x16xbf16> to vector<8x16xf32>
    %2 = arith.mulf %1, %1 : vector<8x16xf32>
    %cst = arith.constant dense<0.000000e+00> : vector<8xf32>
    %3 = vector.multi_reduction <add>, %2, %cst [1] : vector<8x16xf32> to vector<8xf32>
    %4 = vector.shape_cast %3 : vector<8xf32> to vector<8x1xf32>
    %cst_1 = arith.constant 9.99999996E-13 : f32
    %5 = vector.broadcast %cst_1 : f32 to vector<8x1xf32>
    %6 = arith.addf %4, %5 : vector<8x1xf32>
    %7 = math.rsqrt %6 : vector<8x1xf32>
    %8 = vector.broadcast %7 : vector<8x1xf32> to vector<8x16xf32>
    %9 = arith.mulf %1, %8 : vector<8x16xf32>
    %10 = arith.truncf %9 : vector<8x16xf32> to vector<8x16xbf16>
    %c0_2 = arith.constant 0 : index
    %c0_3 = arith.constant 0 : index
    %11 = vector.load %arg3[%c0_2, %c0_3] : memref<16x128xbf16, #tpu.memory_space<vmem>>, vector<16x128xbf16>
    %cst_4 = arith.constant dense<0.000000e+00> : vector<8x128xf32>
    %12 = tpu.matmul %10, %11, %cst_4 {dimension_numbers = #tpu.dot_dimension_numbers<[1], [0], [0], [1], [0, 0, 1, 1], [], []>} : vector<8x16xbf16>, vector<16x128xbf16>, vector<8x128xf32> -> vector<8x128xf32>
    %cst_5 = arith.constant 1.000000e+02 : f32
    %13 = vector.broadcast %cst_5 : f32 to vector<8x128xf32>
    %14 = arith.mulf %13, %12 : vector<8x128xf32>
    %c0_6 = arith.constant 0 : index
    %c0_7 = arith.constant 0 : index
    %15 = vector.load %arg4[%c0_6, %c0_7] : memref<8x128xf32, #tpu.memory_space<vmem>>, vector<8x128xf32>
    tpu.vector_store %arg4[%c0_6, %c0_7], %14 {strides = array<i32>} : memref<8x128xf32, #tpu.memory_space<vmem>>, vector<8x128xf32>,
    return
  }
  func.func @transform_0(%arg0: i32, %arg1: i32) -> (i32, i32) {
    %c0_i32 = arith.constant 0 : i32
    %c0_i32_0 = arith.constant 0 : i32
    return %arg0, %c0_i32 : i32, i32
  }
  func.func @transform_1(%arg0: i32, %arg1: i32) -> (i32, i32) {
    %c0_i32 = arith.constant 0 : i32
    %c0_i32_0 = arith.constant 0 : i32
    return %c0_i32, %arg1 : i32, i32
  }
  func.func @transform_2(%arg0: i32, %arg1: i32) -> (i32, i32) {
    %c0_i32 = arith.constant 0 : i32
    return %arg0, %arg1 : i32, i32
  }
}

</mosaic_0001>

<llo_original>
// kernel: _lambda_.15
$region0: #{_lambda_.15}
  #allocation0 [shape = 'u32[]', space=smem, size = 0x4, offset = 0x4, fixed_abs, tag = 'smem constant byte address 0x4 - core index']
  #allocation1 [shape = 'u32[144,128]{1,0:T(1,128)}', space=vmem, size = 0x12000, scoped, tag = 'internal scratch']
  %s0 = inlined_call_operand.vmem [shape: bf16[2,5,32], index: 0, kind: input, shape index: {}]
  %s1 = inlined_call_operand.vmem [shape: f32[1,5,32], index: 1, kind: input, shape index: {}]
  %s2 = inlined_call_operand.vmem [shape: f32[1,1,32], index: 2, kind: input, shape index: {}]
  %s3 = inlined_call_operand.vmem [shape: f32[1,1,32], index: 3, kind: input, shape index: {}]
  %s4 = inlined_call_operand.vmem [shape: bf16[2,5,32], index: 4, kind: output, shape index: {}]
  %s5 = sld [smem:[#allocation0]]
  $region26: #{_lambda_.15} parent=0
    _
  %s7 = ssub.s32 1, %s5
  %s8 = scalar_select 0, %s7, %s5
  // Predicated region
  $region2: #{_lambda_.15} parent=0 // pred_check
    _
  $region3: #{_lambda_.15} parent=0 // pred_check_branch
    %10 = sbr.rel (0) target = $region5
  $region4: #{_lambda_.15} parent=0 // pred_region
    _
  $region5: #{_lambda_.15} parent=0 // pred_fallthru
    _
  // Predicated region
  $region6: #{_lambda_.15} parent=0 // pred_check
    _
  $region7: #{_lambda_.15} parent=0 // pred_check_branch
    %12 = sbr.rel (0) target = $region9
  $region8: #{_lambda_.15} parent=0 // pred_region
    _
  $region9: #{_lambda_.15} parent=0 // pred_fallthru
    _
  // Predicated region
  $region10: #{_lambda_.15} parent=0 // pred_check
    _
  $region11: #{_lambda_.15} parent=0 // pred_check_branch
    %14 = sbr.rel (0) target = $region13
  $region12: #{_lambda_.15} parent=0 // pred_region
    _
  $region13: #{_lambda_.15} parent=0 // pred_fallthru
    _
  // Predicated region
  $region14: #{_lambda_.15} parent=0 // pred_check
    _
  $region15: #{_lambda_.15} parent=0 // pred_check_branch
    %16 = sbr.rel (0) target = $region17
  $region16: #{_lambda_.15} parent=0 // pred_region
    _
  $region17: #{_lambda_.15} parent=0 // pred_fallthru
    _
  %v17 = vld [vmem:[%s0] sm:$0x7]
  %v18 = vld [vmem:[%s0 + $0x4] sm:$0x7]
  %v19 = vunpack.c.l.bf16 %v17
  %v20 = vunpack.c.l.bf16 %v18
  %v21 = vld [vmem:[%s1] sm:$0x1f]
  %v22 = vadd.f32 %v19, %v21
  %v23 = vadd.f32 %v20, %v21
  %vm24 = vcmask 258048
  %v25 = vsel %vm24, %v22, 0.0
  %26 = vadd.xlane.f32.xlu0 %v25
  %v27 = vpop.xlane.xlu0 %26
  %v28 = vsel %vm24, %v23, 0.0
  %29 = vadd.xlane.f32.xlu0 %v28
  %v30 = vpop.xlane.xlu0 %29
  %v31 = vrcp.pop 32.0
  %v32 = vmul.f32 %v27, %v31
  %v33 = vmul.f32 %v30, %v31
  %v34 = vsub.f32 %v22, %v32
  %v35 = vsub.f32 %v23, %v33
  %v36 = vmul.f32 %v34, %v34
  %v37 = vmul.f32 %v35, %v35
  %v38 = vsel %vm24, %v36, 0.0
  %39 = vadd.xlane.f32.xlu0 %v38
  %v40 = vpop.xlane.xlu0 %39
  %v41 = vsel %vm24, %v37, 0.0
  %42 = vadd.xlane.f32.xlu0 %v41
  %v43 = vpop.xlane.xlu0 %42
  %v44 = vmul.f32 %v40, %v31
  %v45 = vmul.f32 %v43, %v31
  %v46 = vadd.f32 %v44, 1e-05
  %v47 = vadd.f32 %v45, 1e-05
  %v48 = vrsqrt.pop %v46
  %v49 = vrsqrt.pop %v47
  %v50 = vmul.f32 %v34, %v48
  %v51 = vmul.f32 %v35, %v49
  %v52 = vld [vmem:[%s2] sm:$0x1]
  %v54 = vlaneseq
  %v55 = vshrl.u32 %v54, 7
  %v56 = vsub.s32 0, %v55
  %v57 = vrot.slane %v52, %v56
  %v59 = vmul.f32 %v50, %v57
  %v60 = vmul.f32 %v51, %v57
  %v61 = vld [vmem:[%s3] sm:$0x1]
  %v63 = vlaneseq
  %v64 = vshrl.u32 %v63, 7
  %v65 = vsub.s32 0, %v64
  %v66 = vrot.slane %v61, %v65
  %v68 = vadd.f32 %v59, %v66
  %v69 = vadd.f32 %v60, %v66
  %v70 = vpack.c.bf16 %v68, %v68
  %v71 = vpack.c.bf16 %v69, %v69
  %vm72 = vcmask 256000
  %vm73 = vsmask.f32 2304
  %vm74 = vmand %vm72, %vm73
  %v75 = vld [vmem:[%s4] sm:$0x7]
  %v76 = vsel %vm74, %v70, %v75
  %77 = vst [vmem:[%s4] sm:$0x7] %v76
  %v78 = vld [vmem:[%s4 + $0x4] sm:$0x7]
  %v79 = vsel %vm74, %v71, %v78
  %80 = vst [vmem:[%s4 + $0x4] sm:$0x7] %v79
  // Predicated region
  $region18: #{_lambda_.15} parent=0 // pred_check
    _
  $region19: #{_lambda_.15} parent=0 // pred_check_branch
    %82 = sbr.rel (0) target = $region21
  $region20: #{_lambda_.15} parent=0 // pred_region
    _
  $region21: #{_lambda_.15} parent=0 // pred_fallthru
    _
  // Predicated region
  $region22: #{_lambda_.15} parent=0 // pred_check
    _
  $region23: #{_lambda_.15} parent=0 // pred_check_branch
    %84 = sbr.rel (0) target = $region25
  $region24: #{_lambda_.15} parent=0 // pred_region
    _
  $region25: #{_lambda_.15} parent=0 // pred_fallthru
    _

// kernel: _lambda_.16
$region0: #{_lambda_.16}
  #allocation0 [shape = 'u32[]', space=smem, size = 0x4, offset = 0x4, fixed_abs, tag = 'smem constant byte address 0x4 - core index']
  #allocation1 [shape = 'u32[144,128]{1,0:T(1,128)}', space=vmem, size = 0x12000, scoped, tag = 'internal scratch']
  #allocation2 [shape = 'bf16[16,32]{1,0:T(16,128)(2,1)}', space=vmem, size = 0x1000, scoped, tag = 'scratch operand']
  %s0 = inlined_call_operand.vmem [shape: bf16[16,32], index: 0, kind: input, shape index: {}]
  %s1 = inlined_call_operand.vmem [shape: f32[1,32], index: 1, kind: input, shape index: {}]
  %s2 = inlined_call_operand.vmem [shape: f32[1,32], index: 2, kind: input, shape index: {}]
  %s3 = inlined_call_operand.vmem [shape: bf16[32,128], index: 3, kind: input, shape index: {}]
  %s4 = inlined_call_operand.vmem [shape: f32[1,128], index: 4, kind: input, shape index: {}]
  %s5 = inlined_call_operand.vmem [shape: bf16[16,128], index: 5, kind: output, shape index: {}]
  %s6 = sld [smem:[#allocation0]]
  $region34: #{_lambda_.16} parent=0
    _
  %s8 = ssub.s32 1, %s6
  %s9 = scalar_select 0, %s8, %s6
  // Predicated region
  $region2: #{_lambda_.16} parent=0 // pred_check
    _
  $region3: #{_lambda_.16} parent=0 // pred_check_branch
    %11 = sbr.rel (0) target = $region5
  $region4: #{_lambda_.16} parent=0 // pred_region
    _
  $region5: #{_lambda_.16} parent=0 // pred_fallthru
    _
  // Predicated region
  $region6: #{_lambda_.16} parent=0 // pred_check
    _
  $region7: #{_lambda_.16} parent=0 // pred_check_branch
    %13 = sbr.rel (0) target = $region9
  $region8: #{_lambda_.16} parent=0 // pred_region
    _
  $region9: #{_lambda_.16} parent=0 // pred_fallthru
    _
  // Predicated region
  $region10: #{_lambda_.16} parent=0 // pred_check
    _
  $region11: #{_lambda_.16} parent=0 // pred_check_branch
    %15 = sbr.rel (0) target = $region13
  $region12: #{_lambda_.16} parent=0 // pred_region
    _
  $region13: #{_lambda_.16} parent=0 // pred_fallthru
    _
  // Predicated region
  $region14: #{_lambda_.16} parent=0 // pred_check
    _
  $region15: #{_lambda_.16} parent=0 // pred_check_branch
    %17 = sbr.rel (0) target = $region17
  $region16: #{_lambda_.16} parent=0 // pred_region
    _
  $region17: #{_lambda_.16} parent=0 // pred_fallthru
    _
  // Predicated region
  $region18: #{_lambda_.16} parent=0 // pred_check
    _
  $region19: #{_lambda_.16} parent=0 // pred_check_branch
    %19 = sbr.rel (0) target = $region21
  $region20: #{_lambda_.16} parent=0 // pred_region
    _
  $region21: #{_lambda_.16} parent=0 // pred_fallthru
    _
  %p21 = scmp.eq.s32.totalorder 0, 0
  // Predicated region
  $region22: #{_lambda_.16} parent=0 // pred_check
    %p22 = pneg %p21
  $region23: #{_lambda_.16} parent=0 // pred_check_branch
    %24 = sbr.rel (%p22) target = $region25
  $region24: #{_lambda_.16} parent=0 // pred_region
    %v25 = vld [vmem:[%s0] sm:$0xf]
    %v26 = vld [vmem:[%s0 + $0x4] sm:$0xf]
    %v27 = vunpack.c.l.bf16 %v25
    %v28 = vunpack.c.l.bf16 %v26
    %vm29 = vcmask 261120
    %v30 = vsel %vm29, %v27, 0.0
    %31 = vadd.xlane.f32.xlu0 %v30
    %v32 = vpop.xlane.xlu0 %31
    %v33 = vsel %vm29, %v28, 0.0
    %34 = vadd.xlane.f32.xlu0 %v33
    %v35 = vpop.xlane.xlu0 %34
    %v36 = vrcp.pop 32.0
    %v37 = vmul.f32 %v32, %v36
    %v38 = vmul.f32 %v35, %v36
    %v39 = vsub.f32 %v27, %v37
    %v40 = vsub.f32 %v28, %v38
    %v41 = vmul.f32 %v39, %v39
    %v42 = vmul.f32 %v40, %v40
    %v43 = vsel %vm29, %v41, 0.0
    %44 = vadd.xlane.f32.xlu0 %v43
    %v45 = vpop.xlane.xlu0 %44
    %v46 = vsel %vm29, %v42, 0.0
    %47 = vadd.xlane.f32.xlu0 %v46
    %v48 = vpop.xlane.xlu0 %47
    %v49 = vmul.f32 %v45, %v36
    %v50 = vmul.f32 %v48, %v36
    %v51 = vadd.f32 %v49, 1e-05
    %v52 = vadd.f32 %v50, 1e-05
    %v53 = vrsqrt.pop %v51
    %v54 = vrsqrt.pop %v52
    %v55 = vmul.f32 %v39, %v53
    %v56 = vmul.f32 %v40, %v54
    %v57 = vld [vmem:[%s1] sm:$0x1]
    %v59 = vlaneseq
    %v60 = vshrl.u32 %v59, 7
    %v61 = vsub.s32 0, %v60
    %v62 = vrot.slane %v57, %v61
    %v64 = vmul.f32 %v55, %v62
    %v65 = vmul.f32 %v56, %v62
    %v66 = vld [vmem:[%s2] sm:$0x1]
    %v68 = vlaneseq
    %v69 = vshrl.u32 %v68, 7
    %v70 = vsub.s32 0, %v69
    %v71 = vrot.slane %v66, %v70
    %v73 = vadd.f32 %v64, %v71
    %v74 = vadd.f32 %v65, %v71
    %v75 = vpack.c.bf16 %v74, %v73
    %76 = vst.msk [vmem:[#allocation2] sm:$0xff] %vm29, %v75
  $region25: #{_lambda_.16} parent=0 // pred_fallthru
    _
  %v77 = vld [vmem:[#allocation2] sm:$0xff]
  %v78 = vld [vmem:[%s3] sm:$0xf]
  %v79 = vld [vmem:[%s3 + $0x4] sm:$0xf]
  %v80 = vld [vmem:[%s3 + $0x8] sm:$0xf]
  %v81 = vld [vmem:[%s3 + $0xc] sm:$0xf]
  %v82 = vld [vmem:[%s4] sm:$0x1]
  %v84 = vlaneseq
  %v85 = vshrl.u32 %v84, 7
  %v86 = vsub.s32 0, %v85
  %v87 = vrot.slane %v82, %v86
  %v93 = vunpack.c.l.b16 %v78
  %v94 = vunpack.c.l.b16 %v79
  %v95 = vunpack.c.l.b16 %v80
  %v96 = vunpack.c.l.b16 %v81
  %v97 = vpack.c.b16 %v94, %v93
  %v98 = vpack.c.b16 %v96, %v95
  %vm101 = vcmask 261120
  %v103 = vsel %vm101, %v77, 0
  %105 = vmatprep.subr.bf16.mxu0 0
  %106 = vmatpush1.bf16.msra.mxu0 %v97
  %107 = vmatprep.subr.bf16.mxu0 0
  %108 = vmatpush1.bf16.msra.mxu0 %v98
  %109 = vmatprep.subr.bf16.mxu0 0
  %110 = vmatpush1.bf16.msra.mxu0 0
  %111 = vmatprep.subr.bf16.mxu0 0
  %112 = vmatpush1.bf16.msra.mxu0 0
  %113 = vmatprep.subr.bf16.mxu0 0
  %114 = vmatpush1.bf16.msra.mxu0 0
  %115 = vmatprep.subr.bf16.mxu0 0
  %116 = vmatpush1.bf16.msra.mxu0 0
  %117 = vmatprep.subr.bf16.mxu0 0
  %118 = vmatpush1.bf16.msra.mxu0 0
  %119 = vmatprep.subr.bf16.mxu0 0
  %120 = vmatpush1.bf16.msra.mxu0 0
  %121 = vmatprep.subr.bf16.mxu0 0
  %122 = vmatpush1.bf16.msra.mxu0 0
  %123 = vmatprep.subr.bf16.mxu0 0
  %124 = vmatpush1.bf16.msra.mxu0 0
  %125 = vmatprep.subr.bf16.mxu0 0
  %126 = vmatpush1.bf16.msra.mxu0 0
  %127 = vmatprep.subr.bf16.mxu0 0
  %128 = vmatpush1.bf16.msra.mxu0 0
  %129 = vmatprep.subr.bf16.mxu0 0
  %130 = vmatpush1.bf16.msra.mxu0 0
  %131 = vmatprep.subr.bf16.mxu0 0
  %132 = vmatpush1.bf16.msra.mxu0 0
  %133 = vmatprep.subr.bf16.mxu0 0
  %134 = vmatpush1.bf16.msra.mxu0 0
  %135 = vmatprep.subr.bf16.mxu0 0
  %136 = vmatpush1.bf16.msra.mxu0 0
  %137 = vmatprep.mubr.bf16.mxu0 0
  %138 = vmatmul.mubr.bf16.gmra.mrb[0].mxu0 %v103
  %v139 = vpop.f32.mrb[0].mxu0
  %v140 = vadd.f32 %v87, %v139
  %v141 = vpop.f32.mrb[0].mxu0
  %v142 = vpop.f32.mrb[0].mxu0
  %v143 = vadd.f32 %v87, %v142
  %v144 = vpop.f32.mrb[0].mxu0
  %145 = vdwg.mxu0
  %v146 = vpack.c.bf16 %v143, %v140
  %v148 = vunpack.c.l.b16 %v146
  %v149 = vunpack.c.h.b16 %v146
  %v150 = vpack.c.b16 %v148, %v148
  %v151 = vpack.c.b16 %v149, %v149
  %154 = vst [vmem:[%s5] sm:$0xf] %v150
  %155 = vst [vmem:[%s5 + $0x4] sm:$0xf] %v151
  // Predicated region
  $region26: #{_lambda_.16} parent=0 // pred_check
    _
  $region27: #{_lambda_.16} parent=0 // pred_check_branch
    %157 = sbr.rel (0) target = $region29
  $region28: #{_lambda_.16} parent=0 // pred_region
    _
  $region29: #{_lambda_.16} parent=0 // pred_fallthru
    _
  // Predicated region
  $region30: #{_lambda_.16} parent=0 // pred_check
    _
  $region31: #{_lambda_.16} parent=0 // pred_check_branch
    %159 = sbr.rel (0) target = $region33
  $region32: #{_lambda_.16} parent=0 // pred_region
    _
  $region33: #{_lambda_.16} parent=0 // pred_fallthru
    _

// kernel: _lambda_.14
$region0: #{_lambda_.14}
  #allocation0 [shape = 'u32[]', space=smem, size = 0x4, offset = 0x4, fixed_abs, tag = 'smem constant byte address 0x4 - core index']
  #allocation1 [shape = 'u32[144,128]{1,0:T(1,128)}', space=vmem, size = 0x12000, scoped, tag = 'internal scratch']
  #allocation2 [shape = 'f32[8,128]{1,0:T(8,128)}', space=vmem, size = 0x1000, scoped, tag = 'scratch operand']
  %s0 = inlined_call_operand.vmem [shape: bf16[8,3072], index: 0, kind: input, shape index: {}]
  %s1 = inlined_call_operand.vmem [shape: bf16[3072,128], index: 1, kind: input, shape index: {}]
  %s2 = inlined_call_operand.vmem [shape: bf16[8,128], index: 2, kind: output, shape index: {}]
  %s3 = sld [smem:[#allocation0]]
  $region49: #{_lambda_.14} parent=0
    _
  %s5 = ssub.s32 1, %s3
  %s6 = scalar_select 0, %s5, %s3
  loop: start=0, step=1, limit=5
  $region2: #{_lambda_.14} parent=0 // loop_pre_header
    _
  $region3: #{_lambda_.14} parent=0 // loop_header
    %s8 = sphi 0, %s12
    %p9 = scmp.ge.s32.totalorder %s8, 5
    %s15 = sphi 0, %s34
    %s16 = sphi 0, %s30
    %s17 = sphi 0, %s26
    %s18 = sphi 0, %s15
    %s19 = sphi 0, %s16
    %s20 = sphi 0, %s17
    %s21 = sphi 0, %s18
    %s22 = sphi 0, %s19
    %s23 = sphi 0, %s20
    %s39 = sphi 0, %s41
    %s42 = sphi 0, %s39
    %s43 = sphi 0, %s42
    %s59 = sphi 0, %s43
    %s67 = sphi 0, %s69
    %s70 = sphi 0, %s67
    %s71 = sphi 0, %s70
    %s87 = sphi 0, %s71
    %s95 = sphi 0, %s97
    %s98 = sphi 0, %s95
    %s99 = sphi 0, %s98
    %s115 = sphi 0, %s99
  $region4: #{_lambda_.14} parent=0 // loop_header_branch
    %11 = sbr.rel (%p9) target = $region8
  $region5: #{_lambda_.14} parent=0 // loop_body
    %s13 = ssub.s32 %s8, 1
    %s14 = ssub.s32 %s8, 2
    %s24 = sadd.s32 1, %s17
    %p25 = scmp.ge.s32.totalorder %s24, 3
    %s26 = scalar_select %p25, 0, %s24
    %s27 = sadd.s32 1, %s16
    %s28 = scalar_select %p25, %s27, %s16
    %p29 = scmp.ge.s32.totalorder %s28, 1
    %s30 = scalar_select %p29, 0, %s28
    %s31 = sadd.s32 1, %s15
    %s32 = scalar_select %p29, %s31, %s15
    %p33 = scmp.ge.s32.totalorder %s32, 1
    %s34 = scalar_select %p33, 0, %s32
    %s35 = ssub.s32 %s15, %s34
    %s36 = ssub.s32 %s17, %s26
    %s37 = sor.u32 %s35, %s36
    %p38 = scmp.eq.s32.totalorder %s37, 0
    %s40 = sadd.s32 %s39, 1
    %s41 = scalar_select %p38, %s39, %s40
    %p44 = pneg %p38
    %p45 = scmp.eq.s32.totalorder %s8, 2
    %p46 = por %p44, %p45
    %p47 = scmp.ne.s32.totalorder %s39, %s42
    %p48 = scmp.eq.s32.totalorder %s8, 0
    %p49 = por %p47, %p48
    %p50 = scmp.ne.s32.totalorder %s39, %s42
    %p51 = scmp.eq.s32.totalorder %s13, 2
    %p52 = por %p50, %p51
    %p53 = scmp.ne.s32.totalorder %s42, %s43
    %p54 = scmp.eq.s32.totalorder %s13, 0
    %p55 = por %p53, %p54
    %p56 = scmp.ne.s32.totalorder %s42, %s43
    %p57 = scmp.eq.s32.totalorder %s14, 2
    %p58 = por %p56, %p57
    %p60 = scmp.ne.s32.totalorder %s43, %s59
    %p61 = scmp.eq.s32.totalorder %s14, 0
    %p62 = por %p60, %p61
    %s63 = ssub.s32 %s17, %s26
    %s64 = ssub.s32 %s16, %s30
    %s65 = sor.u32 %s63, %s64
    %p66 = scmp.eq.s32.totalorder %s65, 0
    %s68 = sadd.s32 %s67, 1
    %s69 = scalar_select %p66, %s67, %s68
    %p72 = pneg %p66
    %p73 = scmp.eq.s32.totalorder %s8, 2
    %p74 = por %p72, %p73
    %p75 = scmp.ne.s32.totalorder %s67, %s70
    %p76 = scmp.eq.s32.totalorder %s8, 0
    %p77 = por %p75, %p76
    %p78 = scmp.ne.s32.totalorder %s67, %s70
    %p79 = scmp.eq.s32.totalorder %s13, 2
    %p80 = por %p78, %p79
    %p81 = scmp.ne.s32.totalorder %s70, %s71
    %p82 = scmp.eq.s32.totalorder %s13, 0
    %p83 = por %p81, %p82
    %p84 = scmp.ne.s32.totalorder %s70, %s71
    %p85 = scmp.eq.s32.totalorder %s14, 2
    %p86 = por %p84, %p85
    %p88 = scmp.ne.s32.totalorder %s71, %s87
    %p89 = scmp.eq.s32.totalorder %s14, 0
    %p90 = por %p88, %p89
    %s91 = ssub.s32 %s15, %s34
    %s92 = ssub.s32 %s16, %s30
    %s93 = sor.u32 %s91, %s92
    %p94 = scmp.eq.s32.totalorder %s93, 0
    %s96 = sadd.s32 %s95, 1
    %s97 = scalar_select %p94, %s95, %s96
    %p100 = pneg %p94
    %p101 = scmp.eq.s32.totalorder %s8, 2
    %p102 = por %p100, %p101
    %p103 = scmp.ne.s32.totalorder %s95, %s98
    %p104 = scmp.eq.s32.totalorder %s8, 0
    %p105 = por %p103, %p104
    %p106 = scmp.ne.s32.totalorder %s95, %s98
    %p107 = scmp.eq.s32.totalorder %s13, 2
    %p108 = por %p106, %p107
    %p109 = scmp.ne.s32.totalorder %s98, %s99
    %p110 = scmp.eq.s32.totalorder %s13, 0
    %p111 = por %p109, %p110
    %p112 = scmp.ne.s32.totalorder %s98, %s99
    %p113 = scmp.eq.s32.totalorder %s14, 2
    %p114 = por %p112, %p113
    %p116 = scmp.ne.s32.totalorder %s99, %s115
    %p117 = scmp.eq.s32.totalorder %s14, 0
    %p118 = por %p116, %p117
    %p119 = scmp.le.s32.totalorder 1, %s8
    %p120 = scmp.lt.s32.totalorder %s8, 4
    %p121 = pnand %p119, %p120
    %p122 = pneg %p121
    // Predicated region
    $region9: #{_lambda_.14} parent=5 // pred_check
      _
    $region10: #{_lambda_.14} parent=5 // pred_check_branch
      %124 = sbr.rel (%p121) target = $region12
    $region11: #{_lambda_.14} parent=5 // pred_region
      %s125 = ssub.s32 %s8, 1
    $region12: #{_lambda_.14} parent=5 // pred_fallthru
      _
    %p126 = scmp.lt.s32.totalorder %s8, 3
    // Predicated region
    $region13: #{_lambda_.14} parent=5 // pred_check
      %p127 = pneg %p126
    $region14: #{_lambda_.14} parent=5 // pred_check_branch
      %129 = sbr.rel (%p127) target = $region16
    $region15: #{_lambda_.14} parent=5 // pred_region
      // Predicated region
      $region17: #{_lambda_.14} parent=15 // pred_check
        %p130 = pneg %p49
      $region18: #{_lambda_.14} parent=15 // pred_check_branch
        %132 = sbr.rel (%p130) target = $region20
      $region19: #{_lambda_.14} parent=15 // pred_region
        %s133 = smul.u32 8, %s17
        %p134 = scmp.lt.s32.totalorder %s15, 0
        %s135 = scalar_select %p134, %s15, 0
        %p136 = scmp.lt.s32.totalorder %s133, 23
        %s137 = scalar_select %p136, %s133, 23
        %s138 = smul.addr %s135, 24
        %s139 = sadd.s32 %s137, %s138
        %s140 = smul.addr %s139, 4
        %s141 = scalar_lea.vmem %s0, %s140
        %s142 = smul.u32 8, %s17
      $region20: #{_lambda_.14} parent=15 // pred_fallthru
        _
      // Predicated region
      $region21: #{_lambda_.14} parent=15 // pred_check
        %p143 = pneg %p77
      $region22: #{_lambda_.14} parent=15 // pred_check_branch
        %145 = sbr.rel (%p143) target = $region24
      $region23: #{_lambda_.14} parent=15 // pred_region
        %s146 = smul.u32 128, %s17
        %p147 = scmp.lt.s32.totalorder %s146, 383
        %s148 = scalar_select %p147, %s146, 383
        %p149 = scmp.lt.s32.totalorder %s16, 0
        %s150 = scalar_select %p149, %s16, 0
        %s151 = sadd.s32 %s150, %s148
        %s152 = smul.addr %s151, 4
        %s153 = scalar_lea.vmem %s1, %s152
        %s154 = smul.u32 128, %s17
      $region24: #{_lambda_.14} parent=15 // pred_fallthru
        _
    $region16: #{_lambda_.14} parent=5 // pred_fallthru
      _
    %p155 = scmp.le.s32.totalorder 1, %s8
    %p156 = scmp.lt.s32.totalorder %s8, 4
    %p157 = pnand %p155, %p156
    %p158 = pneg %p157
    // Predicated region
    $region25: #{_lambda_.14} parent=5 // pred_check
      _
    $region26: #{_lambda_.14} parent=5 // pred_check_branch
      %160 = sbr.rel (%p157) target = $region28
    $region27: #{_lambda_.14} parent=5 // pred_region
      %s161 = ssub.s32 %s8, 1
      %s162 = smul.u32 8, %s20
      %p163 = scmp.lt.s32.totalorder %s18, 0
      %s164 = scalar_select %p163, %s18, 0
      %p165 = scmp.lt.s32.totalorder %s162, 23
      %s166 = scalar_select %p165, %s162, 23
      %s167 = smul.addr %s164, 24
      %s168 = sadd.s32 %s166, %s167
      %s169 = smul.addr %s168, 4
      %s170 = scalar_lea.vmem %s0, %s169
      %p171 = pneg %p55
      %p172 = pneg %p52
      %s173 = smul.u32 128, %s20
      %p174 = scmp.lt.s32.totalorder %s173, 383
      %s175 = scalar_select %p174, %s173, 383
      %p176 = scmp.lt.s32.totalorder %s19, 0
      %s177 = scalar_select %p176, %s19, 0
      %s178 = sadd.s32 %s177, %s175
      %s179 = smul.addr %s178, 4
      %s180 = scalar_lea.vmem %s1, %s179
      %p181 = pneg %p83
      %p182 = pneg %p80
      %p183 = pneg %p111
      %p184 = pneg %p108
      %p185 = scmp.lt.s32.totalorder %s18, 0
      %s186 = scalar_select %p185, %s18, 0
      %p187 = scmp.lt.s32.totalorder %s19, 0
      %s188 = scalar_select %p187, %s19, 0
      %s189 = sadd.s32 %s188, %s186
      %s190 = smul.addr %s189, 4
      %s191 = scalar_lea.vmem %s2, %s190
      %s192 = smul.u32 8, %s20
      %p193 = scmp.lt.s32.totalorder %s18, 0
      %s194 = scalar_select %p193, %s18, 0
      %p195 = scmp.lt.s32.totalorder %s192, 23
      %s196 = scalar_select %p195, %s192, 23
      %s197 = smul.addr %s194, 24
      %s198 = sadd.s32 %s196, %s197
      %s199 = smul.addr %s198, 4
      %s200 = scalar_lea.vmem %s0, %s199
      %s201 = smul.u32 8, %s20
      %s202 = smul.u32 128, %s20
      %p203 = scmp.lt.s32.totalorder %s202, 383
      %s204 = scalar_select %p203, %s202, 383
      %p205 = scmp.lt.s32.totalorder %s19, 0
      %s206 = scalar_select %p205, %s19, 0
      %s207 = sadd.s32 %s206, %s204
      %s208 = smul.addr %s207, 4
      %s209 = scalar_lea.vmem %s1, %s208
      %s210 = smul.u32 128, %s20
      %p211 = scmp.lt.s32.totalorder %s18, 0
      %s212 = scalar_select %p211, %s18, 0
      %p213 = scmp.lt.s32.totalorder %s19, 0
      %s214 = scalar_select %p213, %s19, 0
      %s215 = sadd.s32 %s214, %s212
      %s216 = smul.addr %s215, 4
      %s217 = scalar_lea.vmem %s2, %s216
      %p219 = scmp.eq.s32.totalorder %s20, 0
      // Predicated region
      $region29: #{_lambda_.14} parent=27 // pred_check
        %p220 = pneg %p219
      $region30: #{_lambda_.14} parent=27 // pred_check_branch
        %222 = sbr.rel (%p220) target = $region32
      $region31: #{_lambda_.14} parent=27 // pred_region
        %223 = vst [vmem:[#allocation2] sm:$0xff] 0.0
      $region32: #{_lambda_.14} parent=27 // pred_fallthru
        _
      %v224 = vld [vmem:[#allocation2] sm:$0xff]
      %v225 = vld [vmem:[%s200] sm:$0xff]
      %v226 = vld [vmem:[%s200 + $0x8] sm:$0xff]
      %v227 = vld [vmem:[%s200 + $0x10] sm:$0xff]
      %v228 = vld [vmem:[%s200 + $0x18] sm:$0xff]
      %v229 = vld [vmem:[%s209] sm:$0xf]
      %v230 = vld [vmem:[%s209 + $0x4] sm:$0xf]
      %v231 = vld [vmem:[%s209 + $0x8] sm:$0xf]
      %v232 = vld [vmem:[%s209 + $0xc] sm:$0xf]
      %v233 = vld [vmem:[%s209 + $0x10] sm:$0xf]
      %v234 = vld [vmem:[%s209 + $0x14] sm:$0xf]
      %v235 = vld [vmem:[%s209 + $0x18] sm:$0xf]
      %v236 = vld [vmem:[%s209 + $0x1c] sm:$0xf]
      %v237 = vld [vmem:[%s209 + $0x20] sm:$0xf]
      %v238 = vld [vmem:[%s209 + $0x24] sm:$0xf]
      %v239 = vld [vmem:[%s209 + $0x28] sm:$0xf]
      %v240 = vld [vmem:[%s209 + $0x2c] sm:$0xf]
      %v241 = vld [vmem:[%s209 + $0x30] sm:$0xf]
      %v242 = vld [vmem:[%s209 + $0x34] sm:$0xf]
      %v243 = vld [vmem:[%s209 + $0x38] sm:$0xf]
      %v244 = vld [vmem:[%s209 + $0x3c] sm:$0xf]
      %v245 = vld [vmem:[%s209 + $0x40] sm:$0xf]
      %v246 = vld [vmem:[%s209 + $0x44] sm:$0xf]
      %v247 = vld [vmem:[%s209 + $0x48] sm:$0xf]
      %v248 = vld [vmem:[%s209 + $0x4c] sm:$0xf]
      %v249 = vld [vmem:[%s209 + $0x50] sm:$0xf]
      %v250 = vld [vmem:[%s209 + $0x54] sm:$0xf]
      %v251 = vld [vmem:[%s209 + $0x58] sm:$0xf]
      %v252 = vld [vmem:[%s209 + $0x5c] sm:$0xf]
      %v253 = vld [vmem:[%s209 + $0x60] sm:$0xf]
      %v254 = vld [vmem:[%s209 + $0x64] sm:$0xf]
      %v255 = vld [vmem:[%s209 + $0x68] sm:$0xf]
      %v256 = vld [vmem:[%s209 + $0x6c] sm:$0xf]
      %v257 = vld [vmem:[%s209 + $0x70] sm:$0xf]
      %v258 = vld [vmem:[%s209 + $0x74] sm:$0xf]
      %v259 = vld [vmem:[%s209 + $0x78] sm:$0xf]
      %v260 = vld [vmem:[%s209 + $0x7c] sm:$0xf]
      %v261 = vld [vmem:[%s209 + $0x80] sm:$0xf]
      %v262 = vld [vmem:[%s209 + $0x84] sm:$0xf]
      %v263 = vld [vmem:[%s209 + $0x88] sm:$0xf]
      %v264 = vld [vmem:[%s209 + $0x8c] sm:$0xf]
      %v265 = vld [vmem:[%s209 + $0x90] sm:$0xf]
      %v266 = vld [vmem:[%s209 + $0x94] sm:$0xf]
      %v267 = vld [vmem:[%s209 + $0x98] sm:$0xf]
      %v268 = vld [vmem:[%s209 + $0x9c] sm:$0xf]
      %v269 = vld [vmem:[%s209 + $0xa0] sm:$0xf]
      %v270 = vld [vmem:[%s209 + $0xa4] sm:$0xf]
      %v271 = vld [vmem:[%s209 + $0xa8] sm:$0xf]
      %v272 = vld [vmem:[%s209 + $0xac] sm:$0xf]
      %v273 = vld [vmem:[%s209 + $0xb0] sm:$0xf]
      %v274 = vld [vmem:[%s209 + $0xb4] sm:$0xf]
      %v275 = vld [vmem:[%s209 + $0xb8] sm:$0xf]
      %v276 = vld [vmem:[%s209 + $0xbc] sm:$0xf]
      %v277 = vld [vmem:[%s209 + $0xc0] sm:$0xf]
      %v278 = vld [vmem:[%s209 + $0xc4] sm:$0xf]
      %v279 = vld [vmem:[%s209 + $0xc8] sm:$0xf]
      %v280 = vld [vmem:[%s209 + $0xcc] sm:$0xf]
      %v281 = vld [vmem:[%s209 + $0xd0] sm:$0xf]
      %v282 = vld [vmem:[%s209 + $0xd4] sm:$0xf]
      %v283 = vld [vmem:[%s209 + $0xd8] sm:$0xf]
      %v284 = vld [vmem:[%s209 + $0xdc] sm:$0xf]
      %v285 = vld [vmem:[%s209 + $0xe0] sm:$0xf]
      %v286 = vld [vmem:[%s209 + $0xe4] sm:$0xf]
      %v287 = vld [vmem:[%s209 + $0xe8] sm:$0xf]
      %v288 = vld [vmem:[%s209 + $0xec] sm:$0xf]
      %v289 = vld [vmem:[%s209 + $0xf0] sm:$0xf]
      %v290 = vld [vmem:[%s209 + $0xf4] sm:$0xf]
      %v291 = vld [vmem:[%s209 + $0xf8] sm:$0xf]
      %v292 = vld [vmem:[%s209 + $0xfc] sm:$0xf]
      %v293 = vld [vmem:[%s209 + $0x100] sm:$0xf]
      %v294 = vld [vmem:[%s209 + $0x104] sm:$0xf]
      %v295 = vld [vmem:[%s209 + $0x108] sm:$0xf]
      %v296 = vld [vmem:[%s209 + $0x10c] sm:$0xf]
      %v297 = vld [vmem:[%s209 + $0x110] sm:$0xf]
      %v298 = vld [vmem:[%s209 + $0x114] sm:$0xf]
      %v299 = vld [vmem:[%s209 + $0x118] sm:$0xf]
      %v300 = vld [vmem:[%s209 + $0x11c] sm:$0xf]
      %v301 = vld [vmem:[%s209 + $0x120] sm:$0xf]
      %v302 = vld [vmem:[%s209 + $0x124] sm:$0xf]
      %v303 = vld [vmem:[%s209 + $0x128] sm:$0xf]
      %v304 = vld [vmem:[%s209 + $0x12c] sm:$0xf]
      %v305 = vld [vmem:[%s209 + $0x130] sm:$0xf]
      %v306 = vld [vmem:[%s209 + $0x134] sm:$0xf]
      %v307 = vld [vmem:[%s209 + $0x138] sm:$0xf]
      %v308 = vld [vmem:[%s209 + $0x13c] sm:$0xf]
      %v309 = vld [vmem:[%s209 + $0x140] sm:$0xf]
      %v310 = vld [vmem:[%s209 + $0x144] sm:$0xf]
      %v311 = vld [vmem:[%s209 + $0x148] sm:$0xf]
      %v312 = vld [vmem:[%s209 + $0x14c] sm:$0xf]
      %v313 = vld [vmem:[%s209 + $0x150] sm:$0xf]
      %v314 = vld [vmem:[%s209 + $0x154] sm:$0xf]
      %v315 = vld [vmem:[%s209 + $0x158] sm:$0xf]
      %v316 = vld [vmem:[%s209 + $0x15c] sm:$0xf]
      %v317 = vld [vmem:[%s209 + $0x160] sm:$0xf]
      %v318 = vld [vmem:[%s209 + $0x164] sm:$0xf]
      %v319 = vld [vmem:[%s209 + $0x168] sm:$0xf]
      %v320 = vld [vmem:[%s209 + $0x16c] sm:$0xf]
      %v321 = vld [vmem:[%s209 + $0x170] sm:$0xf]
      %v322 = vld [vmem:[%s209 + $0x174] sm:$0xf]
      %v323 = vld [vmem:[%s209 + $0x178] sm:$0xf]
      %v324 = vld [vmem:[%s209 + $0x17c] sm:$0xf]
      %v325 = vld [vmem:[%s209 + $0x180] sm:$0xf]
      %v326 = vld [vmem:[%s209 + $0x184] sm:$0xf]
      %v327 = vld [vmem:[%s209 + $0x188] sm:$0xf]
      %v328 = vld [vmem:[%s209 + $0x18c] sm:$0xf]
      %v329 = vld [vmem:[%s209 + $0x190] sm:$0xf]
      %v330 = vld [vmem:[%s209 + $0x194] sm:$0xf]
      %v331 = vld [vmem:[%s209 + $0x198] sm:$0xf]
      %v332 = vld [vmem:[%s209 + $0x19c] sm:$0xf]
      %v333 = vld [vmem:[%s209 + $0x1a0] sm:$0xf]
      %v334 = vld [vmem:[%s209 + $0x1a4] sm:$0xf]
      %v335 = vld [vmem:[%s209 + $0x1a8] sm:$0xf]
      %v336 = vld [vmem:[%s209 + $0x1ac] sm:$0xf]
      %v337 = vld [vmem:[%s209 + $0x1b0] sm:$0xf]
      %v338 = vld [vmem:[%s209 + $0x1b4] sm:$0xf]
      %v339 = vld [vmem:[%s209 + $0x1b8] sm:$0xf]
      %v340 = vld [vmem:[%s209 + $0x1bc] sm:$0xf]
      %v341 = vld [vmem:[%s209 + $0x1c0] sm:$0xf]
      %v342 = vld [vmem:[%s209 + $0x1c4] sm:$0xf]
      %v343 = vld [vmem:[%s209 + $0x1c8] sm:$0xf]
      %v344 = vld [vmem:[%s209 + $0x1cc] sm:$0xf]
      %v345 = vld [vmem:[%s209 + $0x1d0] sm:$0xf]
      %v346 = vld [vmem:[%s209 + $0x1d4] sm:$0xf]
      %v347 = vld [vmem:[%s209 + $0x1d8] sm:$0xf]
      %v348 = vld [vmem:[%s209 + $0x1dc] sm:$0xf]
      %v349 = vld [vmem:[%s209 + $0x1e0] sm:$0xf]
      %v350 = vld [vmem:[%s209 + $0x1e4] sm:$0xf]
      %v351 = vld [vmem:[%s209 + $0x1e8] sm:$0xf]
      %v352 = vld [vmem:[%s209 + $0x1ec] sm:$0xf]
      %v353 = vld [vmem:[%s209 + $0x1f0] sm:$0xf]
      %v354 = vld [vmem:[%s209 + $0x1f4] sm:$0xf]
      %v355 = vld [vmem:[%s209 + $0x1f8] sm:$0xf]
      %v356 = vld [vmem:[%s209 + $0x1fc] sm:$0xf]
      %v361 = vunpack.c.l.b16 %v225
      %v362 = vunpack.c.h.b16 %v225
      %v363 = vunpack.c.l.b16 %v226
      %v364 = vunpack.c.h.b16 %v226
      %v365 = vunpack.c.l.b16 %v227
      %v366 = vunpack.c.h.b16 %v227
      %v367 = vunpack.c.l.b16 %v228
      %v368 = vunpack.c.h.b16 %v228
      %v369 = vpack.c.b16 %v361, %v361
      %v370 = vpack.c.b16 %v362, %v362
      %v371 = vpack.c.b16 %v363, %v363
      %v372 = vpack.c.b16 %v364, %v364
      %v373 = vpack.c.b16 %v365, %v365
      %v374 = vpack.c.b16 %v366, %v366
      %v375 = vpack.c.b16 %v367, %v367
      %v376 = vpack.c.b16 %v368, %v368
      %v513 = vunpack.c.l.b16 %v229
      %v514 = vunpack.c.l.b16 %v230
      %v515 = vunpack.c.l.b16 %v231
      %v516 = vunpack.c.l.b16 %v232
      %v517 = vunpack.c.l.b16 %v233
      %v518 = vunpack.c.l.b16 %v234
      %v519 = vunpack.c.l.b16 %v235
      %v520 = vunpack.c.l.b16 %v236
      %v521 = vunpack.c.l.b16 %v237
      %v522 = vunpack.c.l.b16 %v238
      %v523 = vunpack.c.l.b16 %v239
      %v524 = vunpack.c.l.b16 %v240
      %v525 = vunpack.c.l.b16 %v241
      %v526 = vunpack.c.l.b16 %v242
      %v527 = vunpack.c.l.b16 %v243
      %v528 = vunpack.c.l.b16 %v244
      %v529 = vunpack.c.l.b16 %v245
      %v530 = vunpack.c.l.b16 %v246
      %v531 = vunpack.c.l.b16 %v247
      %v532 = vunpack.c.l.b16 %v248
      %v533 = vunpack.c.l.b16 %v249
      %v534 = vunpack.c.l.b16 %v250
      %v535 = vunpack.c.l.b16 %v251
      %v536 = vunpack.c.l.b16 %v252
      %v537 = vunpack.c.l.b16 %v253
      %v538 = vunpack.c.l.b16 %v254
      %v539 = vunpack.c.l.b16 %v255
      %v540 = vunpack.c.l.b16 %v256
      %v541 = vunpack.c.l.b16 %v257
      %v542 = vunpack.c.l.b16 %v258
      %v543 = vunpack.c.l.b16 %v259
      %v544 = vunpack.c.l.b16 %v260
      %v545 = vunpack.c.l.b16 %v261
      %v546 = vunpack.c.l.b16 %v262
      %v547 = vunpack.c.l.b16 %v263
      %v548 = vunpack.c.l.b16 %v264
      %v549 = vunpack.c.l.b16 %v265
      %v550 = vunpack.c.l.b16 %v266
      %v551 = vunpack.c.l.b16 %v267
      %v552 = vunpack.c.l.b16 %v268
      %v553 = vunpack.c.l.b16 %v269
      %v554 = vunpack.c.l.b16 %v270
      %v555 = vunpack.c.l.b16 %v271
      %v556 = vunpack.c.l.b16 %v272
      %v557 = vunpack.c.l.b16 %v273
      %v558 = vunpack.c.l.b16 %v274
      %v559 = vunpack.c.l.b16 %v275
      %v560 = vunpack.c.l.b16 %v276
      %v561 = vunpack.c.l.b16 %v277
      %v562 = vunpack.c.l.b16 %v278
      %v563 = vunpack.c.l.b16 %v279
      %v564 = vunpack.c.l.b16 %v280
      %v565 = vunpack.c.l.b16 %v281
      %v566 = vunpack.c.l.b16 %v282
      %v567 = vunpack.c.l.b16 %v283
      %v568 = vunpack.c.l.b16 %v284
      %v569 = vunpack.c.l.b16 %v285
      %v570 = vunpack.c.l.b16 %v286
      %v571 = vunpack.c.l.b16 %v287
      %v572 = vunpack.c.l.b16 %v288
      %v573 = vunpack.c.l.b16 %v289
      %v574 = vunpack.c.l.b16 %v290
      %v575 = vunpack.c.l.b16 %v291
      %v576 = vunpack.c.l.b16 %v292
      %v577 = vunpack.c.l.b16 %v293
      %v578 = vunpack.c.l.b16 %v294
      %v579 = vunpack.c.l.b16 %v295
      %v580 = vunpack.c.l.b16 %v296
      %v581 = vunpack.c.l.b16 %v297
      %v582 = vunpack.c.l.b16 %v298
      %v583 = vunpack.c.l.b16 %v299
      %v584 = vunpack.c.l.b16 %v300
      %v585 = vunpack.c.l.b16 %v301
      %v586 = vunpack.c.l.b16 %v302
      %v587 = vunpack.c.l.b16 %v303
      %v588 = vunpack.c.l.b16 %v304
      %v589 = vunpack.c.l.b16 %v305
      %v590 = vunpack.c.l.b16 %v306
      %v591 = vunpack.c.l.b16 %v307
      %v592 = vunpack.c.l.b16 %v308
      %v593 = vunpack.c.l.b16 %v309
      %v594 = vunpack.c.l.b16 %v310
      %v595 = vunpack.c.l.b16 %v311
      %v596 = vunpack.c.l.b16 %v312
      %v597 = vunpack.c.l.b16 %v313
      %v598 = vunpack.c.l.b16 %v314
      %v599 = vunpack.c.l.b16 %v315
      %v600 = vunpack.c.l.b16 %v316
      %v601 = vunpack.c.l.b16 %v317
      %v602 = vunpack.c.l.b16 %v318
      %v603 = vunpack.c.l.b16 %v319
      %v604 = vunpack.c.l.b16 %v320
      %v605 = vunpack.c.l.b16 %v321
      %v606 = vunpack.c.l.b16 %v322
      %v607 = vunpack.c.l.b16 %v323
      %v608 = vunpack.c.l.b16 %v324
      %v609 = vunpack.c.l.b16 %v325
      %v610 = vunpack.c.l.b16 %v326
      %v611 = vunpack.c.l.b16 %v327
      %v612 = vunpack.c.l.b16 %v328
      %v613 = vunpack.c.l.b16 %v329
      %v614 = vunpack.c.l.b16 %v330
      %v615 = vunpack.c.l.b16 %v331
      %v616 = vunpack.c.l.b16 %v332
      %v617 = vunpack.c.l.b16 %v333
      %v618 = vunpack.c.l.b16 %v334
      %v619 = vunpack.c.l.b16 %v335
      %v620 = vunpack.c.l.b16 %v336
      %v621 = vunpack.c.l.b16 %v337
      %v622 = vunpack.c.l.b16 %v338
      %v623 = vunpack.c.l.b16 %v339
      %v624 = vunpack.c.l.b16 %v340
      %v625 = vunpack.c.l.b16 %v341
      %v626 = vunpack.c.l.b16 %v342
      %v627 = vunpack.c.l.b16 %v343
      %v628 = vunpack.c.l.b16 %v344
      %v629 = vunpack.c.l.b16 %v345
      %v630 = vunpack.c.l.b16 %v346
      %v631 = vunpack.c.l.b16 %v347
      %v632 = vunpack.c.l.b16 %v348
      %v633 = vunpack.c.l.b16 %v349
      %v634 = vunpack.c.l.b16 %v350
      %v635 = vunpack.c.l.b16 %v351
      %v636 = vunpack.c.l.b16 %v352
      %v637 = vunpack.c.l.b16 %v353
      %v638 = vunpack.c.l.b16 %v354
      %v639 = vunpack.c.l.b16 %v355
      %v640 = vunpack.c.l.b16 %v356
      %v641 = vpack.c.b16 %v514, %v513
      %v642 = vpack.c.b16 %v516, %v515
      %v643 = vpack.c.b16 %v518, %v517
      %v644 = vpack.c.b16 %v520, %v519
      %v645 = vpack.c.b16 %v522, %v521
      %v646 = vpack.c.b16 %v524, %v523
      %v647 = vpack.c.b16 %v526, %v525
      %v648 = vpack.c.b16 %v528, %v527
      %v649 = vpack.c.b16 %v530, %v529
      %v650 = vpack.c.b16 %v532, %v531
      %v651 = vpack.c.b16 %v534, %v533
      %v652 = vpack.c.b16 %v536, %v535
      %v653 = vpack.c.b16 %v538, %v537
      %v654 = vpack.c.b16 %v540, %v539
      %v655 = vpack.c.b16 %v542, %v541
      %v656 = vpack.c.b16 %v544, %v543
      %v657 = vpack.c.b16 %v546, %v545
      %v658 = vpack.c.b16 %v548, %v547
      %v659 = vpack.c.b16 %v550, %v549
      %v660 = vpack.c.b16 %v552, %v551
      %v661 = vpack.c.b16 %v554, %v553
      %v662 = vpack.c.b16 %v556, %v555
      %v663 = vpack.c.b16 %v558, %v557
      %v664 = vpack.c.b16 %v560, %v559
      %v665 = vpack.c.b16 %v562, %v561
      %v666 = vpack.c.b16 %v564, %v563
      %v667 = vpack.c.b16 %v566, %v565
      %v668 = vpack.c.b16 %v568, %v567
      %v669 = vpack.c.b16 %v570, %v569
      %v670 = vpack.c.b16 %v572, %v571
      %v671 = vpack.c.b16 %v574, %v573
      %v672 = vpack.c.b16 %v576, %v575
      %v673 = vpack.c.b16 %v578, %v577
      %v674 = vpack.c.b16 %v580, %v579
      %v675 = vpack.c.b16 %v582, %v581
      %v676 = vpack.c.b16 %v584, %v583
      %v677 = vpack.c.b16 %v586, %v585
      %v678 = vpack.c.b16 %v588, %v587
      %v679 = vpack.c.b16 %v590, %v589
      %v680 = vpack.c.b16 %v592, %v591
      %v681 = vpack.c.b16 %v594, %v593
      %v682 = vpack.c.b16 %v596, %v595
      %v683 = vpack.c.b16 %v598, %v597
      %v684 = vpack.c.b16 %v600, %v599
      %v685 = vpack.c.b16 %v602, %v601
      %v686 = vpack.c.b16 %v604, %v603
      %v687 = vpack.c.b16 %v606, %v605
      %v688 = vpack.c.b16 %v608, %v607
      %v689 = vpack.c.b16 %v610, %v609
      %v690 = vpack.c.b16 %v612, %v611
      %v691 = vpack.c.b16 %v614, %v613
      %v692 = vpack.c.b16 %v616, %v615
      %v693 = vpack.c.b16 %v618, %v617
      %v694 = vpack.c.b16 %v620, %v619
      %v695 = vpack.c.b16 %v622, %v621
      %v696 = vpack.c.b16 %v624, %v623
      %v697 = vpack.c.b16 %v626, %v625
      %v698 = vpack.c.b16 %v628, %v627
      %v699 = vpack.c.b16 %v630, %v629
      %v700 = vpack.c.b16 %v632, %v631
      %v701 = vpack.c.b16 %v634, %v633
      %v702 = vpack.c.b16 %v636, %v635
      %v703 = vpack.c.b16 %v638, %v637
      %v704 = vpack.c.b16 %v640, %v639
      %769 = vmatprep.subr.bf16.mxu0 0
      %770 = vmatpush1.bf16.msra.mxu0 %v641
      %771 = vmatprep.subr.bf16.mxu0 0
      %772 = vmatpush1.bf16.msra.mxu0 %v642
      %773 = vmatprep.subr.bf16.mxu0 0
      %774 = vmatpush1.bf16.msra.mxu0 %v643
      %775 = vmatprep.subr.bf16.mxu0 0
      %776 = vmatpush1.bf16.msra.mxu0 %v644
      %777 = vmatprep.subr.bf16.mxu0 0
      %778 = vmatpush1.bf16.msra.mxu0 %v645
      %779 = vmatprep.subr.bf16.mxu0 0
      %780 = vmatpush1.bf16.msra.mxu0 %v646
      %781 = vmatprep.subr.bf16.mxu0 0
      %782 = vmatpush1.bf16.msra.mxu0 %v647
      %783 = vmatprep.subr.bf16.mxu0 0
      %784 = vmatpush1.bf16.msra.mxu0 %v648
      %785 = vmatprep.subr.bf16.mxu0 0
      %786 = vmatpush1.bf16.msra.mxu0 %v649
      %787 = vmatprep.subr.bf16.mxu0 0
      %788 = vmatpush1.bf16.msra.mxu0 %v650
      %789 = vmatprep.subr.bf16.mxu0 0
      %790 = vmatpush1.bf16.msra.mxu0 %v651
      %791 = vmatprep.subr.bf16.mxu0 0
      %792 = vmatpush1.bf16.msra.mxu0 %v652
      %793 = vmatprep.subr.bf16.mxu0 0
      %794 = vmatpush1.bf16.msra.mxu0 %v653
      %795 = vmatprep.subr.bf16.mxu0 0
      %796 = vmatpush1.bf16.msra.mxu0 %v654
      %797 = vmatprep.subr.bf16.mxu0 0
      %798 = vmatpush1.bf16.msra.mxu0 %v655
      %799 = vmatprep.subr.bf16.mxu0 0
      %800 = vmatpush1.bf16.msra.mxu0 %v656
      %801 = vmatprep.mubr.bf16.mxu0 %v370
      %802 = vmatmul.mubr.bf16.gmra.mrb[0].mxu0 %v369
      %v803 = vpop.f32.mrb[0].mxu0
      %v804 = vadd.f32 0.0, %v803
      %v805 = vpop.f32.mrb[0].mxu0
      %v806 = vpop.f32.mrb[0].mxu0
      %v807 = vpop.f32.mrb[0].mxu0
      %808 = vdwg.mxu0
      %809 = vmatprep.subr.bf16.mxu0 0
      %810 = vmatpush1.bf16.msra.mxu0 %v657
      %811 = vmatprep.subr.bf16.mxu0 0
      %812 = vmatpush1.bf16.msra.mxu0 %v658
      %813 = vmatprep.subr.bf16.mxu0 0
      %814 = vmatpush1.bf16.msra.mxu0 %v659
      %815 = vmatprep.subr.bf16.mxu0 0
      %816 = vmatpush1.bf16.msra.mxu0 %v660
      %817 = vmatprep.subr.bf16.mxu0 0
      %818 = vmatpush1.bf16.msra.mxu0 %v661
      %819 = vmatprep.subr.bf16.mxu0 0
      %820 = vmatpush1.bf16.msra.mxu0 %v662
      %821 = vmatprep.subr.bf16.mxu0 0
      %822 = vmatpush1.bf16.msra.mxu0 %v663
      %823 = vmatprep.subr.bf16.mxu0 0
      %824 = vmatpush1.bf16.msra.mxu0 %v664
      %825 = vmatprep.subr.bf16.mxu0 0
      %826 = vmatpush1.bf16.msra.mxu0 %v665
      %827 = vmatprep.subr.bf16.mxu0 0
      %828 = vmatpush1.bf16.msra.mxu0 %v666
      %829 = vmatprep.subr.bf16.mxu0 0
      %830 = vmatpush1.bf16.msra.mxu0 %v667
      %831 = vmatprep.subr.bf16.mxu0 0
      %832 = vmatpush1.bf16.msra.mxu0 %v668
      %833 = vmatprep.subr.bf16.mxu0 0
      %834 = vmatpush1.bf16.msra.mxu0 %v669
      %835 = vmatprep.subr.bf16.mxu0 0
      %836 = vmatpush1.bf16.msra.mxu0 %v670
      %837 = vmatprep.subr.bf16.mxu0 0
      %838 = vmatpush1.bf16.msra.mxu0 %v671
      %839 = vmatprep.subr.bf16.mxu0 0
      %840 = vmatpush1.bf16.msra.mxu0 %v672
      %841 = vmatprep.mubr.bf16.mxu0 %v372
      %842 = vmatmul.mubr.bf16.gmra.mrb[0].mxu0 %v371
      %v843 = vpop.f32.mrb[0].mxu0
      %v844 = vadd.f32 %v804, %v843
      %v845 = vpop.f32.mrb[0].mxu0
      %v846 = vpop.f32.mrb[0].mxu0
      %v847 = vpop.f32.mrb[0].mxu0
      %848 = vdwg.mxu0
      %849 = vmatprep.subr.bf16.mxu0 0
      %850 = vmatpush1.bf16.msra.mxu0 %v673
      %851 = vmatprep.subr.bf16.mxu0 0
      %852 = vmatpush1.bf16.msra.mxu0 %v674
      %853 = vmatprep.subr.bf16.mxu0 0
      %854 = vmatpush1.bf16.msra.mxu0 %v675
      %855 = vmatprep.subr.bf16.mxu0 0
      %856 = vmatpush1.bf16.msra.mxu0 %v676
      %857 = vmatprep.subr.bf16.mxu0 0
      %858 = vmatpush1.bf16.msra.mxu0 %v677
      %859 = vmatprep.subr.bf16.mxu0 0
      %860 = vmatpush1.bf16.msra.mxu0 %v678
      %861 = vmatprep.subr.bf16.mxu0 0
      %862 = vmatpush1.bf16.msra.mxu0 %v679
      %863 = vmatprep.subr.bf16.mxu0 0
      %864 = vmatpush1.bf16.msra.mxu0 %v680
      %865 = vmatprep.subr.bf16.mxu0 0
      %866 = vmatpush1.bf16.msra.mxu0 %v681
      %867 = vmatprep.subr.bf16.mxu0 0
      %868 = vmatpush1.bf16.msra.mxu0 %v682
      %869 = vmatprep.subr.bf16.mxu0 0
      %870 = vmatpush1.bf16.msra.mxu0 %v683
      %871 = vmatprep.subr.bf16.mxu0 0
      %872 = vmatpush1.bf16.msra.mxu0 %v684
      %873 = vmatprep.subr.bf16.mxu0 0
      %874 = vmatpush1.bf16.msra.mxu0 %v685
      %875 = vmatprep.subr.bf16.mxu0 0
      %876 = vmatpush1.bf16.msra.mxu0 %v686
      %877 = vmatprep.subr.bf16.mxu0 0
      %878 = vmatpush1.bf16.msra.mxu0 %v687
      %879 = vmatprep.subr.bf16.mxu0 0
      %880 = vmatpush1.bf16.msra.mxu0 %v688
      %881 = vmatprep.mubr.bf16.mxu0 %v374
      %882 = vmatmul.mubr.bf16.gmra.mrb[0].mxu0 %v373
      %v883 = vpop.f32.mrb[0].mxu0
      %v884 = vadd.f32 %v844, %v883
      %v885 = vpop.f32.mrb[0].mxu0
      %v886 = vpop.f32.mrb[0].mxu0
      %v887 = vpop.f32.mrb[0].mxu0
      %888 = vdwg.mxu0
      %889 = vmatprep.subr.bf16.mxu0 0
      %890 = vmatpush1.bf16.msra.mxu0 %v689
      %891 = vmatprep.subr.bf16.mxu0 0
      %892 = vmatpush1.bf16.msra.mxu0 %v690
      %893 = vmatprep.subr.bf16.mxu0 0
      %894 = vmatpush1.bf16.msra.mxu0 %v691
      %895 = vmatprep.subr.bf16.mxu0 0
      %896 = vmatpush1.bf16.msra.mxu0 %v692
      %897 = vmatprep.subr.bf16.mxu0 0
      %898 = vmatpush1.bf16.msra.mxu0 %v693
      %899 = vmatprep.subr.bf16.mxu0 0
      %900 = vmatpush1.bf16.msra.mxu0 %v694
      %901 = vmatprep.subr.bf16.mxu0 0
      %902 = vmatpush1.bf16.msra.mxu0 %v695
      %903 = vmatprep.subr.bf16.mxu0 0
      %904 = vmatpush1.bf16.msra.mxu0 %v696
      %905 = vmatprep.subr.bf16.mxu0 0
      %906 = vmatpush1.bf16.msra.mxu0 %v697
      %907 = vmatprep.subr.bf16.mxu0 0
      %908 = vmatpush1.bf16.msra.mxu0 %v698
      %909 = vmatprep.subr.bf16.mxu0 0
      %910 = vmatpush1.bf16.msra.mxu0 %v699
      %911 = vmatprep.subr.bf16.mxu0 0
      %912 = vmatpush1.bf16.msra.mxu0 %v700
      %913 = vmatprep.subr.bf16.mxu0 0
      %914 = vmatpush1.bf16.msra.mxu0 %v701
      %915 = vmatprep.subr.bf16.mxu0 0
      %916 = vmatpush1.bf16.msra.mxu0 %v702
      %917 = vmatprep.subr.bf16.mxu0 0
      %918 = vmatpush1.bf16.msra.mxu0 %v703
      %919 = vmatprep.subr.bf16.mxu0 0
      %920 = vmatpush1.bf16.msra.mxu0 %v704
      %921 = vmatprep.mubr.bf16.mxu0 %v376
      %922 = vmatmul.mubr.bf16.gmra.mrb[0].mxu0 %v375
      %v923 = vpop.f32.mrb[0].mxu0
      %v924 = vadd.f32 %v884, %v923
      %v925 = vpop.f32.mrb[0].mxu0
      %v926 = vpop.f32.mrb[0].mxu0
      %v927 = vpop.f32.mrb[0].mxu0
      %928 = vdwg.mxu0
      %v929 = vadd.f32 %v224, %v924
      %930 = vst [vmem:[#allocation2] sm:$0xff] %v929
      %p931 = scmp.eq.s32.totalorder %s20, 2
      // Predicated region
      $region33: #{_lambda_.14} parent=27 // pred_check
        %p932 = pneg %p931
      $region34: #{_lambda_.14} parent=27 // pred_check_branch
        %934 = sbr.rel (%p932) target = $region36
      $region35: #{_lambda_.14} parent=27 // pred_region
        %v935 = vld [vmem:[#allocation2] sm:$0xff]
        %v936 = vpack.c.bf16 %v935, %v935
        %937 = vst [vmem:[%s217] sm:$0xf] %v936
      $region36: #{_lambda_.14} parent=27 // pred_fallthru
        _
      %p938 = scmp.lt.s32.totalorder %s18, 0
      %s939 = scalar_select %p938, %s18, 0
      %p940 = scmp.lt.s32.totalorder %s19, 0
      %s941 = scalar_select %p940, %s19, 0
      %s942 = sadd.s32 %s941, %s939
      %s943 = smul.addr %s942, 4
      %s944 = scalar_lea.vmem %s2, %s943
      // Predicated region
      $region37: #{_lambda_.14} parent=27 // pred_check
        %p945 = pneg %p108
      $region38: #{_lambda_.14} parent=27 // pred_check_branch
        %947 = sbr.rel (%p945) target = $region40
      $region39: #{_lambda_.14} parent=27 // pred_region
        _
      $region40: #{_lambda_.14} parent=27 // pred_fallthru
        _
      // Predicated region
      $region41: #{_lambda_.14} parent=27 // pred_check
        %p948 = pneg %p108
      $region42: #{_lambda_.14} parent=27 // pred_check_branch
        %950 = sbr.rel (%p948) target = $region44
      $region43: #{_lambda_.14} parent=27 // pred_region
        %p951 = scmp.lt.s32.totalorder %s18, 0
        %s952 = scalar_select %p951, %s18, 0
        %p953 = scmp.lt.s32.totalorder %s19, 0
        %s954 = scalar_select %p953, %s19, 0
        %s955 = sadd.s32 %s954, %s952
        %s956 = smul.addr %s955, 4
        %s957 = scalar_lea.vmem %s2, %s956
      $region44: #{_lambda_.14} parent=27 // pred_fallthru
        _
    $region28: #{_lambda_.14} parent=5 // pred_fallthru
      _
    %p958 = scmp.le.s32.totalorder 2, %s8
    // Predicated region
    $region45: #{_lambda_.14} parent=5 // pred_check
      %p959 = pneg %p958
    $region46: #{_lambda_.14} parent=5 // pred_check_branch
      %961 = sbr.rel (%p959) target = $region48
    $region47: #{_lambda_.14} parent=5 // pred_region
      %s962 = ssub.s32 %s8, 2
    $region48: #{_lambda_.14} parent=5 // pred_fallthru
      _
  $region6: #{_lambda_.14} parent=0 // loop_footer
    %s12 = sadd.s32 1, %s8
  $region7: #{_lambda_.14} parent=0 // loop_footer_branch
    %7 = sbr.rel target = $region3
  $region8: #{_lambda_.14} parent=0 // loop_exit
    _

// kernel: _lambda_.19
$region0: #{_lambda_.19}
  #allocation0 [shape = 'u32[]', space=smem, size = 0x4, offset = 0x4, fixed_abs, tag = 'smem constant byte address 0x4 - core index']
  #allocation1 [shape = 'u32[144,128]{1,0:T(1,128)}', space=vmem, size = 0x12000, scoped, tag = 'internal scratch']
  #allocation2 [shape = 'bf16[16,32]{1,0:T(16,128)(2,1)}', space=vmem, size = 0x1000, scoped, tag = 'scratch operand']
  %s0 = inlined_call_operand.vmem [shape: bf16[16,32], index: 0, kind: input, shape index: {}]
  %s1 = inlined_call_operand.vmem [shape: f32[1,32], index: 1, kind: input, shape index: {}]
  %s2 = inlined_call_operand.vmem [shape: f32[1,32], index: 2, kind: input, shape index: {}]
  %s3 = inlined_call_operand.vmem [shape: bf16[32,128], index: 3, kind: input, shape index: {}]
  %s4 = inlined_call_operand.vmem [shape: f32[1,128], index: 4, kind: input, shape index: {}]
  %s5 = inlined_call_operand.vmem [shape: bf16[16,128], index: 5, kind: output, shape index: {}]
  %s6 = sld [smem:[#allocation0]]
  $region34: #{_lambda_.19} parent=0
    _
  %s8 = ssub.s32 1, %s6
  %s9 = scalar_select 0, %s8, %s6
  // Predicated region
  $region2: #{_lambda_.19} parent=0 // pred_check
    _
  $region3: #{_lambda_.19} parent=0 // pred_check_branch
    %11 = sbr.rel (0) target = $region5
  $region4: #{_lambda_.19} parent=0 // pred_region
    _
  $region5: #{_lambda_.19} parent=0 // pred_fallthru
    _
  // Predicated region
  $region6: #{_lambda_.19} parent=0 // pred_check
    _
  $region7: #{_lambda_.19} parent=0 // pred_check_branch
    %13 = sbr.rel (0) target = $region9
  $region8: #{_lambda_.19} parent=0 // pred_region
    _
  $region9: #{_lambda_.19} parent=0 // pred_fallthru
    _
  // Predicated region
  $region10: #{_lambda_.19} parent=0 // pred_check
    _
  $region11: #{_lambda_.19} parent=0 // pred_check_branch
    %15 = sbr.rel (0) target = $region13
  $region12: #{_lambda_.19} parent=0 // pred_region
    _
  $region13: #{_lambda_.19} parent=0 // pred_fallthru
    _
  // Predicated region
  $region14: #{_lambda_.19} parent=0 // pred_check
    _
  $region15: #{_lambda_.19} parent=0 // pred_check_branch
    %17 = sbr.rel (0) target = $region17
  $region16: #{_lambda_.19} parent=0 // pred_region
    _
  $region17: #{_lambda_.19} parent=0 // pred_fallthru
    _
  // Predicated region
  $region18: #{_lambda_.19} parent=0 // pred_check
    _
  $region19: #{_lambda_.19} parent=0 // pred_check_branch
    %19 = sbr.rel (0) target = $region21
  $region20: #{_lambda_.19} parent=0 // pred_region
    _
  $region21: #{_lambda_.19} parent=0 // pred_fallthru
    _
  %p21 = scmp.eq.s32.totalorder 0, 0
  // Predicated region
  $region22: #{_lambda_.19} parent=0 // pred_check
    %p22 = pneg %p21
  $region23: #{_lambda_.19} parent=0 // pred_check_branch
    %24 = sbr.rel (%p22) target = $region25
  $region24: #{_lambda_.19} parent=0 // pred_region
    %v25 = vld [vmem:[%s0] sm:$0xf]
    %v26 = vld [vmem:[%s0 + $0x4] sm:$0xf]
    %v27 = vunpack.c.l.bf16 %v25
    %v28 = vunpack.c.l.bf16 %v26
    %vm29 = vcmask 261120
    %v30 = vsel %vm29, %v27, 0.0
    %31 = vadd.xlane.f32.xlu0 %v30
    %v32 = vpop.xlane.xlu0 %31
    %v33 = vsel %vm29, %v28, 0.0
    %34 = vadd.xlane.f32.xlu0 %v33
    %v35 = vpop.xlane.xlu0 %34
    %v36 = vrcp.pop 32.0
    %v37 = vmul.f32 %v32, %v36
    %v38 = vmul.f32 %v35, %v36
    %v39 = vsub.f32 %v27, %v37
    %v40 = vsub.f32 %v28, %v38
    %v41 = vmul.f32 %v39, %v39
    %v42 = vmul.f32 %v40, %v40
    %v43 = vsel %vm29, %v41, 0.0
    %44 = vadd.xlane.f32.xlu0 %v43
    %v45 = vpop.xlane.xlu0 %44
    %v46 = vsel %vm29, %v42, 0.0
    %47 = vadd.xlane.f32.xlu0 %v46
    %v48 = vpop.xlane.xlu0 %47
    %v49 = vmul.f32 %v45, %v36
    %v50 = vmul.f32 %v48, %v36
    %v51 = vadd.f32 %v49, 1e-05
    %v52 = vadd.f32 %v50, 1e-05
    %v53 = vrsqrt.pop %v51
    %v54 = vrsqrt.pop %v52
    %v55 = vmul.f32 %v39, %v53
    %v56 = vmul.f32 %v40, %v54
    %v57 = vld [vmem:[%s1] sm:$0x1]
    %v59 = vlaneseq
    %v60 = vshrl.u32 %v59, 7
    %v61 = vsub.s32 0, %v60
    %v62 = vrot.slane %v57, %v61
    %v64 = vmul.f32 %v55, %v62
    %v65 = vmul.f32 %v56, %v62
    %v66 = vld [vmem:[%s2] sm:$0x1]
    %v68 = vlaneseq
    %v69 = vshrl.u32 %v68, 7
    %v70 = vsub.s32 0, %v69
    %v71 = vrot.slane %v66, %v70
    %v73 = vadd.f32 %v64, %v71
    %v74 = vadd.f32 %v65, %v71
    %v75 = vpack.c.bf16 %v74, %v73
    %76 = vst.msk [vmem:[#allocation2] sm:$0xff] %vm29, %v75
  $region25: #{_lambda_.19} parent=0 // pred_fallthru
    _
  %v77 = vld [vmem:[#allocation2] sm:$0xff]
  %v78 = vld [vmem:[%s3] sm:$0xf]
  %v79 = vld [vmem:[%s3 + $0x4] sm:$0xf]
  %v80 = vld [vmem:[%s3 + $0x8] sm:$0xf]
  %v81 = vld [vmem:[%s3 + $0xc] sm:$0xf]
  %v82 = vld [vmem:[%s4] sm:$0x1]
  %v84 = vlaneseq
  %v85 = vshrl.u32 %v84, 7
  %v86 = vsub.s32 0, %v85
  %v87 = vrot.slane %v82, %v86
  %v93 = vunpack.c.l.b16 %v78
  %v94 = vunpack.c.l.b16 %v79
  %v95 = vunpack.c.l.b16 %v80
  %v96 = vunpack.c.l.b16 %v81
  %v97 = vpack.c.b16 %v94, %v93
  %v98 = vpack.c.b16 %v96, %v95
  %vm101 = vcmask 261120
  %v103 = vsel %vm101, %v77, 0
  %105 = vmatprep.subr.bf16.mxu0 0
  %106 = vmatpush1.bf16.msra.mxu0 %v97
  %107 = vmatprep.subr.bf16.mxu0 0
  %108 = vmatpush1.bf16.msra.mxu0 %v98
  %109 = vmatprep.subr.bf16.mxu0 0
  %110 = vmatpush1.bf16.msra.mxu0 0
  %111 = vmatprep.subr.bf16.mxu0 0
  %112 = vmatpush1.bf16.msra.mxu0 0
  %113 = vmatprep.subr.bf16.mxu0 0
  %114 = vmatpush1.bf16.msra.mxu0 0
  %115 = vmatprep.subr.bf16.mxu0 0
  %116 = vmatpush1.bf16.msra.mxu0 0
  %117 = vmatprep.subr.bf16.mxu0 0
  %118 = vmatpush1.bf16.msra.mxu0 0
  %119 = vmatprep.subr.bf16.mxu0 0
  %120 = vmatpush1.bf16.msra.mxu0 0
  %121 = vmatprep.subr.bf16.mxu0 0
  %122 = vmatpush1.bf16.msra.mxu0 0
  %123 = vmatprep.subr.bf16.mxu0 0
  %124 = vmatpush1.bf16.msra.mxu0 0
  %125 = vmatprep.subr.bf16.mxu0 0
  %126 = vmatpush1.bf16.msra.mxu0 0
  %127 = vmatprep.subr.bf16.mxu0 0
  %128 = vmatpush1.bf16.msra.mxu0 0
  %129 = vmatprep.subr.bf16.mxu0 0
  %130 = vmatpush1.bf16.msra.mxu0 0
  %131 = vmatprep.subr.bf16.mxu0 0
  %132 = vmatpush1.bf16.msra.mxu0 0
  %133 = vmatprep.subr.bf16.mxu0 0
  %134 = vmatpush1.bf16.msra.mxu0 0
  %135 = vmatprep.subr.bf16.mxu0 0
  %136 = vmatpush1.bf16.msra.mxu0 0
  %137 = vmatprep.mubr.bf16.mxu0 0
  %138 = vmatmul.mubr.bf16.gmra.mrb[0].mxu0 %v103
  %v139 = vpop.f32.mrb[0].mxu0
  %v140 = vadd.f32 %v87, %v139
  %v141 = vpop.f32.mrb[0].mxu0
  %v142 = vpop.f32.mrb[0].mxu0
  %v143 = vadd.f32 %v87, %v142
  %v144 = vpop.f32.mrb[0].mxu0
  %145 = vdwg.mxu0
  %v146 = vmul.f32 %v140, 1.702
  %v147 = vmul.f32 %v143, 1.702
  %v148 = vxor.u32 %v146, 2147483648
  %v149 = vxor.u32 %v147, 2147483648
  %v150 = vmul.f32 %v148, 1.442695
  %v151 = vpow.pop %v150
  %v152 = vmul.f32 %v149, 1.442695
  %v153 = vpow.pop %v152
  %v154 = vadd.f32 %v151, 1.0
  %v155 = vadd.f32 %v153, 1.0
  %v156 = vrcp.pop %v154
  %v157 = vmul.f32 1.0, %v156
  %v158 = vrcp.pop %v155
  %v159 = vmul.f32 1.0, %v158
  %v160 = vmul.f32 %v140, %v157
  %v161 = vmul.f32 %v143, %v159
  %v162 = vpack.c.bf16 %v161, %v160
  %v164 = vunpack.c.l.b16 %v162
  %v165 = vunpack.c.h.b16 %v162
  %v166 = vpack.c.b16 %v164, %v164
  %v167 = vpack.c.b16 %v165, %v165
  %170 = vst [vmem:[%s5] sm:$0xf] %v166
  %171 = vst [vmem:[%s5 + $0x4] sm:$0xf] %v167
  // Predicated region
  $region26: #{_lambda_.19} parent=0 // pred_check
    _
  $region27: #{_lambda_.19} parent=0 // pred_check_branch
    %173 = sbr.rel (0) target = $region29
  $region28: #{_lambda_.19} parent=0 // pred_region
    _
  $region29: #{_lambda_.19} parent=0 // pred_fallthru
    _
  // Predicated region
  $region30: #{_lambda_.19} parent=0 // pred_check
    _
  $region31: #{_lambda_.19} parent=0 // pred_check_branch
    %175 = sbr.rel (0) target = $region33
  $region32: #{_lambda_.19} parent=0 // pred_region
    _
  $region33: #{_lambda_.19} parent=0 // pred_fallthru
    _

// kernel: _lambda_.18
$region0: #{_lambda_.18}
  #allocation0 [shape = 'u32[]', space=smem, size = 0x4, offset = 0x4, fixed_abs, tag = 'smem constant byte address 0x4 - core index']
  #allocation1 [shape = 'u32[144,128]{1,0:T(1,128)}', space=vmem, size = 0x12000, scoped, tag = 'internal scratch']
  #allocation2 [shape = 'f32[16,128]{1,0:T(8,128)}', space=vmem, size = 0x2000, scoped, tag = 'scratch operand']
  %s0 = inlined_call_operand.vmem [shape: bf16[16,128], index: 0, kind: input, shape index: {}]
  %s1 = inlined_call_operand.vmem [shape: bf16[128,128], index: 1, kind: input, shape index: {}]
  %s2 = inlined_call_operand.vmem [shape: f32[1,128], index: 2, kind: input, shape index: {}]
  %s3 = inlined_call_operand.vmem [shape: bf16[16,128], index: 3, kind: input, shape index: {}, may-alias: {3,4}]
  %s4 = inlined_call_operand.vmem [shape: bf16[16,128], index: 4, kind: output, shape index: {}, may-alias: {3,4}]
  %s5 = sld [smem:[#allocation0]]
  $region34: #{_lambda_.18} parent=0
    _
  %s7 = ssub.s32 1, %s5
  %s8 = scalar_select 0, %s7, %s5
  // Predicated region
  $region2: #{_lambda_.18} parent=0 // pred_check
    _
  $region3: #{_lambda_.18} parent=0 // pred_check_branch
    %10 = sbr.rel (0) target = $region5
  $region4: #{_lambda_.18} parent=0 // pred_region
    _
  $region5: #{_lambda_.18} parent=0 // pred_fallthru
    _
  // Predicated region
  $region6: #{_lambda_.18} parent=0 // pred_check
    _
  $region7: #{_lambda_.18} parent=0 // pred_check_branch
    %12 = sbr.rel (0) target = $region9
  $region8: #{_lambda_.18} parent=0 // pred_region
    _
  $region9: #{_lambda_.18} parent=0 // pred_fallthru
    _
  // Predicated region
  $region10: #{_lambda_.18} parent=0 // pred_check
    _
  $region11: #{_lambda_.18} parent=0 // pred_check_branch
    %14 = sbr.rel (0) target = $region13
  $region12: #{_lambda_.18} parent=0 // pred_region
    _
  $region13: #{_lambda_.18} parent=0 // pred_fallthru
    _
  // Predicated region
  $region14: #{_lambda_.18} parent=0 // pred_check
    _
  $region15: #{_lambda_.18} parent=0 // pred_check_branch
    %16 = sbr.rel (0) target = $region17
  $region16: #{_lambda_.18} parent=0 // pred_region
    _
  $region17: #{_lambda_.18} parent=0 // pred_fallthru
    _
  %p18 = scmp.eq.s32.totalorder 0, 0
  // Predicated region
  $region18: #{_lambda_.18} parent=0 // pred_check
    %p19 = pneg %p18
  $region19: #{_lambda_.18} parent=0 // pred_check_branch
    %21 = sbr.rel (%p19) target = $region21
  $region20: #{_lambda_.18} parent=0 // pred_region
    %22 = vst [vmem:[#allocation2] sm:$0xff] 0.0
    %23 = vst [vmem:[#allocation2 + $0x8] sm:$0xff] 0.0
  $region21: #{_lambda_.18} parent=0 // pred_fallthru
    _
  %v24 = vld [vmem:[#allocation2] sm:$0xff]
  %v25 = vld [vmem:[#allocation2 + $0x8] sm:$0xff]
  %v26 = vld [vmem:[%s0] sm:$0xf]
  %v27 = vld [vmem:[%s0 + $0x4] sm:$0xf]
  %v28 = vld [vmem:[%s1] sm:$0xf]
  %v29 = vld [vmem:[%s1 + $0x4] sm:$0xf]
  %v30 = vld [vmem:[%s1 + $0x8] sm:$0xf]
  %v31 = vld [vmem:[%s1 + $0xc] sm:$0xf]
  %v32 = vld [vmem:[%s1 + $0x10] sm:$0xf]
  %v33 = vld [vmem:[%s1 + $0x14] sm:$0xf]
  %v34 = vld [vmem:[%s1 + $0x18] sm:$0xf]
  %v35 = vld [vmem:[%s1 + $0x1c] sm:$0xf]
  %v36 = vld [vmem:[%s1 + $0x20] sm:$0xf]
  %v37 = vld [vmem:[%s1 + $0x24] sm:$0xf]
  %v38 = vld [vmem:[%s1 + $0x28] sm:$0xf]
  %v39 = vld [vmem:[%s1 + $0x2c] sm:$0xf]
  %v40 = vld [vmem:[%s1 + $0x30] sm:$0xf]
  %v41 = vld [vmem:[%s1 + $0x34] sm:$0xf]
  %v42 = vld [vmem:[%s1 + $0x38] sm:$0xf]
  %v43 = vld [vmem:[%s1 + $0x3c] sm:$0xf]
  %v46 = vunpack.c.l.b16 %v26
  %v47 = vunpack.c.l.b16 %v27
  %v48 = vpack.c.b16 %v47, %v46
  %v66 = vunpack.c.l.b16 %v28
  %v67 = vunpack.c.l.b16 %v29
  %v68 = vunpack.c.l.b16 %v30
  %v69 = vunpack.c.l.b16 %v31
  %v70 = vunpack.c.l.b16 %v32
  %v71 = vunpack.c.l.b16 %v33
  %v72 = vunpack.c.l.b16 %v34
  %v73 = vunpack.c.l.b16 %v35
  %v74 = vunpack.c.l.b16 %v36
  %v75 = vunpack.c.l.b16 %v37
  %v76 = vunpack.c.l.b16 %v38
  %v77 = vunpack.c.l.b16 %v39
  %v78 = vunpack.c.l.b16 %v40
  %v79 = vunpack.c.l.b16 %v41
  %v80 = vunpack.c.l.b16 %v42
  %v81 = vunpack.c.l.b16 %v43
  %v82 = vpack.c.b16 %v67, %v66
  %v83 = vpack.c.b16 %v69, %v68
  %v84 = vpack.c.b16 %v71, %v70
  %v85 = vpack.c.b16 %v73, %v72
  %v86 = vpack.c.b16 %v75, %v74
  %v87 = vpack.c.b16 %v77, %v76
  %v88 = vpack.c.b16 %v79, %v78
  %v89 = vpack.c.b16 %v81, %v80
  %98 = vmatprep.subr.bf16.mxu0 0
  %99 = vmatpush1.bf16.msra.mxu0 %v82
  %100 = vmatprep.subr.bf16.mxu0 0
  %101 = vmatpush1.bf16.msra.mxu0 %v83
  %102 = vmatprep.subr.bf16.mxu0 0
  %103 = vmatpush1.bf16.msra.mxu0 %v84
  %104 = vmatprep.subr.bf16.mxu0 0
  %105 = vmatpush1.bf16.msra.mxu0 %v85
  %106 = vmatprep.subr.bf16.mxu0 0
  %107 = vmatpush1.bf16.msra.mxu0 %v86
  %108 = vmatprep.subr.bf16.mxu0 0
  %109 = vmatpush1.bf16.msra.mxu0 %v87
  %110 = vmatprep.subr.bf16.mxu0 0
  %111 = vmatpush1.bf16.msra.mxu0 %v88
  %112 = vmatprep.subr.bf16.mxu0 0
  %113 = vmatpush1.bf16.msra.mxu0 %v89
  %114 = vmatprep.subr.bf16.mxu0 0
  %115 = vmatpush1.bf16.msra.mxu0 0
  %116 = vmatprep.subr.bf16.mxu0 0
  %117 = vmatpush1.bf16.msra.mxu0 0
  %118 = vmatprep.subr.bf16.mxu0 0
  %119 = vmatpush1.bf16.msra.mxu0 0
  %120 = vmatprep.subr.bf16.mxu0 0
  %121 = vmatpush1.bf16.msra.mxu0 0
  %122 = vmatprep.subr.bf16.mxu0 0
  %123 = vmatpush1.bf16.msra.mxu0 0
  %124 = vmatprep.subr.bf16.mxu0 0
  %125 = vmatpush1.bf16.msra.mxu0 0
  %126 = vmatprep.subr.bf16.mxu0 0
  %127 = vmatpush1.bf16.msra.mxu0 0
  %128 = vmatprep.subr.bf16.mxu0 0
  %129 = vmatpush1.bf16.msra.mxu0 0
  %130 = vmatprep.mubr.bf16.mxu0 0
  %131 = vmatmul.mubr.bf16.gmra.mrb[0].mxu0 %v48
  %v132 = vpop.f32.mrb[0].mxu0
  %v133 = vadd.f32 0.0, %v132
  %v134 = vpop.f32.mrb[0].mxu0
  %v135 = vpop.f32.mrb[0].mxu0
  %v136 = vadd.f32 0.0, %v135
  %v137 = vpop.f32.mrb[0].mxu0
  %138 = vdwg.mxu0
  %v139 = vadd.f32 %v24, %v133
  %v140 = vadd.f32 %v25, %v136
  %141 = vst [vmem:[#allocation2] sm:$0xff] %v139
  %142 = vst [vmem:[#allocation2 + $0x8] sm:$0xff] %v140
  // Predicated region
  $region22: #{_lambda_.18} parent=0 // pred_check
    %p143 = pneg %p18
  $region23: #{_lambda_.18} parent=0 // pred_check_branch
    %145 = sbr.rel (%p143) target = $region25
  $region24: #{_lambda_.18} parent=0 // pred_region
    %v146 = vld [vmem:[#allocation2] sm:$0xff]
    %v147 = vld [vmem:[#allocation2 + $0x8] sm:$0xff]
    %v148 = vld [vmem:[%s2] sm:$0x1]
    %v150 = vlaneseq
    %v151 = vshrl.u32 %v150, 7
    %v152 = vsub.s32 0, %v151
    %v153 = vrot.slane %v148, %v152
    %v155 = vadd.f32 %v146, %v153
    %v156 = vadd.f32 %v147, %v153
    %v157 = vld [vmem:[%s3] sm:$0xf]
    %v158 = vld [vmem:[%s3 + $0x4] sm:$0xf]
    %v159 = vunpack.c.l.bf16 %v157
    %v160 = vunpack.c.l.bf16 %v158
    %v161 = vadd.f32 %v155, %v159
    %v162 = vadd.f32 %v156, %v160
    %v163 = vpack.c.bf16 %v162, %v161
    %v165 = vunpack.c.l.b16 %v163
    %v166 = vunpack.c.h.b16 %v163
    %v167 = vpack.c.b16 %v165, %v165
    %v168 = vpack.c.b16 %v166, %v166
    %171 = vst [vmem:[%s4] sm:$0xf] %v167
    %172 = vst [vmem:[%s4 + $0x4] sm:$0xf] %v168
  $region25: #{_lambda_.18} parent=0 // pred_fallthru
    _
  // Predicated region
  $region26: #{_lambda_.18} parent=0 // pred_check
    _
  $region27: #{_lambda_.18} parent=0 // pred_check_branch
    %174 = sbr.rel (0) target = $region29
  $region28: #{_lambda_.18} parent=0 // pred_region
    _
  $region29: #{_lambda_.18} parent=0 // pred_fallthru
    _
  // Predicated region
  $region30: #{_lambda_.18} parent=0 // pred_check
    _
  $region31: #{_lambda_.18} parent=0 // pred_check_branch
    %176 = sbr.rel (0) target = $region33
  $region32: #{_lambda_.18} parent=0 // pred_region
    _
  $region33: #{_lambda_.18} parent=0 // pred_fallthru
    _

// kernel: _lambda_.17
$region0: #{_lambda_.17}
  #allocation0 [shape = 'u32[]', space=smem, size = 0x4, offset = 0x4, fixed_abs, tag = 'smem constant byte address 0x4 - core index']
  #allocation1 [shape = 'u32[144,128]{1,0:T(1,128)}', space=vmem, size = 0x12000, scoped, tag = 'internal scratch']
  %s0 = inlined_call_operand.vmem [shape: bf16[2,5,96], index: 0, kind: input, shape index: {}]
  %s1 = inlined_call_operand.vmem [shape: bf16[2,5,32], index: 1, kind: output, shape index: {}]
  %s2 = sld [smem:[#allocation0]]
  $region14: #{_lambda_.17} parent=0
    _
  %s4 = ssub.s32 1, %s2
  %s5 = scalar_select 0, %s4, %s2
  // Predicated region
  $region2: #{_lambda_.17} parent=0 // pred_check
    _
  $region3: #{_lambda_.17} parent=0 // pred_check_branch
    %7 = sbr.rel (0) target = $region5
  $region4: #{_lambda_.17} parent=0 // pred_region
    _
  $region5: #{_lambda_.17} parent=0 // pred_fallthru
    _
  %v9 = vld [vmem:[%s0] sm:$0x7]
  %v10 = vld [vmem:[%s0 + $0x4] sm:$0x7]
  %v12 = vunpack.c.l.b16 %v9
  %v13 = vpack.c.b16 %v12, %v12
  %14 = vrot.lane.b32.xlu0 %v13, 96
  %v15 = vpop.permute.xlu0 %14
  %vm16 = vcmask 64512
  %v18 = vsel %vm16, %v9, 0
  %v21 = vsel %vm16, %v15, 0
  %23 = vmatprep.subr.bf16.mxu0 0
  %24 = vmatpush1.bf16.xpose.msra.mxu0 %v21
  %25 = vmatprep.subr.bf16.mxu0 0
  %26 = vmatpush1.bf16.xpose.msra.mxu0 0
  %27 = vmatprep.subr.bf16.mxu0 0
  %28 = vmatpush1.bf16.xpose.msra.mxu0 0
  %29 = vmatprep.subr.bf16.mxu0 0
  %30 = vmatpush1.bf16.xpose.msra.mxu0 0
  %31 = vmatprep.subr.bf16.mxu0 0
  %32 = vmatpush1.bf16.xpose.msra.mxu0 0
  %33 = vmatprep.subr.bf16.mxu0 0
  %34 = vmatpush1.bf16.xpose.msra.mxu0 0
  %35 = vmatprep.subr.bf16.mxu0 0
  %36 = vmatpush1.bf16.xpose.msra.mxu0 0
  %37 = vmatprep.subr.bf16.mxu0 0
  %38 = vmatpush1.bf16.xpose.msra.mxu0 0
  %39 = vmatprep.subr.bf16.mxu0 0
  %40 = vmatpush1.bf16.xpose.msra.mxu0 0
  %41 = vmatprep.subr.bf16.mxu0 0
  %42 = vmatpush1.bf16.xpose.msra.mxu0 0
  %43 = vmatprep.subr.bf16.mxu0 0
  %44 = vmatpush1.bf16.xpose.msra.mxu0 0
  %45 = vmatprep.subr.bf16.mxu0 0
  %46 = vmatpush1.bf16.xpose.msra.mxu0 0
  %47 = vmatprep.subr.bf16.mxu0 0
  %48 = vmatpush1.bf16.xpose.msra.mxu0 0
  %49 = vmatprep.subr.bf16.mxu0 0
  %50 = vmatpush1.bf16.xpose.msra.mxu0 0
  %51 = vmatprep.subr.bf16.mxu0 0
  %52 = vmatpush1.bf16.xpose.msra.mxu0 0
  %53 = vmatprep.subr.bf16.mxu0 0
  %54 = vmatpush1.bf16.xpose.msra.mxu0 0
  %55 = vmatprep.mubr.bf16.mxu0 0
  %56 = vmatmul.mubr.bf16.gmra.mrb[0].mxu0 %v18
  %v57 = vpop.f32.mrb[0].mxu0
  %v58 = vadd.f32 0.0, %v57
  %v59 = vpop.f32.mrb[0].mxu0
  %v60 = vpop.f32.mrb[0].mxu0
  %v61 = vpop.f32.mrb[0].mxu0
  %62 = vdwg.mxu0
  %v64 = vunpack.c.l.b16 %v10
  %v65 = vpack.c.b16 %v64, %v64
  %66 = vrot.lane.b32.xlu0 %v65, 96
  %v67 = vpop.permute.xlu0 %66
  %v69 = vsel %vm16, %v10, 0
  %v72 = vsel %vm16, %v67, 0
  %74 = vmatprep.subr.bf16.mxu0 0
  %75 = vmatpush1.bf16.xpose.msra.mxu0 %v72
  %76 = vmatprep.subr.bf16.mxu0 0
  %77 = vmatpush1.bf16.xpose.msra.mxu0 0
  %78 = vmatprep.subr.bf16.mxu0 0
  %79 = vmatpush1.bf16.xpose.msra.mxu0 0
  %80 = vmatprep.subr.bf16.mxu0 0
  %81 = vmatpush1.bf16.xpose.msra.mxu0 0
  %82 = vmatprep.subr.bf16.mxu0 0
  %83 = vmatpush1.bf16.xpose.msra.mxu0 0
  %84 = vmatprep.subr.bf16.mxu0 0
  %85 = vmatpush1.bf16.xpose.msra.mxu0 0
  %86 = vmatprep.subr.bf16.mxu0 0
  %87 = vmatpush1.bf16.xpose.msra.mxu0 0
  %88 = vmatprep.subr.bf16.mxu0 0
  %89 = vmatpush1.bf16.xpose.msra.mxu0 0
  %90 = vmatprep.subr.bf16.mxu0 0
  %91 = vmatpush1.bf16.xpose.msra.mxu0 0
  %92 = vmatprep.subr.bf16.mxu0 0
  %93 = vmatpush1.bf16.xpose.msra.mxu0 0
  %94 = vmatprep.subr.bf16.mxu0 0
  %95 = vmatpush1.bf16.xpose.msra.mxu0 0
  %96 = vmatprep.subr.bf16.mxu0 0
  %97 = vmatpush1.bf16.xpose.msra.mxu0 0
  %98 = vmatprep.subr.bf16.mxu0 0
  %99 = vmatpush1.bf16.xpose.msra.mxu0 0
  %100 = vmatprep.subr.bf16.mxu0 0
  %101 = vmatpush1.bf16.xpose.msra.mxu0 0
  %102 = vmatprep.subr.bf16.mxu0 0
  %103 = vmatpush1.bf16.xpose.msra.mxu0 0
  %104 = vmatprep.subr.bf16.mxu0 0
  %105 = vmatpush1.bf16.xpose.msra.mxu0 0
  %106 = vmatprep.mubr.bf16.mxu0 0
  %107 = vmatmul.mubr.bf16.gmra.mrb[0].mxu0 %v69
  %v108 = vpop.f32.mrb[0].mxu0
  %v109 = vadd.f32 0.0, %v108
  %v110 = vpop.f32.mrb[0].mxu0
  %v111 = vpop.f32.mrb[0].mxu0
  %v112 = vpop.f32.mrb[0].mxu0
  %113 = vdwg.mxu0
  %vm114 = vcmask 36864
  %v115 = vsel %vm114, %v58, -inf
  %116 = vmax.xlane.f32.xlu0 %v115
  %v117 = vpop.xlane.xlu0 %116
  %v118 = vsel %vm114, %v109, -inf
  %119 = vmax.xlane.f32.xlu0 %v118
  %v120 = vpop.xlane.xlu0 %119
  %v121 = vsub.f32 %v58, %v117
  %v122 = vsub.f32 %v109, %v120
  %v123 = vmul.f32 %v121, 1.442695
  %v124 = vpow.pop %v123
  %v125 = vmul.f32 %v122, 1.442695
  %v126 = vpow.pop %v125
  %v127 = vsel %vm114, %v124, 0.0
  %128 = vadd.xlane.f32.xlu0 %v127
  %v129 = vpop.xlane.xlu0 %128
  %v130 = vsel %vm114, %v126, 0.0
  %131 = vadd.xlane.f32.xlu0 %v130
  %v132 = vpop.xlane.xlu0 %131
  %v133 = vrcp.pop %v129
  %v134 = vrcp.pop %v132
  %v135 = vmul.f32 %v124, %v133
  %v136 = vmul.f32 %v126, %v134
  %v137 = vpack.c.bf16 %v135, %v135
  %v138 = vpack.c.bf16 %v136, %v136
  %139 = vrot.lane.b32.xlu0 %v13, 64
  %v140 = vpop.permute.xlu0 %139
  %vm141 = vcmask 39936
  %v143 = vsel %vm141, %v137, 0
  %vm145 = vcmask 1041408
  %vm146 = vcmask 1042432
  %v147 = vsel %vm145, 4294967295, 65535
  %v148 = vsel %vm146, %v147, 0
  %v150 = vand.u32 %v140, %v148
  %152 = vmatprep.subr.bf16.mxu0 0
  %153 = vmatpush1.bf16.msra.mxu0 %v150
  %154 = vmatprep.subr.bf16.mxu0 0
  %155 = vmatpush1.bf16.msra.mxu0 0
  %156 = vmatprep.subr.bf16.mxu0 0
  %157 = vmatpush1.bf16.msra.mxu0 0
  %158 = vmatprep.subr.bf16.mxu0 0
  %159 = vmatpush1.bf16.msra.mxu0 0
  %160 = vmatprep.subr.bf16.mxu0 0
  %161 = vmatpush1.bf16.msra.mxu0 0
  %162 = vmatprep.subr.bf16.mxu0 0
  %163 = vmatpush1.bf16.msra.mxu0 0
  %164 = vmatprep.subr.bf16.mxu0 0
  %165 = vmatpush1.bf16.msra.mxu0 0
  %166 = vmatprep.subr.bf16.mxu0 0
  %167 = vmatpush1.bf16.msra.mxu0 0
  %168 = vmatprep.subr.bf16.mxu0 0
  %169 = vmatpush1.bf16.msra.mxu0 0
  %170 = vmatprep.subr.bf16.mxu0 0
  %171 = vmatpush1.bf16.msra.mxu0 0
  %172 = vmatprep.subr.bf16.mxu0 0
  %173 = vmatpush1.bf16.msra.mxu0 0
  %174 = vmatprep.subr.bf16.mxu0 0
  %175 = vmatpush1.bf16.msra.mxu0 0
  %176 = vmatprep.subr.bf16.mxu0 0
  %177 = vmatpush1.bf16.msra.mxu0 0
  %178 = vmatprep.subr.bf16.mxu0 0
  %179 = vmatpush1.bf16.msra.mxu0 0
  %180 = vmatprep.subr.bf16.mxu0 0
  %181 = vmatpush1.bf16.msra.mxu0 0
  %182 = vmatprep.subr.bf16.mxu0 0
  %183 = vmatpush1.bf16.msra.mxu0 0
  %184 = vmatprep.mubr.bf16.mxu0 0
  %185 = vmatmul.mubr.bf16.gmra.mrb[0].mxu0 %v143
  %v186 = vpop.f32.mrb[0].mxu0
  %v187 = vadd.f32 0.0, %v186
  %v188 = vpop.f32.mrb[0].mxu0
  %v189 = vpop.f32.mrb[0].mxu0
  %v190 = vpop.f32.mrb[0].mxu0
  %191 = vdwg.mxu0
  %192 = vrot.lane.b32.xlu0 %v65, 64
  %v193 = vpop.permute.xlu0 %192
  %v195 = vsel %vm141, %v138, 0
  %v198 = vand.u32 %v193, %v148
  %200 = vmatprep.subr.bf16.mxu0 0
  %201 = vmatpush1.bf16.msra.mxu0 %v198
  %202 = vmatprep.subr.bf16.mxu0 0
  %203 = vmatpush1.bf16.msra.mxu0 0
  %204 = vmatprep.subr.bf16.mxu0 0
  %205 = vmatpush1.bf16.msra.mxu0 0
  %206 = vmatprep.subr.bf16.mxu0 0
  %207 = vmatpush1.bf16.msra.mxu0 0
  %208 = vmatprep.subr.bf16.mxu0 0
  %209 = vmatpush1.bf16.msra.mxu0 0
  %210 = vmatprep.subr.bf16.mxu0 0
  %211 = vmatpush1.bf16.msra.mxu0 0
  %212 = vmatprep.subr.bf16.mxu0 0
  %213 = vmatpush1.bf16.msra.mxu0 0
  %214 = vmatprep.subr.bf16.mxu0 0
  %215 = vmatpush1.bf16.msra.mxu0 0
  %216 = vmatprep.subr.bf16.mxu0 0
  %217 = vmatpush1.bf16.msra.mxu0 0
  %218 = vmatprep.subr.bf16.mxu0 0
  %219 = vmatpush1.bf16.msra.mxu0 0
  %220 = vmatprep.subr.bf16.mxu0 0
  %221 = vmatpush1.bf16.msra.mxu0 0
  %222 = vmatprep.subr.bf16.mxu0 0
  %223 = vmatpush1.bf16.msra.mxu0 0
  %224 = vmatprep.subr.bf16.mxu0 0
  %225 = vmatpush1.bf16.msra.mxu0 0
  %226 = vmatprep.subr.bf16.mxu0 0
  %227 = vmatpush1.bf16.msra.mxu0 0
  %228 = vmatprep.subr.bf16.mxu0 0
  %229 = vmatpush1.bf16.msra.mxu0 0
  %230 = vmatprep.subr.bf16.mxu0 0
  %231 = vmatpush1.bf16.msra.mxu0 0
  %232 = vmatprep.mubr.bf16.mxu0 0
  %233 = vmatmul.mubr.bf16.gmra.mrb[0].mxu0 %v195
  %v234 = vpop.f32.mrb[0].mxu0
  %v235 = vadd.f32 0.0, %v234
  %v236 = vpop.f32.mrb[0].mxu0
  %v237 = vpop.f32.mrb[0].mxu0
  %v238 = vpop.f32.mrb[0].mxu0
  %239 = vdwg.mxu0
  %240 = vrot.lane.b32.xlu0 %v13, 120
  %v241 = vpop.permute.xlu0 %240
  %242 = vrot.lane.b32.xlu0 %v13, 88
  %v243 = vpop.permute.xlu0 %242
  %v245 = vsel %vm16, %v241, 0
  %v248 = vsel %vm16, %v243, 0
  %250 = vmatprep.subr.bf16.mxu0 0
  %251 = vmatpush1.bf16.xpose.msra.mxu0 %v248
  %252 = vmatprep.subr.bf16.mxu0 0
  %253 = vmatpush1.bf16.xpose.msra.mxu0 0
  %254 = vmatprep.subr.bf16.mxu0 0
  %255 = vmatpush1.bf16.xpose.msra.mxu0 0
  %256 = vmatprep.subr.bf16.mxu0 0
  %257 = vmatpush1.bf16.xpose.msra.mxu0 0
  %258 = vmatprep.subr.bf16.mxu0 0
  %259 = vmatpush1.bf16.xpose.msra.mxu0 0
  %260 = vmatprep.subr.bf16.mxu0 0
  %261 = vmatpush1.bf16.xpose.msra.mxu0 0
  %262 = vmatprep.subr.bf16.mxu0 0
  %263 = vmatpush1.bf16.xpose.msra.mxu0 0
  %264 = vmatprep.subr.bf16.mxu0 0
  %265 = vmatpush1.bf16.xpose.msra.mxu0 0
  %266 = vmatprep.subr.bf16.mxu0 0
  %267 = vmatpush1.bf16.xpose.msra.mxu0 0
  %268 = vmatprep.subr.bf16.mxu0 0
  %269 = vmatpush1.bf16.xpose.msra.mxu0 0
  %270 = vmatprep.subr.bf16.mxu0 0
  %271 = vmatpush1.bf16.xpose.msra.mxu0 0
  %272 = vmatprep.subr.bf16.mxu0 0
  %273 = vmatpush1.bf16.xpose.msra.mxu0 0
  %274 = vmatprep.subr.bf16.mxu0 0
  %275 = vmatpush1.bf16.xpose.msra.mxu0 0
  %276 = vmatprep.subr.bf16.mxu0 0
  %277 = vmatpush1.bf16.xpose.msra.mxu0 0
  %278 = vmatprep.subr.bf16.mxu0 0
  %279 = vmatpush1.bf16.xpose.msra.mxu0 0
  %280 = vmatprep.subr.bf16.mxu0 0
  %281 = vmatpush1.bf16.xpose.msra.mxu0 0
  %282 = vmatprep.mubr.bf16.mxu0 0
  %283 = vmatmul.mubr.bf16.gmra.mrb[0].mxu0 %v245
  %v284 = vpop.f32.mrb[0].mxu0
  %v285 = vadd.f32 0.0, %v284
  %v286 = vpop.f32.mrb[0].mxu0
  %v287 = vpop.f32.mrb[0].mxu0
  %v288 = vpop.f32.mrb[0].mxu0
  %289 = vdwg.mxu0
  %290 = vrot.lane.b32.xlu0 %v65, 120
  %v291 = vpop.permute.xlu0 %290
  %292 = vrot.lane.b32.xlu0 %v65, 88
  %v293 = vpop.permute.xlu0 %292
  %v295 = vsel %vm16, %v291, 0
  %v298 = vsel %vm16, %v293, 0
  %300 = vmatprep.subr.bf16.mxu0 0
  %301 = vmatpush1.bf16.xpose.msra.mxu0 %v298
  %302 = vmatprep.subr.bf16.mxu0 0
  %303 = vmatpush1.bf16.xpose.msra.mxu0 0
  %304 = vmatprep.subr.bf16.mxu0 0
  %305 = vmatpush1.bf16.xpose.msra.mxu0 0
  %306 = vmatprep.subr.bf16.mxu0 0
  %307 = vmatpush1.bf16.xpose.msra.mxu0 0
  %308 = vmatprep.subr.bf16.mxu0 0
  %309 = vmatpush1.bf16.xpose.msra.mxu0 0
  %310 = vmatprep.subr.bf16.mxu0 0
  %311 = vmatpush1.bf16.xpose.msra.mxu0 0
  %312 = vmatprep.subr.bf16.mxu0 0
  %313 = vmatpush1.bf16.xpose.msra.mxu0 0
  %314 = vmatprep.subr.bf16.mxu0 0
  %315 = vmatpush1.bf16.xpose.msra.mxu0 0
  %316 = vmatprep.subr.bf16.mxu0 0
  %317 = vmatpush1.bf16.xpose.msra.mxu0 0
  %318 = vmatprep.subr.bf16.mxu0 0
  %319 = vmatpush1.bf16.xpose.msra.mxu0 0
  %320 = vmatprep.subr.bf16.mxu0 0
  %321 = vmatpush1.bf16.xpose.msra.mxu0 0
  %322 = vmatprep.subr.bf16.mxu0 0
  %323 = vmatpush1.bf16.xpose.msra.mxu0 0
  %324 = vmatprep.subr.bf16.mxu0 0
  %325 = vmatpush1.bf16.xpose.msra.mxu0 0
  %326 = vmatprep.subr.bf16.mxu0 0
  %327 = vmatpush1.bf16.xpose.msra.mxu0 0
  %328 = vmatprep.subr.bf16.mxu0 0
  %329 = vmatpush1.bf16.xpose.msra.mxu0 0
  %330 = vmatprep.subr.bf16.mxu0 0
  %331 = vmatpush1.bf16.xpose.msra.mxu0 0
  %332 = vmatprep.mubr.bf16.mxu0 0
  %333 = vmatmul.mubr.bf16.gmra.mrb[0].mxu0 %v295
  %v334 = vpop.f32.mrb[0].mxu0
  %v335 = vadd.f32 0.0, %v334
  %v336 = vpop.f32.mrb[0].mxu0
  %v337 = vpop.f32.mrb[0].mxu0
  %v338 = vpop.f32.mrb[0].mxu0
  %339 = vdwg.mxu0
  %v340 = vsel %vm114, %v285, -inf
  %341 = vmax.xlane.f32.xlu0 %v340
  %v342 = vpop.xlane.xlu0 %341
  %v343 = vsel %vm114, %v335, -inf
  %344 = vmax.xlane.f32.xlu0 %v343
  %v345 = vpop.xlane.xlu0 %344
  %v346 = vsub.f32 %v285, %v342
  %v347 = vsub.f32 %v335, %v345
  %v348 = vmul.f32 %v346, 1.442695
  %v349 = vpow.pop %v348
  %v350 = vmul.f32 %v347, 1.442695
  %v351 = vpow.pop %v350
  %v352 = vsel %vm114, %v349, 0.0
  %353 = vadd.xlane.f32.xlu0 %v352
  %v354 = vpop.xlane.xlu0 %353
  %v355 = vsel %vm114, %v351, 0.0
  %356 = vadd.xlane.f32.xlu0 %v355
  %v357 = vpop.xlane.xlu0 %356
  %v358 = vrcp.pop %v354
  %v359 = vrcp.pop %v357
  %v360 = vmul.f32 %v349, %v358
  %v361 = vmul.f32 %v351, %v359
  %v362 = vpack.c.bf16 %v360, %v360
  %v363 = vpack.c.bf16 %v361, %v361
  %364 = vrot.lane.b32.xlu0 %v13, 56
  %v365 = vpop.permute.xlu0 %364
  %v367 = vsel %vm141, %v362, 0
  %v370 = vand.u32 %v365, %v148
  %372 = vmatprep.subr.bf16.mxu0 0
  %373 = vmatpush1.bf16.msra.mxu0 %v370
  %374 = vmatprep.subr.bf16.mxu0 0
  %375 = vmatpush1.bf16.msra.mxu0 0
  %376 = vmatprep.subr.bf16.mxu0 0
  %377 = vmatpush1.bf16.msra.mxu0 0
  %378 = vmatprep.subr.bf16.mxu0 0
  %379 = vmatpush1.bf16.msra.mxu0 0
  %380 = vmatprep.subr.bf16.mxu0 0
  %381 = vmatpush1.bf16.msra.mxu0 0
  %382 = vmatprep.subr.bf16.mxu0 0
  %383 = vmatpush1.bf16.msra.mxu0 0
  %384 = vmatprep.subr.bf16.mxu0 0
  %385 = vmatpush1.bf16.msra.mxu0 0
  %386 = vmatprep.subr.bf16.mxu0 0
  %387 = vmatpush1.bf16.msra.mxu0 0
  %388 = vmatprep.subr.bf16.mxu0 0
  %389 = vmatpush1.bf16.msra.mxu0 0
  %390 = vmatprep.subr.bf16.mxu0 0
  %391 = vmatpush1.bf16.msra.mxu0 0
  %392 = vmatprep.subr.bf16.mxu0 0
  %393 = vmatpush1.bf16.msra.mxu0 0
  %394 = vmatprep.subr.bf16.mxu0 0
  %395 = vmatpush1.bf16.msra.mxu0 0
  %396 = vmatprep.subr.bf16.mxu0 0
  %397 = vmatpush1.bf16.msra.mxu0 0
  %398 = vmatprep.subr.bf16.mxu0 0
  %399 = vmatpush1.bf16.msra.mxu0 0
  %400 = vmatprep.subr.bf16.mxu0 0
  %401 = vmatpush1.bf16.msra.mxu0 0
  %402 = vmatprep.subr.bf16.mxu0 0
  %403 = vmatpush1.bf16.msra.mxu0 0
  %404 = vmatprep.mubr.bf16.mxu0 0
  %405 = vmatmul.mubr.bf16.gmra.mrb[0].mxu0 %v367
  %v406 = vpop.f32.mrb[0].mxu0
  %v407 = vadd.f32 0.0, %v406
  %v408 = vpop.f32.mrb[0].mxu0
  %v409 = vpop.f32.mrb[0].mxu0
  %v410 = vpop.f32.mrb[0].mxu0
  %411 = vdwg.mxu0
  %412 = vrot.lane.b32.xlu0 %v65, 56
  %v413 = vpop.permute.xlu0 %412
  %v415 = vsel %vm141, %v363, 0
  %v418 = vand.u32 %v413, %v148
  %420 = vmatprep.subr.bf16.mxu0 0
  %421 = vmatpush1.bf16.msra.mxu0 %v418
  %422 = vmatprep.subr.bf16.mxu0 0
  %423 = vmatpush1.bf16.msra.mxu0 0
  %424 = vmatprep.subr.bf16.mxu0 0
  %425 = vmatpush1.bf16.msra.mxu0 0
  %426 = vmatprep.subr.bf16.mxu0 0
  %427 = vmatpush1.bf16.msra.mxu0 0
  %428 = vmatprep.subr.bf16.mxu0 0
  %429 = vmatpush1.bf16.msra.mxu0 0
  %430 = vmatprep.subr.bf16.mxu0 0
  %431 = vmatpush1.bf16.msra.mxu0 0
  %432 = vmatprep.subr.bf16.mxu0 0
  %433 = vmatpush1.bf16.msra.mxu0 0
  %434 = vmatprep.subr.bf16.mxu0 0
  %435 = vmatpush1.bf16.msra.mxu0 0
  %436 = vmatprep.subr.bf16.mxu0 0
  %437 = vmatpush1.bf16.msra.mxu0 0
  %438 = vmatprep.subr.bf16.mxu0 0
  %439 = vmatpush1.bf16.msra.mxu0 0
  %440 = vmatprep.subr.bf16.mxu0 0
  %441 = vmatpush1.bf16.msra.mxu0 0
  %442 = vmatprep.subr.bf16.mxu0 0
  %443 = vmatpush1.bf16.msra.mxu0 0
  %444 = vmatprep.subr.bf16.mxu0 0
  %445 = vmatpush1.bf16.msra.mxu0 0
  %446 = vmatprep.subr.bf16.mxu0 0
  %447 = vmatpush1.bf16.msra.mxu0 0
  %448 = vmatprep.subr.bf16.mxu0 0
  %449 = vmatpush1.bf16.msra.mxu0 0
  %450 = vmatprep.subr.bf16.mxu0 0
  %451 = vmatpush1.bf16.msra.mxu0 0
  %452 = vmatprep.mubr.bf16.mxu0 0
  %453 = vmatmul.mubr.bf16.gmra.mrb[0].mxu0 %v415
  %v454 = vpop.f32.mrb[0].mxu0
  %v455 = vadd.f32 0.0, %v454
  %v456 = vpop.f32.mrb[0].mxu0
  %v457 = vpop.f32.mrb[0].mxu0
  %v458 = vpop.f32.mrb[0].mxu0
  %459 = vdwg.mxu0
  %460 = vrot.lane.b32.xlu0 %v13, 112
  %v461 = vpop.permute.xlu0 %460
  %462 = vrot.lane.b32.xlu0 %v13, 80
  %v463 = vpop.permute.xlu0 %462
  %v465 = vsel %vm16, %v461, 0
  %v468 = vsel %vm16, %v463, 0
  %470 = vmatprep.subr.bf16.mxu0 0
  %471 = vmatpush1.bf16.xpose.msra.mxu0 %v468
  %472 = vmatprep.subr.bf16.mxu0 0
  %473 = vmatpush1.bf16.xpose.msra.mxu0 0
  %474 = vmatprep.subr.bf16.mxu0 0
  %475 = vmatpush1.bf16.xpose.msra.mxu0 0
  %476 = vmatprep.subr.bf16.mxu0 0
  %477 = vmatpush1.bf16.xpose.msra.mxu0 0
  %478 = vmatprep.subr.bf16.mxu0 0
  %479 = vmatpush1.bf16.xpose.msra.mxu0 0
  %480 = vmatprep.subr.bf16.mxu0 0
  %481 = vmatpush1.bf16.xpose.msra.mxu0 0
  %482 = vmatprep.subr.bf16.mxu0 0
  %483 = vmatpush1.bf16.xpose.msra.mxu0 0
  %484 = vmatprep.subr.bf16.mxu0 0
  %485 = vmatpush1.bf16.xpose.msra.mxu0 0
  %486 = vmatprep.subr.bf16.mxu0 0
  %487 = vmatpush1.bf16.xpose.msra.mxu0 0
  %488 = vmatprep.subr.bf16.mxu0 0
  %489 = vmatpush1.bf16.xpose.msra.mxu0 0
  %490 = vmatprep.subr.bf16.mxu0 0
  %491 = vmatpush1.bf16.xpose.msra.mxu0 0
  %492 = vmatprep.subr.bf16.mxu0 0
  %493 = vmatpush1.bf16.xpose.msra.mxu0 0
  %494 = vmatprep.subr.bf16.mxu0 0
  %495 = vmatpush1.bf16.xpose.msra.mxu0 0
  %496 = vmatprep.subr.bf16.mxu0 0
  %497 = vmatpush1.bf16.xpose.msra.mxu0 0
  %498 = vmatprep.subr.bf16.mxu0 0
  %499 = vmatpush1.bf16.xpose.msra.mxu0 0
  %500 = vmatprep.subr.bf16.mxu0 0
  %501 = vmatpush1.bf16.xpose.msra.mxu0 0
  %502 = vmatprep.mubr.bf16.mxu0 0
  %503 = vmatmul.mubr.bf16.gmra.mrb[0].mxu0 %v465
  %v504 = vpop.f32.mrb[0].mxu0
  %v505 = vadd.f32 0.0, %v504
  %v506 = vpop.f32.mrb[0].mxu0
  %v507 = vpop.f32.mrb[0].mxu0
  %v508 = vpop.f32.mrb[0].mxu0
  %509 = vdwg.mxu0
  %510 = vrot.lane.b32.xlu0 %v65, 112
  %v511 = vpop.permute.xlu0 %510
  %512 = vrot.lane.b32.xlu0 %v65, 80
  %v513 = vpop.permute.xlu0 %512
  %v515 = vsel %vm16, %v511, 0
  %v518 = vsel %vm16, %v513, 0
  %520 = vmatprep.subr.bf16.mxu0 0
  %521 = vmatpush1.bf16.xpose.msra.mxu0 %v518
  %522 = vmatprep.subr.bf16.mxu0 0
  %523 = vmatpush1.bf16.xpose.msra.mxu0 0
  %524 = vmatprep.subr.bf16.mxu0 0
  %525 = vmatpush1.bf16.xpose.msra.mxu0 0
  %526 = vmatprep.subr.bf16.mxu0 0
  %527 = vmatpush1.bf16.xpose.msra.mxu0 0
  %528 = vmatprep.subr.bf16.mxu0 0
  %529 = vmatpush1.bf16.xpose.msra.mxu0 0
  %530 = vmatprep.subr.bf16.mxu0 0
  %531 = vmatpush1.bf16.xpose.msra.mxu0 0
  %532 = vmatprep.subr.bf16.mxu0 0
  %533 = vmatpush1.bf16.xpose.msra.mxu0 0
  %534 = vmatprep.subr.bf16.mxu0 0
  %535 = vmatpush1.bf16.xpose.msra.mxu0 0
  %536 = vmatprep.subr.bf16.mxu0 0
  %537 = vmatpush1.bf16.xpose.msra.mxu0 0
  %538 = vmatprep.subr.bf16.mxu0 0
  %539 = vmatpush1.bf16.xpose.msra.mxu0 0
  %540 = vmatprep.subr.bf16.mxu0 0
  %541 = vmatpush1.bf16.xpose.msra.mxu0 0
  %542 = vmatprep.subr.bf16.mxu0 0
  %543 = vmatpush1.bf16.xpose.msra.mxu0 0
  %544 = vmatprep.subr.bf16.mxu0 0
  %545 = vmatpush1.bf16.xpose.msra.mxu0 0
  %546 = vmatprep.subr.bf16.mxu0 0
  %547 = vmatpush1.bf16.xpose.msra.mxu0 0
  %548 = vmatprep.subr.bf16.mxu0 0
  %549 = vmatpush1.bf16.xpose.msra.mxu0 0
  %550 = vmatprep.subr.bf16.mxu0 0
  %551 = vmatpush1.bf16.xpose.msra.mxu0 0
  %552 = vmatprep.mubr.bf16.mxu0 0
  %553 = vmatmul.mubr.bf16.gmra.mrb[0].mxu0 %v515
  %v554 = vpop.f32.mrb[0].mxu0
  %v555 = vadd.f32 0.0, %v554
  %v556 = vpop.f32.mrb[0].mxu0
  %v557 = vpop.f32.mrb[0].mxu0
  %v558 = vpop.f32.mrb[0].mxu0
  %559 = vdwg.mxu0
  %v560 = vsel %vm114, %v505, -inf
  %561 = vmax.xlane.f32.xlu0 %v560
  %v562 = vpop.xlane.xlu0 %561
  %v563 = vsel %vm114, %v555, -inf
  %564 = vmax.xlane.f32.xlu0 %v563
  %v565 = vpop.xlane.xlu0 %564
  %v566 = vsub.f32 %v505, %v562
  %v567 = vsub.f32 %v555, %v565
  %v568 = vmul.f32 %v566, 1.442695
  %v569 = vpow.pop %v568
  %v570 = vmul.f32 %v567, 1.442695
  %v571 = vpow.pop %v570
  %v572 = vsel %vm114, %v569, 0.0
  %573 = vadd.xlane.f32.xlu0 %v572
  %v574 = vpop.xlane.xlu0 %573
  %v575 = vsel %vm114, %v571, 0.0
  %576 = vadd.xlane.f32.xlu0 %v575
  %v577 = vpop.xlane.xlu0 %576
  %v578 = vrcp.pop %v574
  %v579 = vrcp.pop %v577
  %v580 = vmul.f32 %v569, %v578
  %v581 = vmul.f32 %v571, %v579
  %v582 = vpack.c.bf16 %v580, %v580
  %v583 = vpack.c.bf16 %v581, %v581
  %584 = vrot.lane.b32.xlu0 %v13, 48
  %v585 = vpop.permute.xlu0 %584
  %v587 = vsel %vm141, %v582, 0
  %v590 = vand.u32 %v585, %v148
  %592 = vmatprep.subr.bf16.mxu0 0
  %593 = vmatpush1.bf16.msra.mxu0 %v590
  %594 = vmatprep.subr.bf16.mxu0 0
  %595 = vmatpush1.bf16.msra.mxu0 0
  %596 = vmatprep.subr.bf16.mxu0 0
  %597 = vmatpush1.bf16.msra.mxu0 0
  %598 = vmatprep.subr.bf16.mxu0 0
  %599 = vmatpush1.bf16.msra.mxu0 0
  %600 = vmatprep.subr.bf16.mxu0 0
  %601 = vmatpush1.bf16.msra.mxu0 0
  %602 = vmatprep.subr.bf16.mxu0 0
  %603 = vmatpush1.bf16.msra.mxu0 0
  %604 = vmatprep.subr.bf16.mxu0 0
  %605 = vmatpush1.bf16.msra.mxu0 0
  %606 = vmatprep.subr.bf16.mxu0 0
  %607 = vmatpush1.bf16.msra.mxu0 0
  %608 = vmatprep.subr.bf16.mxu0 0
  %609 = vmatpush1.bf16.msra.mxu0 0
  %610 = vmatprep.subr.bf16.mxu0 0
  %611 = vmatpush1.bf16.msra.mxu0 0
  %612 = vmatprep.subr.bf16.mxu0 0
  %613 = vmatpush1.bf16.msra.mxu0 0
  %614 = vmatprep.subr.bf16.mxu0 0
  %615 = vmatpush1.bf16.msra.mxu0 0
  %616 = vmatprep.subr.bf16.mxu0 0
  %617 = vmatpush1.bf16.msra.mxu0 0
  %618 = vmatprep.subr.bf16.mxu0 0
  %619 = vmatpush1.bf16.msra.mxu0 0
  %620 = vmatprep.subr.bf16.mxu0 0
  %621 = vmatpush1.bf16.msra.mxu0 0
  %622 = vmatprep.subr.bf16.mxu0 0
  %623 = vmatpush1.bf16.msra.mxu0 0
  %624 = vmatprep.mubr.bf16.mxu0 0
  %625 = vmatmul.mubr.bf16.gmra.mrb[0].mxu0 %v587
  %v626 = vpop.f32.mrb[0].mxu0
  %v627 = vadd.f32 0.0, %v626
  %v628 = vpop.f32.mrb[0].mxu0
  %v629 = vpop.f32.mrb[0].mxu0
  %v630 = vpop.f32.mrb[0].mxu0
  %631 = vdwg.mxu0
  %632 = vrot.lane.b32.xlu0 %v65, 48
  %v633 = vpop.permute.xlu0 %632
  %v635 = vsel %vm141, %v583, 0
  %v638 = vand.u32 %v633, %v148
  %640 = vmatprep.subr.bf16.mxu0 0
  %641 = vmatpush1.bf16.msra.mxu0 %v638
  %642 = vmatprep.subr.bf16.mxu0 0
  %643 = vmatpush1.bf16.msra.mxu0 0
  %644 = vmatprep.subr.bf16.mxu0 0
  %645 = vmatpush1.bf16.msra.mxu0 0
  %646 = vmatprep.subr.bf16.mxu0 0
  %647 = vmatpush1.bf16.msra.mxu0 0
  %648 = vmatprep.subr.bf16.mxu0 0
  %649 = vmatpush1.bf16.msra.mxu0 0
  %650 = vmatprep.subr.bf16.mxu0 0
  %651 = vmatpush1.bf16.msra.mxu0 0
  %652 = vmatprep.subr.bf16.mxu0 0
  %653 = vmatpush1.bf16.msra.mxu0 0
  %654 = vmatprep.subr.bf16.mxu0 0
  %655 = vmatpush1.bf16.msra.mxu0 0
  %656 = vmatprep.subr.bf16.mxu0 0
  %657 = vmatpush1.bf16.msra.mxu0 0
  %658 = vmatprep.subr.bf16.mxu0 0
  %659 = vmatpush1.bf16.msra.mxu0 0
  %660 = vmatprep.subr.bf16.mxu0 0
  %661 = vmatpush1.bf16.msra.mxu0 0
  %662 = vmatprep.subr.bf16.mxu0 0
  %663 = vmatpush1.bf16.msra.mxu0 0
  %664 = vmatprep.subr.bf16.mxu0 0
  %665 = vmatpush1.bf16.msra.mxu0 0
  %666 = vmatprep.subr.bf16.mxu0 0
  %667 = vmatpush1.bf16.msra.mxu0 0
  %668 = vmatprep.subr.bf16.mxu0 0
  %669 = vmatpush1.bf16.msra.mxu0 0
  %670 = vmatprep.subr.bf16.mxu0 0
  %671 = vmatpush1.bf16.msra.mxu0 0
  %672 = vmatprep.mubr.bf16.mxu0 0
  %673 = vmatmul.mubr.bf16.gmra.mrb[0].mxu0 %v635
  %v674 = vpop.f32.mrb[0].mxu0
  %v675 = vadd.f32 0.0, %v674
  %v676 = vpop.f32.mrb[0].mxu0
  %v677 = vpop.f32.mrb[0].mxu0
  %v678 = vpop.f32.mrb[0].mxu0
  %679 = vdwg.mxu0
  %680 = vrot.lane.b32.xlu0 %v13, 104
  %v681 = vpop.permute.xlu0 %680
  %682 = vrot.lane.b32.xlu0 %v13, 72
  %v683 = vpop.permute.xlu0 %682
  %v685 = vsel %vm16, %v681, 0
  %v688 = vsel %vm16, %v683, 0
  %690 = vmatprep.subr.bf16.mxu0 0
  %691 = vmatpush1.bf16.xpose.msra.mxu0 %v688
  %692 = vmatprep.subr.bf16.mxu0 0
  %693 = vmatpush1.bf16.xpose.msra.mxu0 0
  %694 = vmatprep.subr.bf16.mxu0 0
  %695 = vmatpush1.bf16.xpose.msra.mxu0 0
  %696 = vmatprep.subr.bf16.mxu0 0
  %697 = vmatpush1.bf16.xpose.msra.mxu0 0
  %698 = vmatprep.subr.bf16.mxu0 0
  %699 = vmatpush1.bf16.xpose.msra.mxu0 0
  %700 = vmatprep.subr.bf16.mxu0 0
  %701 = vmatpush1.bf16.xpose.msra.mxu0 0
  %702 = vmatprep.subr.bf16.mxu0 0
  %703 = vmatpush1.bf16.xpose.msra.mxu0 0
  %704 = vmatprep.subr.bf16.mxu0 0
  %705 = vmatpush1.bf16.xpose.msra.mxu0 0
  %706 = vmatprep.subr.bf16.mxu0 0
  %707 = vmatpush1.bf16.xpose.msra.mxu0 0
  %708 = vmatprep.subr.bf16.mxu0 0
  %709 = vmatpush1.bf16.xpose.msra.mxu0 0
  %710 = vmatprep.subr.bf16.mxu0 0
  %711 = vmatpush1.bf16.xpose.msra.mxu0 0
  %712 = vmatprep.subr.bf16.mxu0 0
  %713 = vmatpush1.bf16.xpose.msra.mxu0 0
  %714 = vmatprep.subr.bf16.mxu0 0
  %715 = vmatpush1.bf16.xpose.msra.mxu0 0
  %716 = vmatprep.subr.bf16.mxu0 0
  %717 = vmatpush1.bf16.xpose.msra.mxu0 0
  %718 = vmatprep.subr.bf16.mxu0 0
  %719 = vmatpush1.bf16.xpose.msra.mxu0 0
  %720 = vmatprep.subr.bf16.mxu0 0
  %721 = vmatpush1.bf16.xpose.msra.mxu0 0
  %722 = vmatprep.mubr.bf16.mxu0 0
  %723 = vmatmul.mubr.bf16.gmra.mrb[0].mxu0 %v685
  %v724 = vpop.f32.mrb[0].mxu0
  %v725 = vadd.f32 0.0, %v724
  %v726 = vpop.f32.mrb[0].mxu0
  %v727 = vpop.f32.mrb[0].mxu0
  %v728 = vpop.f32.mrb[0].mxu0
  %729 = vdwg.mxu0
  %730 = vrot.lane.b32.xlu0 %v65, 104
  %v731 = vpop.permute.xlu0 %730
  %732 = vrot.lane.b32.xlu0 %v65, 72
  %v733 = vpop.permute.xlu0 %732
  %v735 = vsel %vm16, %v731, 0
  %v738 = vsel %vm16, %v733, 0
  %740 = vmatprep.subr.bf16.mxu0 0
  %741 = vmatpush1.bf16.xpose.msra.mxu0 %v738
  %742 = vmatprep.subr.bf16.mxu0 0
  %743 = vmatpush1.bf16.xpose.msra.mxu0 0
  %744 = vmatprep.subr.bf16.mxu0 0
  %745 = vmatpush1.bf16.xpose.msra.mxu0 0
  %746 = vmatprep.subr.bf16.mxu0 0
  %747 = vmatpush1.bf16.xpose.msra.mxu0 0
  %748 = vmatprep.subr.bf16.mxu0 0
  %749 = vmatpush1.bf16.xpose.msra.mxu0 0
  %750 = vmatprep.subr.bf16.mxu0 0
  %751 = vmatpush1.bf16.xpose.msra.mxu0 0
  %752 = vmatprep.subr.bf16.mxu0 0
  %753 = vmatpush1.bf16.xpose.msra.mxu0 0
  %754 = vmatprep.subr.bf16.mxu0 0
  %755 = vmatpush1.bf16.xpose.msra.mxu0 0
  %756 = vmatprep.subr.bf16.mxu0 0
  %757 = vmatpush1.bf16.xpose.msra.mxu0 0
  %758 = vmatprep.subr.bf16.mxu0 0
  %759 = vmatpush1.bf16.xpose.msra.mxu0 0
  %760 = vmatprep.subr.bf16.mxu0 0
  %761 = vmatpush1.bf16.xpose.msra.mxu0 0
  %762 = vmatprep.subr.bf16.mxu0 0
  %763 = vmatpush1.bf16.xpose.msra.mxu0 0
  %764 = vmatprep.subr.bf16.mxu0 0
  %765 = vmatpush1.bf16.xpose.msra.mxu0 0
  %766 = vmatprep.subr.bf16.mxu0 0
  %767 = vmatpush1.bf16.xpose.msra.mxu0 0
  %768 = vmatprep.subr.bf16.mxu0 0
  %769 = vmatpush1.bf16.xpose.msra.mxu0 0
  %770 = vmatprep.subr.bf16.mxu0 0
  %771 = vmatpush1.bf16.xpose.msra.mxu0 0
  %772 = vmatprep.mubr.bf16.mxu0 0
  %773 = vmatmul.mubr.bf16.gmra.mrb[0].mxu0 %v735
  %v774 = vpop.f32.mrb[0].mxu0
  %v775 = vadd.f32 0.0, %v774
  %v776 = vpop.f32.mrb[0].mxu0
  %v777 = vpop.f32.mrb[0].mxu0
  %v778 = vpop.f32.mrb[0].mxu0
  %779 = vdwg.mxu0
  %v780 = vsel %vm114, %v725, -inf
  %781 = vmax.xlane.f32.xlu0 %v780
  %v782 = vpop.xlane.xlu0 %781
  %v783 = vsel %vm114, %v775, -inf
  %784 = vmax.xlane.f32.xlu0 %v783
  %v785 = vpop.xlane.xlu0 %784
  %v786 = vsub.f32 %v725, %v782
  %v787 = vsub.f32 %v775, %v785
  %v788 = vmul.f32 %v786, 1.442695
  %v789 = vpow.pop %v788
  %v790 = vmul.f32 %v787, 1.442695
  %v791 = vpow.pop %v790
  %v792 = vsel %vm114, %v789, 0.0
  %793 = vadd.xlane.f32.xlu0 %v792
  %v794 = vpop.xlane.xlu0 %793
  %v795 = vsel %vm114, %v791, 0.0
  %796 = vadd.xlane.f32.xlu0 %v795
  %v797 = vpop.xlane.xlu0 %796
  %v798 = vrcp.pop %v794
  %v799 = vrcp.pop %v797
  %v800 = vmul.f32 %v789, %v798
  %v801 = vmul.f32 %v791, %v799
  %v802 = vpack.c.bf16 %v800, %v800
  %v803 = vpack.c.bf16 %v801, %v801
  %804 = vrot.lane.b32.xlu0 %v13, 40
  %v805 = vpop.permute.xlu0 %804
  %v807 = vsel %vm141, %v802, 0
  %v810 = vand.u32 %v805, %v148
  %812 = vmatprep.subr.bf16.mxu0 0
  %813 = vmatpush1.bf16.msra.mxu0 %v810
  %814 = vmatprep.subr.bf16.mxu0 0
  %815 = vmatpush1.bf16.msra.mxu0 0
  %816 = vmatprep.subr.bf16.mxu0 0
  %817 = vmatpush1.bf16.msra.mxu0 0
  %818 = vmatprep.subr.bf16.mxu0 0
  %819 = vmatpush1.bf16.msra.mxu0 0
  %820 = vmatprep.subr.bf16.mxu0 0
  %821 = vmatpush1.bf16.msra.mxu0 0
  %822 = vmatprep.subr.bf16.mxu0 0
  %823 = vmatpush1.bf16.msra.mxu0 0
  %824 = vmatprep.subr.bf16.mxu0 0
  %825 = vmatpush1.bf16.msra.mxu0 0
  %826 = vmatprep.subr.bf16.mxu0 0
  %827 = vmatpush1.bf16.msra.mxu0 0
  %828 = vmatprep.subr.bf16.mxu0 0
  %829 = vmatpush1.bf16.msra.mxu0 0
  %830 = vmatprep.subr.bf16.mxu0 0
  %831 = vmatpush1.bf16.msra.mxu0 0
  %832 = vmatprep.subr.bf16.mxu0 0
  %833 = vmatpush1.bf16.msra.mxu0 0
  %834 = vmatprep.subr.bf16.mxu0 0
  %835 = vmatpush1.bf16.msra.mxu0 0
  %836 = vmatprep.subr.bf16.mxu0 0
  %837 = vmatpush1.bf16.msra.mxu0 0
  %838 = vmatprep.subr.bf16.mxu0 0
  %839 = vmatpush1.bf16.msra.mxu0 0
  %840 = vmatprep.subr.bf16.mxu0 0
  %841 = vmatpush1.bf16.msra.mxu0 0
  %842 = vmatprep.subr.bf16.mxu0 0
  %843 = vmatpush1.bf16.msra.mxu0 0
  %844 = vmatprep.mubr.bf16.mxu0 0
  %845 = vmatmul.mubr.bf16.gmra.mrb[0].mxu0 %v807
  %v846 = vpop.f32.mrb[0].mxu0
  %v847 = vadd.f32 0.0, %v846
  %v848 = vpop.f32.mrb[0].mxu0
  %v849 = vpop.f32.mrb[0].mxu0
  %v850 = vpop.f32.mrb[0].mxu0
  %851 = vdwg.mxu0
  %852 = vrot.lane.b32.xlu0 %v65, 40
  %v853 = vpop.permute.xlu0 %852
  %v855 = vsel %vm141, %v803, 0
  %v858 = vand.u32 %v853, %v148
  %860 = vmatprep.subr.bf16.mxu0 0
  %861 = vmatpush1.bf16.msra.mxu0 %v858
  %862 = vmatprep.subr.bf16.mxu0 0
  %863 = vmatpush1.bf16.msra.mxu0 0
  %864 = vmatprep.subr.bf16.mxu0 0
  %865 = vmatpush1.bf16.msra.mxu0 0
  %866 = vmatprep.subr.bf16.mxu0 0
  %867 = vmatpush1.bf16.msra.mxu0 0
  %868 = vmatprep.subr.bf16.mxu0 0
  %869 = vmatpush1.bf16.msra.mxu0 0
  %870 = vmatprep.subr.bf16.mxu0 0
  %871 = vmatpush1.bf16.msra.mxu0 0
  %872 = vmatprep.subr.bf16.mxu0 0
  %873 = vmatpush1.bf16.msra.mxu0 0
  %874 = vmatprep.subr.bf16.mxu0 0
  %875 = vmatpush1.bf16.msra.mxu0 0
  %876 = vmatprep.subr.bf16.mxu0 0
  %877 = vmatpush1.bf16.msra.mxu0 0
  %878 = vmatprep.subr.bf16.mxu0 0
  %879 = vmatpush1.bf16.msra.mxu0 0
  %880 = vmatprep.subr.bf16.mxu0 0
  %881 = vmatpush1.bf16.msra.mxu0 0
  %882 = vmatprep.subr.bf16.mxu0 0
  %883 = vmatpush1.bf16.msra.mxu0 0
  %884 = vmatprep.subr.bf16.mxu0 0
  %885 = vmatpush1.bf16.msra.mxu0 0
  %886 = vmatprep.subr.bf16.mxu0 0
  %887 = vmatpush1.bf16.msra.mxu0 0
  %888 = vmatprep.subr.bf16.mxu0 0
  %889 = vmatpush1.bf16.msra.mxu0 0
  %890 = vmatprep.subr.bf16.mxu0 0
  %891 = vmatpush1.bf16.msra.mxu0 0
  %892 = vmatprep.mubr.bf16.mxu0 0
  %893 = vmatmul.mubr.bf16.gmra.mrb[0].mxu0 %v855
  %v894 = vpop.f32.mrb[0].mxu0
  %v895 = vadd.f32 0.0, %v894
  %v896 = vpop.f32.mrb[0].mxu0
  %v897 = vpop.f32.mrb[0].mxu0
  %v898 = vpop.f32.mrb[0].mxu0
  %899 = vdwg.mxu0
  %902 = vrot.lane.b32.xlu0 %v407, 8
  %v903 = vpop.permute.xlu0 %902
  %904 = vrot.lane.b32.xlu0 %v455, 8
  %v905 = vpop.permute.xlu0 %904
  %910 = vrot.lane.b32.xlu0 %v627, 16
  %v911 = vpop.permute.xlu0 %910
  %912 = vrot.lane.b32.xlu0 %v675, 16
  %v913 = vpop.permute.xlu0 %912
  %918 = vrot.lane.b32.xlu0 %v847, 24
  %v919 = vpop.permute.xlu0 %918
  %920 = vrot.lane.b32.xlu0 %v895, 24
  %v921 = vpop.permute.xlu0 %920
  %v924 = vsel %vm16, %v187, %v903
  %v925 = vsel %vm16, %v235, %v905
  %vm926 = vcmask 130048
  %v927 = vsel %vm926, %v924, %v911
  %v928 = vsel %vm926, %v925, %v913
  %vm929 = vcmask 195584
  %v930 = vsel %vm929, %v927, %v919
  %v931 = vsel %vm929, %v928, %v921
  %v932 = vpack.c.bf16 %v930, %v930
  %v933 = vpack.c.bf16 %v931, %v931
  %vm934 = vcmask 256000
  %vm935 = vsmask.f32 2304
  %vm936 = vmand %vm934, %vm935
  %v937 = vld [vmem:[%s1] sm:$0x7]
  %v938 = vsel %vm936, %v932, %v937
  %939 = vst [vmem:[%s1] sm:$0x7] %v938
  %v940 = vld [vmem:[%s1 + $0x4] sm:$0x7]
  %v941 = vsel %vm936, %v933, %v940
  %942 = vst [vmem:[%s1 + $0x4] sm:$0x7] %v941
  // Predicated region
  $region6: #{_lambda_.17} parent=0 // pred_check
    _
  $region7: #{_lambda_.17} parent=0 // pred_check_branch
    %944 = sbr.rel (0) target = $region9
  $region8: #{_lambda_.17} parent=0 // pred_region
    _
  $region9: #{_lambda_.17} parent=0 // pred_fallthru
    _
  // Predicated region
  $region10: #{_lambda_.17} parent=0 // pred_check
    _
  $region11: #{_lambda_.17} parent=0 // pred_check_branch
    %946 = sbr.rel (0) target = $region13
  $region12: #{_lambda_.17} parent=0 // pred_region
    _
  $region13: #{_lambda_.17} parent=0 // pred_fallthru
    _

// kernel: _lambda_.26
$region0: #{_lambda_.26}
  #allocation0 [shape = 'u32[]', space=smem, size = 0x4, offset = 0x4, fixed_abs, tag = 'smem constant byte address 0x4 - core index']
  #allocation1 [shape = 'u32[144,128]{1,0:T(1,128)}', space=vmem, size = 0x12000, scoped, tag = 'internal scratch']
  #allocation2 [shape = 'bf16[8,32]{1,0:T(8,128)(2,1)}', space=vmem, size = 0x800, scoped, tag = 'scratch operand']
  %s0 = inlined_call_operand.vmem [shape: bf16[8,32], index: 0, kind: input, shape index: {}]
  %s1 = inlined_call_operand.vmem [shape: f32[1,32], index: 1, kind: input, shape index: {}]
  %s2 = inlined_call_operand.vmem [shape: f32[1,32], index: 2, kind: input, shape index: {}]
  %s3 = inlined_call_operand.vmem [shape: bf16[32,128], index: 3, kind: input, shape index: {}]
  %s4 = inlined_call_operand.vmem [shape: bf16[8,128], index: 4, kind: output, shape index: {}]
  %s5 = sld [smem:[#allocation0]]
  $region30: #{_lambda_.26} parent=0
    _
  %s7 = ssub.s32 1, %s5
  %s8 = scalar_select 0, %s7, %s5
  // Predicated region
  $region2: #{_lambda_.26} parent=0 // pred_check
    _
  $region3: #{_lambda_.26} parent=0 // pred_check_branch
    %10 = sbr.rel (0) target = $region5
  $region4: #{_lambda_.26} parent=0 // pred_region
    _
  $region5: #{_lambda_.26} parent=0 // pred_fallthru
    _
  // Predicated region
  $region6: #{_lambda_.26} parent=0 // pred_check
    _
  $region7: #{_lambda_.26} parent=0 // pred_check_branch
    %12 = sbr.rel (0) target = $region9
  $region8: #{_lambda_.26} parent=0 // pred_region
    _
  $region9: #{_lambda_.26} parent=0 // pred_fallthru
    _
  // Predicated region
  $region10: #{_lambda_.26} parent=0 // pred_check
    _
  $region11: #{_lambda_.26} parent=0 // pred_check_branch
    %14 = sbr.rel (0) target = $region13
  $region12: #{_lambda_.26} parent=0 // pred_region
    _
  $region13: #{_lambda_.26} parent=0 // pred_fallthru
    _
  // Predicated region
  $region14: #{_lambda_.26} parent=0 // pred_check
    _
  $region15: #{_lambda_.26} parent=0 // pred_check_branch
    %16 = sbr.rel (0) target = $region17
  $region16: #{_lambda_.26} parent=0 // pred_region
    _
  $region17: #{_lambda_.26} parent=0 // pred_fallthru
    _
  %p18 = scmp.eq.s32.totalorder 0, 0
  // Predicated region
  $region18: #{_lambda_.26} parent=0 // pred_check
    %p19 = pneg %p18
  $region19: #{_lambda_.26} parent=0 // pred_check_branch
    %21 = sbr.rel (%p19) target = $region21
  $region20: #{_lambda_.26} parent=0 // pred_region
    %v22 = vld [vmem:[%s0] sm:$0xf]
    %v23 = vunpack.c.l.bf16 %v22
    %vm24 = vcmask 261120
    %v25 = vsel %vm24, %v23, 0.0
    %26 = vadd.xlane.f32.xlu0 %v25
    %v27 = vpop.xlane.xlu0 %26
    %v28 = vrcp.pop 32.0
    %v29 = vmul.f32 %v27, %v28
    %v30 = vsub.f32 %v23, %v29
    %v31 = vmul.f32 %v30, %v30
    %v32 = vsel %vm24, %v31, 0.0
    %33 = vadd.xlane.f32.xlu0 %v32
    %v34 = vpop.xlane.xlu0 %33
    %v35 = vmul.f32 %v34, %v28
    %v36 = vadd.f32 %v35, 1e-05
    %v37 = vrsqrt.pop %v36
    %v38 = vmul.f32 %v30, %v37
    %v39 = vld [vmem:[%s1] sm:$0x1]
    %v41 = vlaneseq
    %v42 = vshrl.u32 %v41, 7
    %v43 = vsub.s32 0, %v42
    %v44 = vrot.slane %v39, %v43
    %v46 = vmul.f32 %v38, %v44
    %v47 = vld [vmem:[%s2] sm:$0x1]
    %v49 = vlaneseq
    %v50 = vshrl.u32 %v49, 7
    %v51 = vsub.s32 0, %v50
    %v52 = vrot.slane %v47, %v51
    %v54 = vadd.f32 %v46, %v52
    %v55 = vpack.c.bf16 %v54, %v54
    %vm56 = vcmask 257024
    %57 = vst.msk [vmem:[#allocation2] sm:$0xf] %vm56, %v55
  $region21: #{_lambda_.26} parent=0 // pred_fallthru
    _
  %v58 = vld [vmem:[#allocation2] sm:$0xf]
  %v59 = vld [vmem:[%s3] sm:$0xf]
  %v60 = vld [vmem:[%s3 + $0x4] sm:$0xf]
  %v61 = vld [vmem:[%s3 + $0x8] sm:$0xf]
  %v62 = vld [vmem:[%s3 + $0xc] sm:$0xf]
  %v67 = vunpack.c.l.b16 %v59
  %v68 = vunpack.c.l.b16 %v60
  %v69 = vunpack.c.l.b16 %v61
  %v70 = vunpack.c.l.b16 %v62
  %v71 = vpack.c.b16 %v68, %v67
  %v72 = vpack.c.b16 %v70, %v69
  %vm75 = vcmask 261120
  %v77 = vsel %vm75, %v58, 0
  %79 = vmatprep.subr.bf16.mxu0 0
  %80 = vmatpush1.bf16.msra.mxu0 %v71
  %81 = vmatprep.subr.bf16.mxu0 0
  %82 = vmatpush1.bf16.msra.mxu0 %v72
  %83 = vmatprep.subr.bf16.mxu0 0
  %84 = vmatpush1.bf16.msra.mxu0 0
  %85 = vmatprep.subr.bf16.mxu0 0
  %86 = vmatpush1.bf16.msra.mxu0 0
  %87 = vmatprep.subr.bf16.mxu0 0
  %88 = vmatpush1.bf16.msra.mxu0 0
  %89 = vmatprep.subr.bf16.mxu0 0
  %90 = vmatpush1.bf16.msra.mxu0 0
  %91 = vmatprep.subr.bf16.mxu0 0
  %92 = vmatpush1.bf16.msra.mxu0 0
  %93 = vmatprep.subr.bf16.mxu0 0
  %94 = vmatpush1.bf16.msra.mxu0 0
  %95 = vmatprep.subr.bf16.mxu0 0
  %96 = vmatpush1.bf16.msra.mxu0 0
  %97 = vmatprep.subr.bf16.mxu0 0
  %98 = vmatpush1.bf16.msra.mxu0 0
  %99 = vmatprep.subr.bf16.mxu0 0
  %100 = vmatpush1.bf16.msra.mxu0 0
  %101 = vmatprep.subr.bf16.mxu0 0
  %102 = vmatpush1.bf16.msra.mxu0 0
  %103 = vmatprep.subr.bf16.mxu0 0
  %104 = vmatpush1.bf16.msra.mxu0 0
  %105 = vmatprep.subr.bf16.mxu0 0
  %106 = vmatpush1.bf16.msra.mxu0 0
  %107 = vmatprep.subr.bf16.mxu0 0
  %108 = vmatpush1.bf16.msra.mxu0 0
  %109 = vmatprep.subr.bf16.mxu0 0
  %110 = vmatpush1.bf16.msra.mxu0 0
  %111 = vmatprep.mubr.bf16.mxu0 0
  %112 = vmatmul.mubr.bf16.gmra.mrb[0].mxu0 %v77
  %v113 = vpop.f32.mrb[0].mxu0
  %v114 = vadd.f32 0.0, %v113
  %v115 = vpop.f32.mrb[0].mxu0
  %v116 = vpop.f32.mrb[0].mxu0
  %v117 = vpop.f32.mrb[0].mxu0
  %118 = vdwg.mxu0
  %v119 = vpack.c.bf16 %v114, %v114
  %120 = vst [vmem:[%s4] sm:$0xf] %v119
  // Predicated region
  $region22: #{_lambda_.26} parent=0 // pred_check
    _
  $region23: #{_lambda_.26} parent=0 // pred_check_branch
    %122 = sbr.rel (0) target = $region25
  $region24: #{_lambda_.26} parent=0 // pred_region
    _
  $region25: #{_lambda_.26} parent=0 // pred_fallthru
    _
  // Predicated region
  $region26: #{_lambda_.26} parent=0 // pred_check
    _
  $region27: #{_lambda_.26} parent=0 // pred_check_branch
    %124 = sbr.rel (0) target = $region29
  $region28: #{_lambda_.26} parent=0 // pred_region
    _
  $region29: #{_lambda_.26} parent=0 // pred_fallthru
    _

// kernel: _lambda_.27
$region0: #{_lambda_.27}
  #allocation0 [shape = 'u32[]', space=smem, size = 0x4, offset = 0x4, fixed_abs, tag = 'smem constant byte address 0x4 - core index']
  #allocation1 [shape = 'u32[144,128]{1,0:T(1,128)}', space=vmem, size = 0x12000, scoped, tag = 'internal scratch']
  %s0 = inlined_call_operand.vmem [shape: bf16[8,16], index: 0, kind: input, shape index: {}]
  %s1 = inlined_call_operand.vmem [shape: bf16[16,128], index: 1, kind: input, shape index: {}]
  %s2 = inlined_call_operand.vmem [shape: f32[8,128], index: 2, kind: output, shape index: {}]
  %s3 = sld [smem:[#allocation0]]
  $region18: #{_lambda_.27} parent=0
    _
  %s5 = ssub.s32 1, %s3
  %s6 = scalar_select 0, %s5, %s3
  // Predicated region
  $region2: #{_lambda_.27} parent=0 // pred_check
    _
  $region3: #{_lambda_.27} parent=0 // pred_check_branch
    %8 = sbr.rel (0) target = $region5
  $region4: #{_lambda_.27} parent=0 // pred_region
    _
  $region5: #{_lambda_.27} parent=0 // pred_fallthru
    _
  // Predicated region
  $region6: #{_lambda_.27} parent=0 // pred_check
    _
  $region7: #{_lambda_.27} parent=0 // pred_check_branch
    %10 = sbr.rel (0) target = $region9
  $region8: #{_lambda_.27} parent=0 // pred_region
    _
  $region9: #{_lambda_.27} parent=0 // pred_fallthru
    _
  %v12 = vld [vmem:[%s0] sm:$0xf]
  %v13 = vunpack.c.l.bf16 %v12
  %v14 = vmul.f32 %v13, %v13
  %vm15 = vcmask 130048
  %v16 = vsel %vm15, %v14, 0.0
  %17 = vadd.xlane.f32.xlu0 %v16
  %v18 = vpop.xlane.xlu0 %17
  %v19 = vadd.f32 %v18, 1e-12
  %v20 = vrsqrt.pop %v19
  %v21 = vmul.f32 %v13, %v20
  %v22 = vpack.c.bf16 %v21, %v21
  %v23 = vld [vmem:[%s1] sm:$0xf]
  %v24 = vld [vmem:[%s1 + $0x4] sm:$0xf]
  %v27 = vunpack.c.l.b16 %v23
  %v28 = vunpack.c.l.b16 %v24
  %v29 = vpack.c.b16 %v28, %v27
  %v32 = vsel %vm15, %v22, 0
  %34 = vmatprep.subr.bf16.mxu0 0
  %35 = vmatpush1.bf16.msra.mxu0 %v29
  %36 = vmatprep.subr.bf16.mxu0 0
  %37 = vmatpush1.bf16.msra.mxu0 0
  %38 = vmatprep.subr.bf16.mxu0 0
  %39 = vmatpush1.bf16.msra.mxu0 0
  %40 = vmatprep.subr.bf16.mxu0 0
  %41 = vmatpush1.bf16.msra.mxu0 0
  %42 = vmatprep.subr.bf16.mxu0 0
  %43 = vmatpush1.bf16.msra.mxu0 0
  %44 = vmatprep.subr.bf16.mxu0 0
  %45 = vmatpush1.bf16.msra.mxu0 0
  %46 = vmatprep.subr.bf16.mxu0 0
  %47 = vmatpush1.bf16.msra.mxu0 0
  %48 = vmatprep.subr.bf16.mxu0 0
  %49 = vmatpush1.bf16.msra.mxu0 0
  %50 = vmatprep.subr.bf16.mxu0 0
  %51 = vmatpush1.bf16.msra.mxu0 0
  %52 = vmatprep.subr.bf16.mxu0 0
  %53 = vmatpush1.bf16.msra.mxu0 0
  %54 = vmatprep.subr.bf16.mxu0 0
  %55 = vmatpush1.bf16.msra.mxu0 0
  %56 = vmatprep.subr.bf16.mxu0 0
  %57 = vmatpush1.bf16.msra.mxu0 0
  %58 = vmatprep.subr.bf16.mxu0 0
  %59 = vmatpush1.bf16.msra.mxu0 0
  %60 = vmatprep.subr.bf16.mxu0 0
  %61 = vmatpush1.bf16.msra.mxu0 0
  %62 = vmatprep.subr.bf16.mxu0 0
  %63 = vmatpush1.bf16.msra.mxu0 0
  %64 = vmatprep.subr.bf16.mxu0 0
  %65 = vmatpush1.bf16.msra.mxu0 0
  %66 = vmatprep.mubr.bf16.mxu0 0
  %67 = vmatmul.mubr.bf16.gmra.mrb[0].mxu0 %v32
  %v68 = vpop.f32.mrb[0].mxu0
  %v69 = vadd.f32 0.0, %v68
  %v70 = vpop.f32.mrb[0].mxu0
  %v71 = vpop.f32.mrb[0].mxu0
  %v72 = vpop.f32.mrb[0].mxu0
  %73 = vdwg.mxu0
  %v74 = vmul.f32 %v69, 100.0
  %75 = vst [vmem:[%s2] sm:$0xff] %v74
  // Predicated region
  $region10: #{_lambda_.27} parent=0 // pred_check
    _
  $region11: #{_lambda_.27} parent=0 // pred_check_branch
    %77 = sbr.rel (0) target = $region13
  $region12: #{_lambda_.27} parent=0 // pred_region
    _
  $region13: #{_lambda_.27} parent=0 // pred_fallthru
    _
  // Predicated region
  $region14: #{_lambda_.27} parent=0 // pred_check
    _
  $region15: #{_lambda_.27} parent=0 // pred_check_branch
    %79 = sbr.rel (0) target = $region17
  $region16: #{_lambda_.27} parent=0 // pred_region
    _
  $region17: #{_lambda_.27} parent=0 // pred_fallthru
    _

</llo_original>
